<compile_context>
chip_gen: v5e
topology: v5e:2x2
jax: 0.10.0
libtpu: 0.0.40
codegen_flags: <defaults>
</compile_context>

<pallas_src>
import jax
import jax.numpy as jnp
from jax import lax
from jax.experimental import pallas as pl
from jax.experimental.pallas import tpu as pltpu

C = 64        # trunk width
COUT = 34     # true number of output channels (PyTorch)
K1 = 32       # conv1 im2col depth: 3*3*3 = 27, padded to 32


def _make_unet_kernel(H, W):
    Hh, Wh = H // 2, W // 2

    def zero_halo(ref, hs, ws):
        """Zero the 1-pixel border of a (hs+2, ws+2, C) halo buffer."""
        ref[pl.ds(0, 1), :, :] = jnp.zeros((1, ws + 2, C), jnp.float32)
        ref[pl.ds(hs + 1, 1), :, :] = jnp.zeros((1, ws + 2, C), jnp.float32)
        ref[:, pl.ds(0, 1), :] = jnp.zeros((hs + 2, 1, C), jnp.float32)
        ref[:, pl.ds(ws + 1, 1), :] = jnp.zeros((hs + 2, 1, C), jnp.float32)

    def conv3x3(src_ref, hs, ws, w_ref, b_ref):
        """SAME 3x3 conv over a (hs+2, ws+2, C) f32 halo buffer.

        9 accumulating MXU matmuls (bf16 operands, f32 accumulation), bias+ReLU
        on the f32 accumulator.  No staging buffer, no masked staging stores.
        """
        m = hs * ws
        acc = None
        for k in range(9):
            dy, dx = k // 3, k % 3
            patch = src_ref[pl.ds(dy, hs), pl.ds(dx, ws), :]
            patch = patch.reshape(m, C).astype(jnp.bfloat16)
            part = jnp.dot(patch, w_ref[pl.ds(k * C, C), :],
                           preferred_element_type=jnp.float32)
            acc = part if acc is None else acc + part
        return jnp.maximum(acc + b_ref[...], 0.0)          # (m, C) f32

    def kernel(xc_ref, w1_ref, b1_ref, w2_ref, b2_ref, w3_ref, b3_ref,
               w4_ref, b4_ref, o_ref, a1p_ref, rowp_ref, a2p_ref, a3p_ref):
        # Scratch is per-core private and persists across grid steps; interiors
        # are fully rewritten below, halo borders must be zero EVERY step.
        zero_halo(a1p_ref, H, W)
        zero_halo(a2p_ref, Hh, Wh)
        zero_halo(a3p_ref, Hh, Wh)

        # ---------------- encoder: conv1 -> ReLU (im2col prebuilt) ----------
        h1 = jnp.dot(xc_ref[0], w1_ref[...], preferred_element_type=jnp.float32)
        h1 = jnp.maximum(h1 + b1_ref[...], 0.0)
        a1p_ref[pl.ds(1, H), pl.ds(1, W), :] = h1.reshape(H, W, C)

        # -------- encoder: conv2 -> ReLU -> fused 2x2 max-pool --------------
        h2 = conv3x3(a1p_ref, H, W, w2_ref, b2_ref).reshape(Hh, 2, W, C)
        rowp_ref[...] = jnp.maximum(h2[:, 0, :, :], h2[:, 1, :, :])    # pool rows
        pooled = jnp.maximum(rowp_ref[:, pl.ds(0, Wh, 2), :],          # pool cols
                             rowp_ref[:, pl.ds(1, Wh, 2), :])          # (even/odd)
        a2p_ref[pl.ds(1, Hh), pl.ds(1, Wh), :] = pooled

        # ---------------- decoder: conv3 -> ReLU -----------------------------
        h3 = conv3x3(a2p_ref, Hh, Wh, w3_ref, b3_ref)
        a3p_ref[pl.ds(1, Hh), pl.ds(1, Wh), :] = h3.reshape(Hh, Wh, C)

        # ---- decoder: conv4 -> ReLU -> 2x nearest upsample (lane-dense) -----
        h4 = conv3x3(a3p_ref, Hh, Wh, w4_ref, b4_ref)
        y = h4.reshape(Hh, Wh, C)
        y2 = jnp.concatenate([y, y], axis=-1)        # (Hh, Wh, 2C): 128 dense lanes
        o_ref[0, :, 0, :, :] = y2                    # out[2i+0, 2j+dj, c] = y[i,j,c]
        o_ref[0, :, 1, :, :] = y2                    # out[2i+1, 2j+dj, c] = y[i,j,c]

    return kernel


def unet_forward(x_nchw, params):
    N, cin, H, W = x_nchw.shape
    assert cin == 3, "UNet expects 3 input channels"
    assert H % 2 == 0 and W % 2 == 0, "H, W must be even (2x2 pool / upsample)"
    assert W % 8 == 0 and (W // 2) % 8 == 0, "W and W/2 must be multiples of 8"
    # NOTE: for large H*W, switch to row-band tiling over H (grid=(N, H/band))
    # and set vmem_limit_bytes (v7x has 64 MiB VMEM); not needed at these sizes.
    Hh, Wh = H // 2, W // 2

    x = jnp.transpose(x_nchw, (0, 2, 3, 1))                       # NHWC
    xp = jnp.pad(x, ((0, 0), (1, 1), (1, 1), (0, 0)))
    # conv1 im2col pre-built in XLA (tiny): (N, H*W, 27) -> pad K to 32, bf16.
    cols = jnp.concatenate(
        [xp[:, dy:dy + H, dx:dx + W, :] for dy in range(3) for dx in range(3)],
        axis=-1).reshape(N, H * W, 27)
    cols = jnp.pad(cols, ((0, 0), (0, 0), (0, K1 - 27))).astype(jnp.bfloat16)

    # flatten HWIO weights to (9*Cin, Cout) tap-major layout, cast to bf16
    w1 = jnp.pad(params["w1"].reshape(27, C),
                 ((0, K1 - 27), (0, 0))).astype(jnp.bfloat16)
    w2 = params["w2"].reshape(9 * C, C).astype(jnp.bfloat16)
    w3 = params["w3"].reshape(9 * C, C).astype(jnp.bfloat16)
    w4 = jnp.pad(params["w4"], ((0, 0), (0, 0), (0, 0), (0, C - COUT)))
    w4 = w4.reshape(9 * C, C).astype(jnp.bfloat16)
    b1 = params["b1"].reshape(1, C)
    b2 = params["b2"].reshape(1, C)
    b3 = params["b3"].reshape(1, C)
    b4 = jnp.pad(params["b4"], (0, C - COUT)).reshape(1, C)

    wspec = pl.BlockSpec((9 * C, C), lambda n: (0, 0))
    bspec = pl.BlockSpec((1, C), lambda n: (0, 0))

    out6 = pl.pallas_call(
        _make_unet_kernel(H, W),
        out_shape=jax.ShapeDtypeStruct((N, Hh, 2, Wh, 2 * C), jnp.float32),
        grid=(N,),
        in_specs=[
            pl.BlockSpec((1, H * W, K1), lambda n: (n, 0, 0)),   # conv1 im2col
            pl.BlockSpec((K1, C), lambda n: (0, 0)), bspec,      # conv1 w, b
            wspec, bspec,                                         # conv2
            wspec, bspec,                                         # conv3
            wspec, bspec,                                         # conv4
        ],
        out_specs=pl.BlockSpec((1, Hh, 2, Wh, 2 * C),
                               lambda n: (n, 0, 0, 0, 0)),
        scratch_shapes=[
            pltpu.VMEM((H + 2, W + 2, C), jnp.float32),     # conv1 out (+halo)
            pltpu.VMEM((Hh, W, C), jnp.float32),            # row-pooled conv2
            pltpu.VMEM((Hh + 2, Wh + 2, C), jnp.float32),   # pooled (+halo)
            pltpu.VMEM((Hh + 2, Wh + 2, C), jnp.float32),   # conv3 out (+halo)
        ],
        compiler_params=pltpu.CompilerParams(dimension_semantics=("parallel",)),
    )(cols, w1, b1, w2, b2, w3, b3, w4, b4)

    # (N, Hh, 2, Wh, 2*C) -> (N, H, W, C): a FREE row-major reshape.
    out = out6.reshape(N, H, W, C)[..., :COUT]
    return jnp.transpose(out, (0, 3, 1, 2))                   # -> NCHW


# ----------------------------------------------------------------------------
# Pure-JAX reference (mirrors the kernel's bf16-operand / f32-accumulate convs)
# ----------------------------------------------------------------------------
def unet_reference(x_nchw, params):
    x = jnp.transpose(x_nchw, (0, 2, 3, 1))

    def conv(y, w, b):
        y = lax.conv_general_dilated(
            y.astype(jnp.bfloat16), w.astype(jnp.bfloat16),
            window_strides=(1, 1), padding="SAME",
            dimension_numbers=("NHWC", "HWIO", "NHWC"),
            preferred_element_type=jnp.float32)
        return jax.nn.relu(y + b)

    x = conv(x, params["w1"], params["b1"])
    x = conv(x, params["w2"], params["b2"])
    x = lax.reduce_window(x, -jnp.inf, lax.max, (1, 2, 2, 1), (1, 2, 2, 1), "VALID")
    x = conv(x, params["w3"], params["b3"])
    x = conv(x, params["w4"], params["b4"])
    x = jnp.repeat(jnp.repeat(x, 2, axis=1), 2, axis=2)
    return jnp.transpose(x, (0, 3, 1, 2))


def init_params(key):
    ks = jax.random.split(key, 8)
    def w(k, cin, cout):
        return (jax.random.normal(k, (3, 3, cin, cout), jnp.float32)
                * (1.0 / jnp.sqrt(9.0 * cin)))
    def b(k, cout):
        return jax.random.normal(k, (cout,), jnp.float32) * 0.01
    return {
        "w1": w(ks[0], 3, 64),  "b1": b(ks[1], 64),
        "w2": w(ks[2], 64, 64), "b2": b(ks[3], 64),
        "w3": w(ks[4], 64, 64), "b3": b(ks[5], 64),
        "w4": w(ks[6], 64, COUT), "b4": b(ks[7], COUT),
    }


if __name__ == "__main__":
    key = jax.random.PRNGKey(0)
    kx, kp = jax.random.split(key)
    x = jax.random.normal(kx, (2, 3, 16, 16), jnp.float32)     # NCHW, like PyTorch
    params = init_params(kp)

    out = jax.jit(unet_forward)(x, params)
    out = jax.block_until_ready(out)

    ref = unet_reference(x, params)
    assert out.shape == (2, COUT, 16, 16), out.shape
    err = float(jnp.max(jnp.abs(out - ref)))
    assert err < 3e-2, f"max abs diff vs reference: {err}"

    print("KERNEL_OK")
</pallas_src>

<mosaic_0001>
module attributes {stable_mosaic.version = 11 : i64} {
  func.func @kernel(%arg0: i32, %arg1: memref<1x256x32xbf16, #tpu.memory_space<vmem>>, %arg2: memref<32x64xbf16, #tpu.memory_space<vmem>>, %arg3: memref<1x64xf32, #tpu.memory_space<vmem>>, %arg4: memref<576x64xbf16, #tpu.memory_space<vmem>>, %arg5: memref<1x64xf32, #tpu.memory_space<vmem>>, %arg6: memref<576x64xbf16, #tpu.memory_space<vmem>>, %arg7: memref<1x64xf32, #tpu.memory_space<vmem>>, %arg8: memref<576x64xbf16, #tpu.memory_space<vmem>>, %arg9: memref<1x64xf32, #tpu.memory_space<vmem>>, %arg10: memref<1x8x2x8x128xf32, #tpu.memory_space<vmem>>, %arg11: memref<18x18x64xf32, #tpu.memory_space<vmem>>, %arg12: memref<8x16x64xf32, #tpu.memory_space<vmem>>, %arg13: memref<10x10x64xf32, #tpu.memory_space<vmem>>, %arg14: memref<10x10x64xf32, #tpu.memory_space<vmem>>) attributes {dimension_semantics = [#tpu.dimension_semantics<parallel>], iteration_bounds = array<i64: 2>, scalar_prefetch = 0 : i64, scratch_operands = 4 : i64, tpu.core_type = #tpu.core_type<tc>, window_params = [{transform_indices = @transform_0, window_bounds = array<i64: 1, 256, 32>}, {pipeline_mode = #tpu.pipeline_mode<synchronous>, transform_indices = @transform_1, window_bounds = array<i64: 32, 64>}, {pipeline_mode = #tpu.pipeline_mode<synchronous>, transform_indices = @transform_2, window_bounds = array<i64: 1, 64>}, {pipeline_mode = #tpu.pipeline_mode<synchronous>, transform_indices = @transform_3, window_bounds = array<i64: 576, 64>}, {pipeline_mode = #tpu.pipeline_mode<synchronous>, transform_indices = @transform_4, window_bounds = array<i64: 1, 64>}, {pipeline_mode = #tpu.pipeline_mode<synchronous>, transform_indices = @transform_5, window_bounds = array<i64: 576, 64>}, {pipeline_mode = #tpu.pipeline_mode<synchronous>, transform_indices = @transform_6, window_bounds = array<i64: 1, 64>}, {pipeline_mode = #tpu.pipeline_mode<synchronous>, transform_indices = @transform_7, window_bounds = array<i64: 576, 64>}, {pipeline_mode = #tpu.pipeline_mode<synchronous>, transform_indices = @transform_8, window_bounds = array<i64: 1, 64>}, {transform_indices = @transform_9, window_bounds = array<i64: 1, 8, 2, 8, 128>}]} {
    %cst = arith.constant 0.000000e+00 : f32
    %0 = vector.broadcast %cst : f32 to vector<1x18x64xf32>
    %c0 = arith.constant 0 : index
    %c0_0 = arith.constant 0 : index
    %c0_1 = arith.constant 0 : index
    %1 = vector.load %arg11[%c0, %c0_0, %c0_1] : memref<18x18x64xf32, #tpu.memory_space<vmem>>, vector<1x18x64xf32>
    tpu.vector_store %arg11[%c0, %c0_0, %c0_1], %0 {strides = array<i32>} : memref<18x18x64xf32, #tpu.memory_space<vmem>>, vector<1x18x64xf32>,
    %cst_2 = arith.constant 0.000000e+00 : f32
    %2 = vector.broadcast %cst_2 : f32 to vector<1x18x64xf32>
    %c17 = arith.constant 17 : index
    %c0_3 = arith.constant 0 : index
    %c0_4 = arith.constant 0 : index
    %3 = vector.load %arg11[%c17, %c0_3, %c0_4] : memref<18x18x64xf32, #tpu.memory_space<vmem>>, vector<1x18x64xf32>
    tpu.vector_store %arg11[%c17, %c0_3, %c0_4], %2 {strides = array<i32>} : memref<18x18x64xf32, #tpu.memory_space<vmem>>, vector<1x18x64xf32>,
    %cst_5 = arith.constant 0.000000e+00 : f32
    %4 = vector.broadcast %cst_5 : f32 to vector<18x1x64xf32>
    %c0_6 = arith.constant 0 : index
    %c0_7 = arith.constant 0 : index
    %c0_8 = arith.constant 0 : index
    %5 = vector.load %arg11[%c0_6, %c0_7, %c0_8] : memref<18x18x64xf32, #tpu.memory_space<vmem>>, vector<18x1x64xf32>
    tpu.vector_store %arg11[%c0_6, %c0_7, %c0_8], %4 {strides = array<i32>} : memref<18x18x64xf32, #tpu.memory_space<vmem>>, vector<18x1x64xf32>,
    %cst_9 = arith.constant 0.000000e+00 : f32
    %6 = vector.broadcast %cst_9 : f32 to vector<18x1x64xf32>
    %c0_10 = arith.constant 0 : index
    %c17_11 = arith.constant 17 : index
    %c0_12 = arith.constant 0 : index
    %7 = vector.load %arg11[%c0_10, %c17_11, %c0_12] : memref<18x18x64xf32, #tpu.memory_space<vmem>>, vector<18x1x64xf32>
    tpu.vector_store %arg11[%c0_10, %c17_11, %c0_12], %6 {strides = array<i32>} : memref<18x18x64xf32, #tpu.memory_space<vmem>>, vector<18x1x64xf32>,
    %cst_13 = arith.constant 0.000000e+00 : f32
    %8 = vector.broadcast %cst_13 : f32 to vector<1x10x64xf32>
    %c0_14 = arith.constant 0 : index
    %c0_15 = arith.constant 0 : index
    %c0_16 = arith.constant 0 : index
    %9 = vector.load %arg13[%c0_14, %c0_15, %c0_16] : memref<10x10x64xf32, #tpu.memory_space<vmem>>, vector<1x10x64xf32>
    tpu.vector_store %arg13[%c0_14, %c0_15, %c0_16], %8 {strides = array<i32>} : memref<10x10x64xf32, #tpu.memory_space<vmem>>, vector<1x10x64xf32>,
    %cst_17 = arith.constant 0.000000e+00 : f32
    %10 = vector.broadcast %cst_17 : f32 to vector<1x10x64xf32>
    %c9 = arith.constant 9 : index
    %c0_18 = arith.constant 0 : index
    %c0_19 = arith.constant 0 : index
    %11 = vector.load %arg13[%c9, %c0_18, %c0_19] : memref<10x10x64xf32, #tpu.memory_space<vmem>>, vector<1x10x64xf32>
    tpu.vector_store %arg13[%c9, %c0_18, %c0_19], %10 {strides = array<i32>} : memref<10x10x64xf32, #tpu.memory_space<vmem>>, vector<1x10x64xf32>,
    %cst_20 = arith.constant 0.000000e+00 : f32
    %12 = vector.broadcast %cst_20 : f32 to vector<10x1x64xf32>
    %c0_21 = arith.constant 0 : index
    %c0_22 = arith.constant 0 : index
    %c0_23 = arith.constant 0 : index
    %13 = vector.load %arg13[%c0_21, %c0_22, %c0_23] : memref<10x10x64xf32, #tpu.memory_space<vmem>>, vector<10x1x64xf32>
    tpu.vector_store %arg13[%c0_21, %c0_22, %c0_23], %12 {strides = array<i32>} : memref<10x10x64xf32, #tpu.memory_space<vmem>>, vector<10x1x64xf32>,
    %cst_24 = arith.constant 0.000000e+00 : f32
    %14 = vector.broadcast %cst_24 : f32 to vector<10x1x64xf32>
    %c0_25 = arith.constant 0 : index
    %c9_26 = arith.constant 9 : index
    %c0_27 = arith.constant 0 : index
    %15 = vector.load %arg13[%c0_25, %c9_26, %c0_27] : memref<10x10x64xf32, #tpu.memory_space<vmem>>, vector<10x1x64xf32>
    tpu.vector_store %arg13[%c0_25, %c9_26, %c0_27], %14 {strides = array<i32>} : memref<10x10x64xf32, #tpu.memory_space<vmem>>, vector<10x1x64xf32>,
    %cst_28 = arith.constant 0.000000e+00 : f32
    %16 = vector.broadcast %cst_28 : f32 to vector<1x10x64xf32>
    %c0_29 = arith.constant 0 : index
    %c0_30 = arith.constant 0 : index
    %c0_31 = arith.constant 0 : index
    %17 = vector.load %arg14[%c0_29, %c0_30, %c0_31] : memref<10x10x64xf32, #tpu.memory_space<vmem>>, vector<1x10x64xf32>
    tpu.vector_store %arg14[%c0_29, %c0_30, %c0_31], %16 {strides = array<i32>} : memref<10x10x64xf32, #tpu.memory_space<vmem>>, vector<1x10x64xf32>,
    %cst_32 = arith.constant 0.000000e+00 : f32
    %18 = vector.broadcast %cst_32 : f32 to vector<1x10x64xf32>
    %c9_33 = arith.constant 9 : index
    %c0_34 = arith.constant 0 : index
    %c0_35 = arith.constant 0 : index
    %19 = vector.load %arg14[%c9_33, %c0_34, %c0_35] : memref<10x10x64xf32, #tpu.memory_space<vmem>>, vector<1x10x64xf32>
    tpu.vector_store %arg14[%c9_33, %c0_34, %c0_35], %18 {strides = array<i32>} : memref<10x10x64xf32, #tpu.memory_space<vmem>>, vector<1x10x64xf32>,
    %cst_36 = arith.constant 0.000000e+00 : f32
    %20 = vector.broadcast %cst_36 : f32 to vector<10x1x64xf32>
    %c0_37 = arith.constant 0 : index
    %c0_38 = arith.constant 0 : index
    %c0_39 = arith.constant 0 : index
    %21 = vector.load %arg14[%c0_37, %c0_38, %c0_39] : memref<10x10x64xf32, #tpu.memory_space<vmem>>, vector<10x1x64xf32>
    tpu.vector_store %arg14[%c0_37, %c0_38, %c0_39], %20 {strides = array<i32>} : memref<10x10x64xf32, #tpu.memory_space<vmem>>, vector<10x1x64xf32>,
    %cst_40 = arith.constant 0.000000e+00 : f32
    %22 = vector.broadcast %cst_40 : f32 to vector<10x1x64xf32>
    %c0_41 = arith.constant 0 : index
    %c9_42 = arith.constant 9 : index
    %c0_43 = arith.constant 0 : index
    %23 = vector.load %arg14[%c0_41, %c9_42, %c0_43] : memref<10x10x64xf32, #tpu.memory_space<vmem>>, vector<10x1x64xf32>
    tpu.vector_store %arg14[%c0_41, %c9_42, %c0_43], %22 {strides = array<i32>} : memref<10x10x64xf32, #tpu.memory_space<vmem>>, vector<10x1x64xf32>,
    %c0_44 = arith.constant 0 : index
    %c0_45 = arith.constant 0 : index
    %c0_46 = arith.constant 0 : index
    %24 = vector.load %arg1[%c0_44, %c0_45, %c0_46] : memref<1x256x32xbf16, #tpu.memory_space<vmem>>, vector<1x256x32xbf16>
    %25 = vector.shape_cast %24 : vector<1x256x32xbf16> to vector<256x32xbf16>
    %c0_47 = arith.constant 0 : index
    %c0_48 = arith.constant 0 : index
    %26 = vector.load %arg2[%c0_47, %c0_48] : memref<32x64xbf16, #tpu.memory_space<vmem>>, vector<32x64xbf16>
    %cst_49 = arith.constant dense<0.000000e+00> : vector<256x64xf32>
    %27 = tpu.matmul %25, %26, %cst_49 {dimension_numbers = #tpu.dot_dimension_numbers<[1], [0], [0], [1], [0, 0, 1, 1], [], []>} : vector<256x32xbf16>, vector<32x64xbf16>, vector<256x64xf32> -> vector<256x64xf32>
    %c0_50 = arith.constant 0 : index
    %c0_51 = arith.constant 0 : index
    %28 = vector.load %arg3[%c0_50, %c0_51] : memref<1x64xf32, #tpu.memory_space<vmem>>, vector<1x64xf32>
    %29 = vector.broadcast %28 : vector<1x64xf32> to vector<256x64xf32>
    %30 = arith.addf %27, %29 : vector<256x64xf32>
    %cst_52 = arith.constant 0.000000e+00 : f32
    %31 = vector.broadcast %cst_52 : f32 to vector<256x64xf32>
    %32 = arith.maximumf %30, %31 : vector<256x64xf32>
    %33 = vector.shape_cast %32 : vector<256x64xf32> to vector<16x16x64xf32>
    %c1 = arith.constant 1 : index
    %c1_53 = arith.constant 1 : index
    %c0_54 = arith.constant 0 : index
    %34 = vector.load %arg11[%c1, %c1_53, %c0_54] : memref<18x18x64xf32, #tpu.memory_space<vmem>>, vector<16x16x64xf32>
    tpu.vector_store %arg11[%c1, %c1_53, %c0_54], %33 {strides = array<i32>} : memref<18x18x64xf32, #tpu.memory_space<vmem>>, vector<16x16x64xf32>,
    %c0_55 = arith.constant 0 : index
    %c0_56 = arith.constant 0 : index
    %c0_57 = arith.constant 0 : index
    %35 = vector.load %arg11[%c0_55, %c0_56, %c0_57] : memref<18x18x64xf32, #tpu.memory_space<vmem>>, vector<16x16x64xf32>
    %36 = vector.shape_cast %35 : vector<16x16x64xf32> to vector<256x64xf32>
    %37 = arith.truncf %36 : vector<256x64xf32> to vector<256x64xbf16>
    %c0_58 = arith.constant 0 : index
    %c0_59 = arith.constant 0 : index
    %38 = vector.load %arg4[%c0_58, %c0_59] : memref<576x64xbf16, #tpu.memory_space<vmem>>, vector<64x64xbf16>
    %cst_60 = arith.constant dense<0.000000e+00> : vector<256x64xf32>
    %39 = tpu.matmul %37, %38, %cst_60 {dimension_numbers = #tpu.dot_dimension_numbers<[1], [0], [0], [1], [0, 0, 1, 1], [], []>} : vector<256x64xbf16>, vector<64x64xbf16>, vector<256x64xf32> -> vector<256x64xf32>
    %c0_61 = arith.constant 0 : index
    %c1_62 = arith.constant 1 : index
    %c0_63 = arith.constant 0 : index
    %40 = vector.load %arg11[%c0_61, %c1_62, %c0_63] : memref<18x18x64xf32, #tpu.memory_space<vmem>>, vector<16x16x64xf32>
    %41 = vector.shape_cast %40 : vector<16x16x64xf32> to vector<256x64xf32>
    %42 = arith.truncf %41 : vector<256x64xf32> to vector<256x64xbf16>
    %c64 = arith.constant 64 : index
    %c0_64 = arith.constant 0 : index
    %43 = vector.load %arg4[%c64, %c0_64] : memref<576x64xbf16, #tpu.memory_space<vmem>>, vector<64x64xbf16>
    %cst_65 = arith.constant dense<0.000000e+00> : vector<256x64xf32>
    %44 = tpu.matmul %42, %43, %cst_65 {dimension_numbers = #tpu.dot_dimension_numbers<[1], [0], [0], [1], [0, 0, 1, 1], [], []>} : vector<256x64xbf16>, vector<64x64xbf16>, vector<256x64xf32> -> vector<256x64xf32>
    %45 = arith.addf %39, %44 : vector<256x64xf32>
    %c0_66 = arith.constant 0 : index
    %c2 = arith.constant 2 : index
    %c0_67 = arith.constant 0 : index
    %46 = vector.load %arg11[%c0_66, %c2, %c0_67] : memref<18x18x64xf32, #tpu.memory_space<vmem>>, vector<16x16x64xf32>
    %47 = vector.shape_cast %46 : vector<16x16x64xf32> to vector<256x64xf32>
    %48 = arith.truncf %47 : vector<256x64xf32> to vector<256x64xbf16>
    %c128 = arith.constant 128 : index
    %c0_68 = arith.constant 0 : index
    %49 = vector.load %arg4[%c128, %c0_68] : memref<576x64xbf16, #tpu.memory_space<vmem>>, vector<64x64xbf16>
    %cst_69 = arith.constant dense<0.000000e+00> : vector<256x64xf32>
    %50 = tpu.matmul %48, %49, %cst_69 {dimension_numbers = #tpu.dot_dimension_numbers<[1], [0], [0], [1], [0, 0, 1, 1], [], []>} : vector<256x64xbf16>, vector<64x64xbf16>, vector<256x64xf32> -> vector<256x64xf32>
    %51 = arith.addf %45, %50 : vector<256x64xf32>
    %c1_70 = arith.constant 1 : index
    %c0_71 = arith.constant 0 : index
    %c0_72 = arith.constant 0 : index
    %52 = vector.load %arg11[%c1_70, %c0_71, %c0_72] : memref<18x18x64xf32, #tpu.memory_space<vmem>>, vector<16x16x64xf32>
    %53 = vector.shape_cast %52 : vector<16x16x64xf32> to vector<256x64xf32>
    %54 = arith.truncf %53 : vector<256x64xf32> to vector<256x64xbf16>
    %c192 = arith.constant 192 : index
    %c0_73 = arith.constant 0 : index
    %55 = vector.load %arg4[%c192, %c0_73] : memref<576x64xbf16, #tpu.memory_space<vmem>>, vector<64x64xbf16>
    %cst_74 = arith.constant dense<0.000000e+00> : vector<256x64xf32>
    %56 = tpu.matmul %54, %55, %cst_74 {dimension_numbers = #tpu.dot_dimension_numbers<[1], [0], [0], [1], [0, 0, 1, 1], [], []>} : vector<256x64xbf16>, vector<64x64xbf16>, vector<256x64xf32> -> vector<256x64xf32>
    %57 = arith.addf %51, %56 : vector<256x64xf32>
    %c1_75 = arith.constant 1 : index
    %c1_76 = arith.constant 1 : index
    %c0_77 = arith.constant 0 : index
    %58 = vector.load %arg11[%c1_75, %c1_76, %c0_77] : memref<18x18x64xf32, #tpu.memory_space<vmem>>, vector<16x16x64xf32>
    %59 = vector.shape_cast %58 : vector<16x16x64xf32> to vector<256x64xf32>
    %60 = arith.truncf %59 : vector<256x64xf32> to vector<256x64xbf16>
    %c256 = arith.constant 256 : index
    %c0_78 = arith.constant 0 : index
    %61 = vector.load %arg4[%c256, %c0_78] : memref<576x64xbf16, #tpu.memory_space<vmem>>, vector<64x64xbf16>
    %cst_79 = arith.constant dense<0.000000e+00> : vector<256x64xf32>
    %62 = tpu.matmul %60, %61, %cst_79 {dimension_numbers = #tpu.dot_dimension_numbers<[1], [0], [0], [1], [0, 0, 1, 1], [], []>} : vector<256x64xbf16>, vector<64x64xbf16>, vector<256x64xf32> -> vector<256x64xf32>
    %63 = arith.addf %57, %62 : vector<256x64xf32>
    %c1_80 = arith.constant 1 : index
    %c2_81 = arith.constant 2 : index
    %c0_82 = arith.constant 0 : index
    %64 = vector.load %arg11[%c1_80, %c2_81, %c0_82] : memref<18x18x64xf32, #tpu.memory_space<vmem>>, vector<16x16x64xf32>
    %65 = vector.shape_cast %64 : vector<16x16x64xf32> to vector<256x64xf32>
    %66 = arith.truncf %65 : vector<256x64xf32> to vector<256x64xbf16>
    %c320 = arith.constant 320 : index
    %c0_83 = arith.constant 0 : index
    %67 = vector.load %arg4[%c320, %c0_83] : memref<576x64xbf16, #tpu.memory_space<vmem>>, vector<64x64xbf16>
    %cst_84 = arith.constant dense<0.000000e+00> : vector<256x64xf32>
    %68 = tpu.matmul %66, %67, %cst_84 {dimension_numbers = #tpu.dot_dimension_numbers<[1], [0], [0], [1], [0, 0, 1, 1], [], []>} : vector<256x64xbf16>, vector<64x64xbf16>, vector<256x64xf32> -> vector<256x64xf32>
    %69 = arith.addf %63, %68 : vector<256x64xf32>
    %c2_85 = arith.constant 2 : index
    %c0_86 = arith.constant 0 : index
    %c0_87 = arith.constant 0 : index
    %70 = vector.load %arg11[%c2_85, %c0_86, %c0_87] : memref<18x18x64xf32, #tpu.memory_space<vmem>>, vector<16x16x64xf32>
    %71 = vector.shape_cast %70 : vector<16x16x64xf32> to vector<256x64xf32>
    %72 = arith.truncf %71 : vector<256x64xf32> to vector<256x64xbf16>
    %c384 = arith.constant 384 : index
    %c0_88 = arith.constant 0 : index
    %73 = vector.load %arg4[%c384, %c0_88] : memref<576x64xbf16, #tpu.memory_space<vmem>>, vector<64x64xbf16>
    %cst_89 = arith.constant dense<0.000000e+00> : vector<256x64xf32>
    %74 = tpu.matmul %72, %73, %cst_89 {dimension_numbers = #tpu.dot_dimension_numbers<[1], [0], [0], [1], [0, 0, 1, 1], [], []>} : vector<256x64xbf16>, vector<64x64xbf16>, vector<256x64xf32> -> vector<256x64xf32>
    %75 = arith.addf %69, %74 : vector<256x64xf32>
    %c2_90 = arith.constant 2 : index
    %c1_91 = arith.constant 1 : index
    %c0_92 = arith.constant 0 : index
    %76 = vector.load %arg11[%c2_90, %c1_91, %c0_92] : memref<18x18x64xf32, #tpu.memory_space<vmem>>, vector<16x16x64xf32>
    %77 = vector.shape_cast %76 : vector<16x16x64xf32> to vector<256x64xf32>
    %78 = arith.truncf %77 : vector<256x64xf32> to vector<256x64xbf16>
    %c448 = arith.constant 448 : index
    %c0_93 = arith.constant 0 : index
    %79 = vector.load %arg4[%c448, %c0_93] : memref<576x64xbf16, #tpu.memory_space<vmem>>, vector<64x64xbf16>
    %cst_94 = arith.constant dense<0.000000e+00> : vector<256x64xf32>
    %80 = tpu.matmul %78, %79, %cst_94 {dimension_numbers = #tpu.dot_dimension_numbers<[1], [0], [0], [1], [0, 0, 1, 1], [], []>} : vector<256x64xbf16>, vector<64x64xbf16>, vector<256x64xf32> -> vector<256x64xf32>
    %81 = arith.addf %75, %80 : vector<256x64xf32>
    %c2_95 = arith.constant 2 : index
    %c2_96 = arith.constant 2 : index
    %c0_97 = arith.constant 0 : index
    %82 = vector.load %arg11[%c2_95, %c2_96, %c0_97] : memref<18x18x64xf32, #tpu.memory_space<vmem>>, vector<16x16x64xf32>
    %83 = vector.shape_cast %82 : vector<16x16x64xf32> to vector<256x64xf32>
    %84 = arith.truncf %83 : vector<256x64xf32> to vector<256x64xbf16>
    %c512 = arith.constant 512 : index
    %c0_98 = arith.constant 0 : index
    %85 = vector.load %arg4[%c512, %c0_98] : memref<576x64xbf16, #tpu.memory_space<vmem>>, vector<64x64xbf16>
    %cst_99 = arith.constant dense<0.000000e+00> : vector<256x64xf32>
    %86 = tpu.matmul %84, %85, %cst_99 {dimension_numbers = #tpu.dot_dimension_numbers<[1], [0], [0], [1], [0, 0, 1, 1], [], []>} : vector<256x64xbf16>, vector<64x64xbf16>, vector<256x64xf32> -> vector<256x64xf32>
    %87 = arith.addf %81, %86 : vector<256x64xf32>
    %c0_100 = arith.constant 0 : index
    %c0_101 = arith.constant 0 : index
    %88 = vector.load %arg5[%c0_100, %c0_101] : memref<1x64xf32, #tpu.memory_space<vmem>>, vector<1x64xf32>
    %89 = vector.broadcast %88 : vector<1x64xf32> to vector<256x64xf32>
    %90 = arith.addf %87, %89 : vector<256x64xf32>
    %cst_102 = arith.constant 0.000000e+00 : f32
    %91 = vector.broadcast %cst_102 : f32 to vector<256x64xf32>
    %92 = arith.maximumf %90, %91 : vector<256x64xf32>
    %93 = vector.shape_cast %92 : vector<256x64xf32> to vector<8x2x16x64xf32>
    %94 = vector.extract_strided_slice %93 {offsets = [0, 0, 0, 0], sizes = [8, 1, 16, 64], strides = [1, 1, 1, 1]} : vector<8x2x16x64xf32> to vector<8x1x16x64xf32>
    %95 = vector.shape_cast %94 : vector<8x1x16x64xf32> to vector<8x16x64xf32>
    %96 = vector.extract_strided_slice %93 {offsets = [0, 1, 0, 0], sizes = [8, 1, 16, 64], strides = [1, 1, 1, 1]} : vector<8x2x16x64xf32> to vector<8x1x16x64xf32>
    %97 = vector.shape_cast %96 : vector<8x1x16x64xf32> to vector<8x16x64xf32>
    %98 = arith.maximumf %95, %97 : vector<8x16x64xf32>
    %c0_103 = arith.constant 0 : index
    %c0_104 = arith.constant 0 : index
    %c0_105 = arith.constant 0 : index
    %99 = vector.load %arg12[%c0_103, %c0_104, %c0_105] : memref<8x16x64xf32, #tpu.memory_space<vmem>>, vector<8x16x64xf32>
    tpu.vector_store %arg12[%c0_103, %c0_104, %c0_105], %98 {strides = array<i32>} : memref<8x16x64xf32, #tpu.memory_space<vmem>>, vector<8x16x64xf32>,
    %c0_106 = arith.constant 0 : index
    %c0_107 = arith.constant 0 : index
    %c0_108 = arith.constant 0 : index
    %100 = tpu.strided_load %arg12[%c0_106, %c0_107, %c0_108] {strides = array<i32: 1, 2, 1>} : memref<8x16x64xf32, #tpu.memory_space<vmem>>, vector<8x8x64xf32>
    %c0_109 = arith.constant 0 : index
    %c1_110 = arith.constant 1 : index
    %c0_111 = arith.constant 0 : index
    %101 = tpu.strided_load %arg12[%c0_109, %c1_110, %c0_111] {strides = array<i32: 1, 2, 1>} : memref<8x16x64xf32, #tpu.memory_space<vmem>>, vector<8x8x64xf32>
    %102 = arith.maximumf %100, %101 : vector<8x8x64xf32>
    %c1_112 = arith.constant 1 : index
    %c1_113 = arith.constant 1 : index
    %c0_114 = arith.constant 0 : index
    %103 = vector.load %arg13[%c1_112, %c1_113, %c0_114] : memref<10x10x64xf32, #tpu.memory_space<vmem>>, vector<8x8x64xf32>
    tpu.vector_store %arg13[%c1_112, %c1_113, %c0_114], %102 {strides = array<i32>} : memref<10x10x64xf32, #tpu.memory_space<vmem>>, vector<8x8x64xf32>,
    %c0_115 = arith.constant 0 : index
    %c0_116 = arith.constant 0 : index
    %c0_117 = arith.constant 0 : index
    %104 = vector.load %arg13[%c0_115, %c0_116, %c0_117] : memref<10x10x64xf32, #tpu.memory_space<vmem>>, vector<8x8x64xf32>
    %105 = vector.shape_cast %104 : vector<8x8x64xf32> to vector<64x64xf32>
    %106 = arith.truncf %105 : vector<64x64xf32> to vector<64x64xbf16>
    %c0_118 = arith.constant 0 : index
    %c0_119 = arith.constant 0 : index
    %107 = vector.load %arg6[%c0_118, %c0_119] : memref<576x64xbf16, #tpu.memory_space<vmem>>, vector<64x64xbf16>
    %cst_120 = arith.constant dense<0.000000e+00> : vector<64x64xf32>
    %108 = tpu.matmul %106, %107, %cst_120 {dimension_numbers = #tpu.dot_dimension_numbers<[1], [0], [0], [1], [0, 0, 1, 1], [], []>} : vector<64x64xbf16>, vector<64x64xbf16>, vector<64x64xf32> -> vector<64x64xf32>
    %c0_121 = arith.constant 0 : index
    %c1_122 = arith.constant 1 : index
    %c0_123 = arith.constant 0 : index
    %109 = vector.load %arg13[%c0_121, %c1_122, %c0_123] : memref<10x10x64xf32, #tpu.memory_space<vmem>>, vector<8x8x64xf32>
    %110 = vector.shape_cast %109 : vector<8x8x64xf32> to vector<64x64xf32>
    %111 = arith.truncf %110 : vector<64x64xf32> to vector<64x64xbf16>
    %c64_124 = arith.constant 64 : index
    %c0_125 = arith.constant 0 : index
    %112 = vector.load %arg6[%c64_124, %c0_125] : memref<576x64xbf16, #tpu.memory_space<vmem>>, vector<64x64xbf16>
    %cst_126 = arith.constant dense<0.000000e+00> : vector<64x64xf32>
    %113 = tpu.matmul %111, %112, %cst_126 {dimension_numbers = #tpu.dot_dimension_numbers<[1], [0], [0], [1], [0, 0, 1, 1], [], []>} : vector<64x64xbf16>, vector<64x64xbf16>, vector<64x64xf32> -> vector<64x64xf32>
    %114 = arith.addf %108, %113 : vector<64x64xf32>
    %c0_127 = arith.constant 0 : index
    %c2_128 = arith.constant 2 : index
    %c0_129 = arith.constant 0 : index
    %115 = vector.load %arg13[%c0_127, %c2_128, %c0_129] : memref<10x10x64xf32, #tpu.memory_space<vmem>>, vector<8x8x64xf32>
    %116 = vector.shape_cast %115 : vector<8x8x64xf32> to vector<64x64xf32>
    %117 = arith.truncf %116 : vector<64x64xf32> to vector<64x64xbf16>
    %c128_130 = arith.constant 128 : index
    %c0_131 = arith.constant 0 : index
    %118 = vector.load %arg6[%c128_130, %c0_131] : memref<576x64xbf16, #tpu.memory_space<vmem>>, vector<64x64xbf16>
    %cst_132 = arith.constant dense<0.000000e+00> : vector<64x64xf32>
    %119 = tpu.matmul %117, %118, %cst_132 {dimension_numbers = #tpu.dot_dimension_numbers<[1], [0], [0], [1], [0, 0, 1, 1], [], []>} : vector<64x64xbf16>, vector<64x64xbf16>, vector<64x64xf32> -> vector<64x64xf32>
    %120 = arith.addf %114, %119 : vector<64x64xf32>
    %c1_133 = arith.constant 1 : index
    %c0_134 = arith.constant 0 : index
    %c0_135 = arith.constant 0 : index
    %121 = vector.load %arg13[%c1_133, %c0_134, %c0_135] : memref<10x10x64xf32, #tpu.memory_space<vmem>>, vector<8x8x64xf32>
    %122 = vector.shape_cast %121 : vector<8x8x64xf32> to vector<64x64xf32>
    %123 = arith.truncf %122 : vector<64x64xf32> to vector<64x64xbf16>
    %c192_136 = arith.constant 192 : index
    %c0_137 = arith.constant 0 : index
    %124 = vector.load %arg6[%c192_136, %c0_137] : memref<576x64xbf16, #tpu.memory_space<vmem>>, vector<64x64xbf16>
    %cst_138 = arith.constant dense<0.000000e+00> : vector<64x64xf32>
    %125 = tpu.matmul %123, %124, %cst_138 {dimension_numbers = #tpu.dot_dimension_numbers<[1], [0], [0], [1], [0, 0, 1, 1], [], []>} : vector<64x64xbf16>, vector<64x64xbf16>, vector<64x64xf32> -> vector<64x64xf32>
    %126 = arith.addf %120, %125 : vector<64x64xf32>
    %c1_139 = arith.constant 1 : index
    %c1_140 = arith.constant 1 : index
    %c0_141 = arith.constant 0 : index
    %127 = vector.load %arg13[%c1_139, %c1_140, %c0_141] : memref<10x10x64xf32, #tpu.memory_space<vmem>>, vector<8x8x64xf32>
    %128 = vector.shape_cast %127 : vector<8x8x64xf32> to vector<64x64xf32>
    %129 = arith.truncf %128 : vector<64x64xf32> to vector<64x64xbf16>
    %c256_142 = arith.constant 256 : index
    %c0_143 = arith.constant 0 : index
    %130 = vector.load %arg6[%c256_142, %c0_143] : memref<576x64xbf16, #tpu.memory_space<vmem>>, vector<64x64xbf16>
    %cst_144 = arith.constant dense<0.000000e+00> : vector<64x64xf32>
    %131 = tpu.matmul %129, %130, %cst_144 {dimension_numbers = #tpu.dot_dimension_numbers<[1], [0], [0], [1], [0, 0, 1, 1], [], []>} : vector<64x64xbf16>, vector<64x64xbf16>, vector<64x64xf32> -> vector<64x64xf32>
    %132 = arith.addf %126, %131 : vector<64x64xf32>
    %c1_145 = arith.constant 1 : index
    %c2_146 = arith.constant 2 : index
    %c0_147 = arith.constant 0 : index
    %133 = vector.load %arg13[%c1_145, %c2_146, %c0_147] : memref<10x10x64xf32, #tpu.memory_space<vmem>>, vector<8x8x64xf32>
    %134 = vector.shape_cast %133 : vector<8x8x64xf32> to vector<64x64xf32>
    %135 = arith.truncf %134 : vector<64x64xf32> to vector<64x64xbf16>
    %c320_148 = arith.constant 320 : index
    %c0_149 = arith.constant 0 : index
    %136 = vector.load %arg6[%c320_148, %c0_149] : memref<576x64xbf16, #tpu.memory_space<vmem>>, vector<64x64xbf16>
    %cst_150 = arith.constant dense<0.000000e+00> : vector<64x64xf32>
    %137 = tpu.matmul %135, %136, %cst_150 {dimension_numbers = #tpu.dot_dimension_numbers<[1], [0], [0], [1], [0, 0, 1, 1], [], []>} : vector<64x64xbf16>, vector<64x64xbf16>, vector<64x64xf32> -> vector<64x64xf32>
    %138 = arith.addf %132, %137 : vector<64x64xf32>
    %c2_151 = arith.constant 2 : index
    %c0_152 = arith.constant 0 : index
    %c0_153 = arith.constant 0 : index
    %139 = vector.load %arg13[%c2_151, %c0_152, %c0_153] : memref<10x10x64xf32, #tpu.memory_space<vmem>>, vector<8x8x64xf32>
    %140 = vector.shape_cast %139 : vector<8x8x64xf32> to vector<64x64xf32>
    %141 = arith.truncf %140 : vector<64x64xf32> to vector<64x64xbf16>
    %c384_154 = arith.constant 384 : index
    %c0_155 = arith.constant 0 : index
    %142 = vector.load %arg6[%c384_154, %c0_155] : memref<576x64xbf16, #tpu.memory_space<vmem>>, vector<64x64xbf16>
    %cst_156 = arith.constant dense<0.000000e+00> : vector<64x64xf32>
    %143 = tpu.matmul %141, %142, %cst_156 {dimension_numbers = #tpu.dot_dimension_numbers<[1], [0], [0], [1], [0, 0, 1, 1], [], []>} : vector<64x64xbf16>, vector<64x64xbf16>, vector<64x64xf32> -> vector<64x64xf32>
    %144 = arith.addf %138, %143 : vector<64x64xf32>
    %c2_157 = arith.constant 2 : index
    %c1_158 = arith.constant 1 : index
    %c0_159 = arith.constant 0 : index
    %145 = vector.load %arg13[%c2_157, %c1_158, %c0_159] : memref<10x10x64xf32, #tpu.memory_space<vmem>>, vector<8x8x64xf32>
    %146 = vector.shape_cast %145 : vector<8x8x64xf32> to vector<64x64xf32>
    %147 = arith.truncf %146 : vector<64x64xf32> to vector<64x64xbf16>
    %c448_160 = arith.constant 448 : index
    %c0_161 = arith.constant 0 : index
    %148 = vector.load %arg6[%c448_160, %c0_161] : memref<576x64xbf16, #tpu.memory_space<vmem>>, vector<64x64xbf16>
    %cst_162 = arith.constant dense<0.000000e+00> : vector<64x64xf32>
    %149 = tpu.matmul %147, %148, %cst_162 {dimension_numbers = #tpu.dot_dimension_numbers<[1], [0], [0], [1], [0, 0, 1, 1], [], []>} : vector<64x64xbf16>, vector<64x64xbf16>, vector<64x64xf32> -> vector<64x64xf32>
    %150 = arith.addf %144, %149 : vector<64x64xf32>
    %c2_163 = arith.constant 2 : index
    %c2_164 = arith.constant 2 : index
    %c0_165 = arith.constant 0 : index
    %151 = vector.load %arg13[%c2_163, %c2_164, %c0_165] : memref<10x10x64xf32, #tpu.memory_space<vmem>>, vector<8x8x64xf32>
    %152 = vector.shape_cast %151 : vector<8x8x64xf32> to vector<64x64xf32>
    %153 = arith.truncf %152 : vector<64x64xf32> to vector<64x64xbf16>
    %c512_166 = arith.constant 512 : index
    %c0_167 = arith.constant 0 : index
    %154 = vector.load %arg6[%c512_166, %c0_167] : memref<576x64xbf16, #tpu.memory_space<vmem>>, vector<64x64xbf16>
    %cst_168 = arith.constant dense<0.000000e+00> : vector<64x64xf32>
    %155 = tpu.matmul %153, %154, %cst_168 {dimension_numbers = #tpu.dot_dimension_numbers<[1], [0], [0], [1], [0, 0, 1, 1], [], []>} : vector<64x64xbf16>, vector<64x64xbf16>, vector<64x64xf32> -> vector<64x64xf32>
    %156 = arith.addf %150, %155 : vector<64x64xf32>
    %c0_169 = arith.constant 0 : index
    %c0_170 = arith.constant 0 : index
    %157 = vector.load %arg7[%c0_169, %c0_170] : memref<1x64xf32, #tpu.memory_space<vmem>>, vector<1x64xf32>
    %158 = vector.broadcast %157 : vector<1x64xf32> to vector<64x64xf32>
    %159 = arith.addf %156, %158 : vector<64x64xf32>
    %cst_171 = arith.constant 0.000000e+00 : f32
    %160 = vector.broadcast %cst_171 : f32 to vector<64x64xf32>
    %161 = arith.maximumf %159, %160 : vector<64x64xf32>
    %162 = vector.shape_cast %161 : vector<64x64xf32> to vector<8x8x64xf32>
    %c1_172 = arith.constant 1 : index
    %c1_173 = arith.constant 1 : index
    %c0_174 = arith.constant 0 : index
    %163 = vector.load %arg14[%c1_172, %c1_173, %c0_174] : memref<10x10x64xf32, #tpu.memory_space<vmem>>, vector<8x8x64xf32>
    tpu.vector_store %arg14[%c1_172, %c1_173, %c0_174], %162 {strides = array<i32>} : memref<10x10x64xf32, #tpu.memory_space<vmem>>, vector<8x8x64xf32>,
    %c0_175 = arith.constant 0 : index
    %c0_176 = arith.constant 0 : index
    %c0_177 = arith.constant 0 : index
    %164 = vector.load %arg14[%c0_175, %c0_176, %c0_177] : memref<10x10x64xf32, #tpu.memory_space<vmem>>, vector<8x8x64xf32>
    %165 = vector.shape_cast %164 : vector<8x8x64xf32> to vector<64x64xf32>
    %166 = arith.truncf %165 : vector<64x64xf32> to vector<64x64xbf16>
    %c0_178 = arith.constant 0 : index
    %c0_179 = arith.constant 0 : index
    %167 = vector.load %arg8[%c0_178, %c0_179] : memref<576x64xbf16, #tpu.memory_space<vmem>>, vector<64x64xbf16>
    %cst_180 = arith.constant dense<0.000000e+00> : vector<64x64xf32>
    %168 = tpu.matmul %166, %167, %cst_180 {dimension_numbers = #tpu.dot_dimension_numbers<[1], [0], [0], [1], [0, 0, 1, 1], [], []>} : vector<64x64xbf16>, vector<64x64xbf16>, vector<64x64xf32> -> vector<64x64xf32>
    %c0_181 = arith.constant 0 : index
    %c1_182 = arith.constant 1 : index
    %c0_183 = arith.constant 0 : index
    %169 = vector.load %arg14[%c0_181, %c1_182, %c0_183] : memref<10x10x64xf32, #tpu.memory_space<vmem>>, vector<8x8x64xf32>
    %170 = vector.shape_cast %169 : vector<8x8x64xf32> to vector<64x64xf32>
    %171 = arith.truncf %170 : vector<64x64xf32> to vector<64x64xbf16>
    %c64_184 = arith.constant 64 : index
    %c0_185 = arith.constant 0 : index
    %172 = vector.load %arg8[%c64_184, %c0_185] : memref<576x64xbf16, #tpu.memory_space<vmem>>, vector<64x64xbf16>
    %cst_186 = arith.constant dense<0.000000e+00> : vector<64x64xf32>
    %173 = tpu.matmul %171, %172, %cst_186 {dimension_numbers = #tpu.dot_dimension_numbers<[1], [0], [0], [1], [0, 0, 1, 1], [], []>} : vector<64x64xbf16>, vector<64x64xbf16>, vector<64x64xf32> -> vector<64x64xf32>
    %174 = arith.addf %168, %173 : vector<64x64xf32>
    %c0_187 = arith.constant 0 : index
    %c2_188 = arith.constant 2 : index
    %c0_189 = arith.constant 0 : index
    %175 = vector.load %arg14[%c0_187, %c2_188, %c0_189] : memref<10x10x64xf32, #tpu.memory_space<vmem>>, vector<8x8x64xf32>
    %176 = vector.shape_cast %175 : vector<8x8x64xf32> to vector<64x64xf32>
    %177 = arith.truncf %176 : vector<64x64xf32> to vector<64x64xbf16>
    %c128_190 = arith.constant 128 : index
    %c0_191 = arith.constant 0 : index
    %178 = vector.load %arg8[%c128_190, %c0_191] : memref<576x64xbf16, #tpu.memory_space<vmem>>, vector<64x64xbf16>
    %cst_192 = arith.constant dense<0.000000e+00> : vector<64x64xf32>
    %179 = tpu.matmul %177, %178, %cst_192 {dimension_numbers = #tpu.dot_dimension_numbers<[1], [0], [0], [1], [0, 0, 1, 1], [], []>} : vector<64x64xbf16>, vector<64x64xbf16>, vector<64x64xf32> -> vector<64x64xf32>
    %180 = arith.addf %174, %179 : vector<64x64xf32>
    %c1_193 = arith.constant 1 : index
    %c0_194 = arith.constant 0 : index
    %c0_195 = arith.constant 0 : index
    %181 = vector.load %arg14[%c1_193, %c0_194, %c0_195] : memref<10x10x64xf32, #tpu.memory_space<vmem>>, vector<8x8x64xf32>
    %182 = vector.shape_cast %181 : vector<8x8x64xf32> to vector<64x64xf32>
    %183 = arith.truncf %182 : vector<64x64xf32> to vector<64x64xbf16>
    %c192_196 = arith.constant 192 : index
    %c0_197 = arith.constant 0 : index
    %184 = vector.load %arg8[%c192_196, %c0_197] : memref<576x64xbf16, #tpu.memory_space<vmem>>, vector<64x64xbf16>
    %cst_198 = arith.constant dense<0.000000e+00> : vector<64x64xf32>
    %185 = tpu.matmul %183, %184, %cst_198 {dimension_numbers = #tpu.dot_dimension_numbers<[1], [0], [0], [1], [0, 0, 1, 1], [], []>} : vector<64x64xbf16>, vector<64x64xbf16>, vector<64x64xf32> -> vector<64x64xf32>
    %186 = arith.addf %180, %185 : vector<64x64xf32>
    %c1_199 = arith.constant 1 : index
    %c1_200 = arith.constant 1 : index
    %c0_201 = arith.constant 0 : index
    %187 = vector.load %arg14[%c1_199, %c1_200, %c0_201] : memref<10x10x64xf32, #tpu.memory_space<vmem>>, vector<8x8x64xf32>
    %188 = vector.shape_cast %187 : vector<8x8x64xf32> to vector<64x64xf32>
    %189 = arith.truncf %188 : vector<64x64xf32> to vector<64x64xbf16>
    %c256_202 = arith.constant 256 : index
    %c0_203 = arith.constant 0 : index
    %190 = vector.load %arg8[%c256_202, %c0_203] : memref<576x64xbf16, #tpu.memory_space<vmem>>, vector<64x64xbf16>
    %cst_204 = arith.constant dense<0.000000e+00> : vector<64x64xf32>
    %191 = tpu.matmul %189, %190, %cst_204 {dimension_numbers = #tpu.dot_dimension_numbers<[1], [0], [0], [1], [0, 0, 1, 1], [], []>} : vector<64x64xbf16>, vector<64x64xbf16>, vector<64x64xf32> -> vector<64x64xf32>
    %192 = arith.addf %186, %191 : vector<64x64xf32>
    %c1_205 = arith.constant 1 : index
    %c2_206 = arith.constant 2 : index
    %c0_207 = arith.constant 0 : index
    %193 = vector.load %arg14[%c1_205, %c2_206, %c0_207] : memref<10x10x64xf32, #tpu.memory_space<vmem>>, vector<8x8x64xf32>
    %194 = vector.shape_cast %193 : vector<8x8x64xf32> to vector<64x64xf32>
    %195 = arith.truncf %194 : vector<64x64xf32> to vector<64x64xbf16>
    %c320_208 = arith.constant 320 : index
    %c0_209 = arith.constant 0 : index
    %196 = vector.load %arg8[%c320_208, %c0_209] : memref<576x64xbf16, #tpu.memory_space<vmem>>, vector<64x64xbf16>
    %cst_210 = arith.constant dense<0.000000e+00> : vector<64x64xf32>
    %197 = tpu.matmul %195, %196, %cst_210 {dimension_numbers = #tpu.dot_dimension_numbers<[1], [0], [0], [1], [0, 0, 1, 1], [], []>} : vector<64x64xbf16>, vector<64x64xbf16>, vector<64x64xf32> -> vector<64x64xf32>
    %198 = arith.addf %192, %197 : vector<64x64xf32>
    %c2_211 = arith.constant 2 : index
    %c0_212 = arith.constant 0 : index
    %c0_213 = arith.constant 0 : index
    %199 = vector.load %arg14[%c2_211, %c0_212, %c0_213] : memref<10x10x64xf32, #tpu.memory_space<vmem>>, vector<8x8x64xf32>
    %200 = vector.shape_cast %199 : vector<8x8x64xf32> to vector<64x64xf32>
    %201 = arith.truncf %200 : vector<64x64xf32> to vector<64x64xbf16>
    %c384_214 = arith.constant 384 : index
    %c0_215 = arith.constant 0 : index
    %202 = vector.load %arg8[%c384_214, %c0_215] : memref<576x64xbf16, #tpu.memory_space<vmem>>, vector<64x64xbf16>
    %cst_216 = arith.constant dense<0.000000e+00> : vector<64x64xf32>
    %203 = tpu.matmul %201, %202, %cst_216 {dimension_numbers = #tpu.dot_dimension_numbers<[1], [0], [0], [1], [0, 0, 1, 1], [], []>} : vector<64x64xbf16>, vector<64x64xbf16>, vector<64x64xf32> -> vector<64x64xf32>
    %204 = arith.addf %198, %203 : vector<64x64xf32>
    %c2_217 = arith.constant 2 : index
    %c1_218 = arith.constant 1 : index
    %c0_219 = arith.constant 0 : index
    %205 = vector.load %arg14[%c2_217, %c1_218, %c0_219] : memref<10x10x64xf32, #tpu.memory_space<vmem>>, vector<8x8x64xf32>
    %206 = vector.shape_cast %205 : vector<8x8x64xf32> to vector<64x64xf32>
    %207 = arith.truncf %206 : vector<64x64xf32> to vector<64x64xbf16>
    %c448_220 = arith.constant 448 : index
    %c0_221 = arith.constant 0 : index
    %208 = vector.load %arg8[%c448_220, %c0_221] : memref<576x64xbf16, #tpu.memory_space<vmem>>, vector<64x64xbf16>
    %cst_222 = arith.constant dense<0.000000e+00> : vector<64x64xf32>
    %209 = tpu.matmul %207, %208, %cst_222 {dimension_numbers = #tpu.dot_dimension_numbers<[1], [0], [0], [1], [0, 0, 1, 1], [], []>} : vector<64x64xbf16>, vector<64x64xbf16>, vector<64x64xf32> -> vector<64x64xf32>
    %210 = arith.addf %204, %209 : vector<64x64xf32>
    %c2_223 = arith.constant 2 : index
    %c2_224 = arith.constant 2 : index
    %c0_225 = arith.constant 0 : index
    %211 = vector.load %arg14[%c2_223, %c2_224, %c0_225] : memref<10x10x64xf32, #tpu.memory_space<vmem>>, vector<8x8x64xf32>
    %212 = vector.shape_cast %211 : vector<8x8x64xf32> to vector<64x64xf32>
    %213 = arith.truncf %212 : vector<64x64xf32> to vector<64x64xbf16>
    %c512_226 = arith.constant 512 : index
    %c0_227 = arith.constant 0 : index
    %214 = vector.load %arg8[%c512_226, %c0_227] : memref<576x64xbf16, #tpu.memory_space<vmem>>, vector<64x64xbf16>
    %cst_228 = arith.constant dense<0.000000e+00> : vector<64x64xf32>
    %215 = tpu.matmul %213, %214, %cst_228 {dimension_numbers = #tpu.dot_dimension_numbers<[1], [0], [0], [1], [0, 0, 1, 1], [], []>} : vector<64x64xbf16>, vector<64x64xbf16>, vector<64x64xf32> -> vector<64x64xf32>
    %216 = arith.addf %210, %215 : vector<64x64xf32>
    %c0_229 = arith.constant 0 : index
    %c0_230 = arith.constant 0 : index
    %217 = vector.load %arg9[%c0_229, %c0_230] : memref<1x64xf32, #tpu.memory_space<vmem>>, vector<1x64xf32>
    %218 = vector.broadcast %217 : vector<1x64xf32> to vector<64x64xf32>
    %219 = arith.addf %216, %218 : vector<64x64xf32>
    %cst_231 = arith.constant 0.000000e+00 : f32
    %220 = vector.broadcast %cst_231 : f32 to vector<64x64xf32>
    %221 = arith.maximumf %219, %220 : vector<64x64xf32>
    %222 = vector.shape_cast %221 : vector<64x64xf32> to vector<8x8x64xf32>
    %223 = tpu.concatenate %222, %222 in 2 : vector<8x8x64xf32>, vector<8x8x64xf32> -> vector<8x8x128xf32>
    %c0_232 = arith.constant 0 : index
    %c0_233 = arith.constant 0 : index
    %c0_234 = arith.constant 0 : index
    %c0_235 = arith.constant 0 : index
    %c0_236 = arith.constant 0 : index
    %224 = vector.load %arg10[%c0_232, %c0_233, %c0_234, %c0_235, %c0_236] : memref<1x8x2x8x128xf32, #tpu.memory_space<vmem>>, vector<1x8x1x8x128xf32>
    %225 = vector.shape_cast %224 : vector<1x8x1x8x128xf32> to vector<8x8x128xf32>
    %226 = vector.shape_cast %223 : vector<8x8x128xf32> to vector<1x8x1x8x128xf32>
    tpu.vector_store %arg10[%c0_232, %c0_233, %c0_234, %c0_235, %c0_236], %226 {strides = array<i32>} : memref<1x8x2x8x128xf32, #tpu.memory_space<vmem>>, vector<1x8x1x8x128xf32>,
    %c0_237 = arith.constant 0 : index
    %c0_238 = arith.constant 0 : index
    %c1_239 = arith.constant 1 : index
    %c0_240 = arith.constant 0 : index
    %c0_241 = arith.constant 0 : index
    %227 = vector.load %arg10[%c0_237, %c0_238, %c1_239, %c0_240, %c0_241] : memref<1x8x2x8x128xf32, #tpu.memory_space<vmem>>, vector<1x8x1x8x128xf32>
    %228 = vector.shape_cast %227 : vector<1x8x1x8x128xf32> to vector<8x8x128xf32>
    %229 = vector.shape_cast %223 : vector<8x8x128xf32> to vector<1x8x1x8x128xf32>
    tpu.vector_store %arg10[%c0_237, %c0_238, %c1_239, %c0_240, %c0_241], %229 {strides = array<i32>} : memref<1x8x2x8x128xf32, #tpu.memory_space<vmem>>, vector<1x8x1x8x128xf32>,
    return
  }
  func.func @transform_0(%arg0: i32) -> (i32, i32, i32) {
    %c0_i32 = arith.constant 0 : i32
    %c0_i32_0 = arith.constant 0 : i32
    %c0_i32_1 = arith.constant 0 : i32
    return %arg0, %c0_i32, %c0_i32_0 : i32, i32, i32
  }
  func.func @transform_1(%arg0: i32) -> (i32, i32) {
    %c0_i32 = arith.constant 0 : i32
    %c0_i32_0 = arith.constant 0 : i32
    %c0_i32_1 = arith.constant 0 : i32
    return %c0_i32, %c0_i32_0 : i32, i32
  }
  func.func @transform_2(%arg0: i32) -> (i32, i32) {
    %c0_i32 = arith.constant 0 : i32
    %c0_i32_0 = arith.constant 0 : i32
    %c0_i32_1 = arith.constant 0 : i32
    return %c0_i32, %c0_i32_0 : i32, i32
  }
  func.func @transform_3(%arg0: i32) -> (i32, i32) {
    %c0_i32 = arith.constant 0 : i32
    %c0_i32_0 = arith.constant 0 : i32
    %c0_i32_1 = arith.constant 0 : i32
    return %c0_i32, %c0_i32_0 : i32, i32
  }
  func.func @transform_4(%arg0: i32) -> (i32, i32) {
    %c0_i32 = arith.constant 0 : i32
    %c0_i32_0 = arith.constant 0 : i32
    %c0_i32_1 = arith.constant 0 : i32
    return %c0_i32, %c0_i32_0 : i32, i32
  }
  func.func @transform_5(%arg0: i32) -> (i32, i32) {
    %c0_i32 = arith.constant 0 : i32
    %c0_i32_0 = arith.constant 0 : i32
    %c0_i32_1 = arith.constant 0 : i32
    return %c0_i32, %c0_i32_0 : i32, i32
  }
  func.func @transform_6(%arg0: i32) -> (i32, i32) {
    %c0_i32 = arith.constant 0 : i32
    %c0_i32_0 = arith.constant 0 : i32
    %c0_i32_1 = arith.constant 0 : i32
    return %c0_i32, %c0_i32_0 : i32, i32
  }
  func.func @transform_7(%arg0: i32) -> (i32, i32) {
    %c0_i32 = arith.constant 0 : i32
    %c0_i32_0 = arith.constant 0 : i32
    %c0_i32_1 = arith.constant 0 : i32
    return %c0_i32, %c0_i32_0 : i32, i32
  }
  func.func @transform_8(%arg0: i32) -> (i32, i32) {
    %c0_i32 = arith.constant 0 : i32
    %c0_i32_0 = arith.constant 0 : i32
    %c0_i32_1 = arith.constant 0 : i32
    return %c0_i32, %c0_i32_0 : i32, i32
  }
  func.func @transform_9(%arg0: i32) -> (i32, i32, i32, i32, i32) {
    %c0_i32 = arith.constant 0 : i32
    %c0_i32_0 = arith.constant 0 : i32
    %c0_i32_1 = arith.constant 0 : i32
    %c0_i32_2 = arith.constant 0 : i32
    %c0_i32_3 = arith.constant 0 : i32
    return %arg0, %c0_i32, %c0_i32_0, %c0_i32_1, %c0_i32_2 : i32, i32, i32, i32, i32
  }
}

</mosaic_0001>

<llo_original>
// kernel: unet_forward.1
$region0: #{unet_forward.1}
  #allocation0 [shape = 'u32[]', space=smem, size = 0x4, offset = 0x4, fixed_abs, tag = 'smem constant byte address 0x4 - core index']
  #allocation1 [shape = 'u32[72,128]{1,0:T(1,128)}', space=vmem, size = 0x9000, scoped, tag = 'internal scratch']
  #allocation2 [shape = 'f32[18,18,64]{2,1,0:T(8,128)}', space=vmem, size = 0x36000, scoped, tag = 'scratch operand']
  #allocation3 [shape = 'f32[8,16,64]{2,1,0:T(8,128)}', space=vmem, size = 0x10000, scoped, tag = 'scratch operand']
  #allocation4 [shape = 'f32[10,10,64]{2,1,0:T(8,128)}', space=vmem, size = 0x14000, scoped, tag = 'scratch operand']
  #allocation5 [shape = 'f32[10,10,64]{2,1,0:T(8,128)}', space=vmem, size = 0x14000, scoped, tag = 'scratch operand']
  %s0 = inlined_call_operand.vmem [shape: bf16[2,256,32], index: 0, kind: input, shape index: {}]
  %s1 = inlined_call_operand.vmem [shape: bf16[32,64], index: 1, kind: input, shape index: {}]
  %s2 = inlined_call_operand.vmem [shape: f32[1,64], index: 2, kind: input, shape index: {}]
  %s3 = inlined_call_operand.vmem [shape: bf16[576,64], index: 3, kind: input, shape index: {}]
  %s4 = inlined_call_operand.vmem [shape: f32[1,64], index: 4, kind: input, shape index: {}]
  %s5 = inlined_call_operand.vmem [shape: bf16[576,64], index: 5, kind: input, shape index: {}]
  %s6 = inlined_call_operand.vmem [shape: f32[1,64], index: 6, kind: input, shape index: {}]
  %s7 = inlined_call_operand.vmem [shape: bf16[576,64], index: 7, kind: input, shape index: {}]
  %s8 = inlined_call_operand.vmem [shape: f32[1,64], index: 8, kind: input, shape index: {}]
  %s9 = inlined_call_operand.vmem [shape: f32[2,8,2,8,128], index: 9, kind: output, shape index: {}]
  %s10 = sld [smem:[#allocation0]]
  $region69: #{unet_forward.1} parent=0
    _
  %s12 = ssub.s32 1, %s10
  %s13 = scalar_select 0, %s12, %s10
  loop: start=0, step=1, limit=4
  $region2: #{unet_forward.1} parent=0 // loop_pre_header
    _
  $region3: #{unet_forward.1} parent=0 // loop_header
    %s15 = sphi 0, %s19
    %p16 = scmp.ge.s32.totalorder %s15, 4
    %s25 = sphi 0, %s27
    %s28 = sphi 0, %s25
    %s29 = sphi 0, %s28
    %s45 = sphi 0, %s29
    %s49 = sphi 0, %s49
    %s51 = sphi 0, %s49
    %s52 = sphi 0, %s51
    %s66 = sphi 0, %s52
    %s70 = sphi 0, %s70
    %s72 = sphi 0, %s70
    %s73 = sphi 0, %s72
    %s87 = sphi 0, %s73
    %s91 = sphi 0, %s91
    %s93 = sphi 0, %s91
    %s94 = sphi 0, %s93
    %s108 = sphi 0, %s94
    %s112 = sphi 0, %s112
    %s114 = sphi 0, %s112
    %s115 = sphi 0, %s114
    %s129 = sphi 0, %s115
    %s133 = sphi 0, %s133
    %s135 = sphi 0, %s133
    %s136 = sphi 0, %s135
    %s150 = sphi 0, %s136
    %s154 = sphi 0, %s154
    %s156 = sphi 0, %s154
    %s157 = sphi 0, %s156
    %s171 = sphi 0, %s157
    %s175 = sphi 0, %s175
    %s177 = sphi 0, %s175
    %s178 = sphi 0, %s177
    %s192 = sphi 0, %s178
    %s196 = sphi 0, %s196
    %s198 = sphi 0, %s196
    %s199 = sphi 0, %s198
    %s213 = sphi 0, %s199
    %s219 = sphi 0, %s221
    %s222 = sphi 0, %s219
    %s223 = sphi 0, %s222
    %s239 = sphi 0, %s223
  $region4: #{unet_forward.1} parent=0 // loop_header_branch
    %18 = sbr.rel (%p16) target = $region8
  $region5: #{unet_forward.1} parent=0 // loop_body
    %s20 = ssub.s32 %s15, 1
    %s21 = ssub.s32 %s15, 2
    %s22 = sadd.s32 %s15, 1
    %s23 = ssub.s32 %s15, %s22
    %p24 = scmp.eq.s32.totalorder %s23, 0
    %s26 = sadd.s32 %s25, 1
    %s27 = scalar_select %p24, %s25, %s26
    %p30 = pneg %p24
    %p31 = scmp.eq.s32.totalorder %s15, 1
    %p32 = por %p30, %p31
    %p33 = scmp.ne.s32.totalorder %s25, %s28
    %p34 = scmp.eq.s32.totalorder %s15, 0
    %p35 = por %p33, %p34
    %p36 = scmp.ne.s32.totalorder %s25, %s28
    %p37 = scmp.eq.s32.totalorder %s20, 1
    %p38 = por %p36, %p37
    %p39 = scmp.ne.s32.totalorder %s28, %s29
    %p40 = scmp.eq.s32.totalorder %s20, 0
    %p41 = por %p39, %p40
    %p42 = scmp.ne.s32.totalorder %s28, %s29
    %p43 = scmp.eq.s32.totalorder %s21, 1
    %p44 = por %p42, %p43
    %p46 = scmp.ne.s32.totalorder %s29, %s45
    %p47 = scmp.eq.s32.totalorder %s21, 0
    %p48 = por %p46, %p47
    %s50 = sadd.s32 %s49, 1
    %p53 = scmp.eq.s32.totalorder %s15, 1
    %p54 = scmp.ne.s32.totalorder %s49, %s51
    %p55 = scmp.eq.s32.totalorder %s15, 0
    %p56 = por %p54, %p55
    %p57 = scmp.ne.s32.totalorder %s49, %s51
    %p58 = scmp.eq.s32.totalorder %s20, 1
    %p59 = por %p57, %p58
    %p60 = scmp.ne.s32.totalorder %s51, %s52
    %p61 = scmp.eq.s32.totalorder %s20, 0
    %p62 = por %p60, %p61
    %p63 = scmp.ne.s32.totalorder %s51, %s52
    %p64 = scmp.eq.s32.totalorder %s21, 1
    %p65 = por %p63, %p64
    %p67 = scmp.ne.s32.totalorder %s52, %s66
    %p68 = scmp.eq.s32.totalorder %s21, 0
    %p69 = por %p67, %p68
    %s71 = sadd.s32 %s70, 1
    %p74 = scmp.eq.s32.totalorder %s15, 1
    %p75 = scmp.ne.s32.totalorder %s70, %s72
    %p76 = scmp.eq.s32.totalorder %s15, 0
    %p77 = por %p75, %p76
    %p78 = scmp.ne.s32.totalorder %s70, %s72
    %p79 = scmp.eq.s32.totalorder %s20, 1
    %p80 = por %p78, %p79
    %p81 = scmp.ne.s32.totalorder %s72, %s73
    %p82 = scmp.eq.s32.totalorder %s20, 0
    %p83 = por %p81, %p82
    %p84 = scmp.ne.s32.totalorder %s72, %s73
    %p85 = scmp.eq.s32.totalorder %s21, 1
    %p86 = por %p84, %p85
    %p88 = scmp.ne.s32.totalorder %s73, %s87
    %p89 = scmp.eq.s32.totalorder %s21, 0
    %p90 = por %p88, %p89
    %s92 = sadd.s32 %s91, 1
    %p95 = scmp.eq.s32.totalorder %s15, 1
    %p96 = scmp.ne.s32.totalorder %s91, %s93
    %p97 = scmp.eq.s32.totalorder %s15, 0
    %p98 = por %p96, %p97
    %p99 = scmp.ne.s32.totalorder %s91, %s93
    %p100 = scmp.eq.s32.totalorder %s20, 1
    %p101 = por %p99, %p100
    %p102 = scmp.ne.s32.totalorder %s93, %s94
    %p103 = scmp.eq.s32.totalorder %s20, 0
    %p104 = por %p102, %p103
    %p105 = scmp.ne.s32.totalorder %s93, %s94
    %p106 = scmp.eq.s32.totalorder %s21, 1
    %p107 = por %p105, %p106
    %p109 = scmp.ne.s32.totalorder %s94, %s108
    %p110 = scmp.eq.s32.totalorder %s21, 0
    %p111 = por %p109, %p110
    %s113 = sadd.s32 %s112, 1
    %p116 = scmp.eq.s32.totalorder %s15, 1
    %p117 = scmp.ne.s32.totalorder %s112, %s114
    %p118 = scmp.eq.s32.totalorder %s15, 0
    %p119 = por %p117, %p118
    %p120 = scmp.ne.s32.totalorder %s112, %s114
    %p121 = scmp.eq.s32.totalorder %s20, 1
    %p122 = por %p120, %p121
    %p123 = scmp.ne.s32.totalorder %s114, %s115
    %p124 = scmp.eq.s32.totalorder %s20, 0
    %p125 = por %p123, %p124
    %p126 = scmp.ne.s32.totalorder %s114, %s115
    %p127 = scmp.eq.s32.totalorder %s21, 1
    %p128 = por %p126, %p127
    %p130 = scmp.ne.s32.totalorder %s115, %s129
    %p131 = scmp.eq.s32.totalorder %s21, 0
    %p132 = por %p130, %p131
    %s134 = sadd.s32 %s133, 1
    %p137 = scmp.eq.s32.totalorder %s15, 1
    %p138 = scmp.ne.s32.totalorder %s133, %s135
    %p139 = scmp.eq.s32.totalorder %s15, 0
    %p140 = por %p138, %p139
    %p141 = scmp.ne.s32.totalorder %s133, %s135
    %p142 = scmp.eq.s32.totalorder %s20, 1
    %p143 = por %p141, %p142
    %p144 = scmp.ne.s32.totalorder %s135, %s136
    %p145 = scmp.eq.s32.totalorder %s20, 0
    %p146 = por %p144, %p145
    %p147 = scmp.ne.s32.totalorder %s135, %s136
    %p148 = scmp.eq.s32.totalorder %s21, 1
    %p149 = por %p147, %p148
    %p151 = scmp.ne.s32.totalorder %s136, %s150
    %p152 = scmp.eq.s32.totalorder %s21, 0
    %p153 = por %p151, %p152
    %s155 = sadd.s32 %s154, 1
    %p158 = scmp.eq.s32.totalorder %s15, 1
    %p159 = scmp.ne.s32.totalorder %s154, %s156
    %p160 = scmp.eq.s32.totalorder %s15, 0
    %p161 = por %p159, %p160
    %p162 = scmp.ne.s32.totalorder %s154, %s156
    %p163 = scmp.eq.s32.totalorder %s20, 1
    %p164 = por %p162, %p163
    %p165 = scmp.ne.s32.totalorder %s156, %s157
    %p166 = scmp.eq.s32.totalorder %s20, 0
    %p167 = por %p165, %p166
    %p168 = scmp.ne.s32.totalorder %s156, %s157
    %p169 = scmp.eq.s32.totalorder %s21, 1
    %p170 = por %p168, %p169
    %p172 = scmp.ne.s32.totalorder %s157, %s171
    %p173 = scmp.eq.s32.totalorder %s21, 0
    %p174 = por %p172, %p173
    %s176 = sadd.s32 %s175, 1
    %p179 = scmp.eq.s32.totalorder %s15, 1
    %p180 = scmp.ne.s32.totalorder %s175, %s177
    %p181 = scmp.eq.s32.totalorder %s15, 0
    %p182 = por %p180, %p181
    %p183 = scmp.ne.s32.totalorder %s175, %s177
    %p184 = scmp.eq.s32.totalorder %s20, 1
    %p185 = por %p183, %p184
    %p186 = scmp.ne.s32.totalorder %s177, %s178
    %p187 = scmp.eq.s32.totalorder %s20, 0
    %p188 = por %p186, %p187
    %p189 = scmp.ne.s32.totalorder %s177, %s178
    %p190 = scmp.eq.s32.totalorder %s21, 1
    %p191 = por %p189, %p190
    %p193 = scmp.ne.s32.totalorder %s178, %s192
    %p194 = scmp.eq.s32.totalorder %s21, 0
    %p195 = por %p193, %p194
    %s197 = sadd.s32 %s196, 1
    %p200 = scmp.eq.s32.totalorder %s15, 1
    %p201 = scmp.ne.s32.totalorder %s196, %s198
    %p202 = scmp.eq.s32.totalorder %s15, 0
    %p203 = por %p201, %p202
    %p204 = scmp.ne.s32.totalorder %s196, %s198
    %p205 = scmp.eq.s32.totalorder %s20, 1
    %p206 = por %p204, %p205
    %p207 = scmp.ne.s32.totalorder %s198, %s199
    %p208 = scmp.eq.s32.totalorder %s20, 0
    %p209 = por %p207, %p208
    %p210 = scmp.ne.s32.totalorder %s198, %s199
    %p211 = scmp.eq.s32.totalorder %s21, 1
    %p212 = por %p210, %p211
    %p214 = scmp.ne.s32.totalorder %s199, %s213
    %p215 = scmp.eq.s32.totalorder %s21, 0
    %p216 = por %p214, %p215
    %s217 = ssub.s32 %s15, %s22
    %p218 = scmp.eq.s32.totalorder %s217, 0
    %s220 = sadd.s32 %s219, 1
    %s221 = scalar_select %p218, %s219, %s220
    %p224 = pneg %p218
    %p225 = scmp.eq.s32.totalorder %s15, 1
    %p226 = por %p224, %p225
    %p227 = scmp.ne.s32.totalorder %s219, %s222
    %p228 = scmp.eq.s32.totalorder %s15, 0
    %p229 = por %p227, %p228
    %p230 = scmp.ne.s32.totalorder %s219, %s222
    %p231 = scmp.eq.s32.totalorder %s20, 1
    %p232 = por %p230, %p231
    %p233 = scmp.ne.s32.totalorder %s222, %s223
    %p234 = scmp.eq.s32.totalorder %s20, 0
    %p235 = por %p233, %p234
    %p236 = scmp.ne.s32.totalorder %s222, %s223
    %p237 = scmp.eq.s32.totalorder %s21, 1
    %p238 = por %p236, %p237
    %p240 = scmp.ne.s32.totalorder %s223, %s239
    %p241 = scmp.eq.s32.totalorder %s21, 0
    %p242 = por %p240, %p241
    %p243 = scmp.le.s32.totalorder 1, %s15
    %p244 = scmp.lt.s32.totalorder %s15, 3
    %p245 = pnand %p243, %p244
    %p246 = pneg %p245
    // Predicated region
    $region9: #{unet_forward.1} parent=5 // pred_check
      _
    $region10: #{unet_forward.1} parent=5 // pred_check_branch
      %248 = sbr.rel (%p245) target = $region12
    $region11: #{unet_forward.1} parent=5 // pred_region
      %s249 = ssub.s32 %s15, 1
      // Predicated region
      $region13: #{unet_forward.1} parent=11 // pred_check
        %p250 = pneg %p62
      $region14: #{unet_forward.1} parent=11 // pred_check_branch
        %252 = sbr.rel (%p250) target = $region16
      $region15: #{unet_forward.1} parent=11 // pred_region
        _
      $region16: #{unet_forward.1} parent=11 // pred_fallthru
        _
      // Predicated region
      $region17: #{unet_forward.1} parent=11 // pred_check
        %p253 = pneg %p83
      $region18: #{unet_forward.1} parent=11 // pred_check_branch
        %255 = sbr.rel (%p253) target = $region20
      $region19: #{unet_forward.1} parent=11 // pred_region
        _
      $region20: #{unet_forward.1} parent=11 // pred_fallthru
        _
      // Predicated region
      $region21: #{unet_forward.1} parent=11 // pred_check
        %p256 = pneg %p104
      $region22: #{unet_forward.1} parent=11 // pred_check_branch
        %258 = sbr.rel (%p256) target = $region24
      $region23: #{unet_forward.1} parent=11 // pred_region
        _
      $region24: #{unet_forward.1} parent=11 // pred_fallthru
        _
      // Predicated region
      $region25: #{unet_forward.1} parent=11 // pred_check
        %p259 = pneg %p125
      $region26: #{unet_forward.1} parent=11 // pred_check_branch
        %261 = sbr.rel (%p259) target = $region28
      $region27: #{unet_forward.1} parent=11 // pred_region
        _
      $region28: #{unet_forward.1} parent=11 // pred_fallthru
        _
      // Predicated region
      $region29: #{unet_forward.1} parent=11 // pred_check
        %p262 = pneg %p146
      $region30: #{unet_forward.1} parent=11 // pred_check_branch
        %264 = sbr.rel (%p262) target = $region32
      $region31: #{unet_forward.1} parent=11 // pred_region
        _
      $region32: #{unet_forward.1} parent=11 // pred_fallthru
        _
      // Predicated region
      $region33: #{unet_forward.1} parent=11 // pred_check
        %p265 = pneg %p167
      $region34: #{unet_forward.1} parent=11 // pred_check_branch
        %267 = sbr.rel (%p265) target = $region36
      $region35: #{unet_forward.1} parent=11 // pred_region
        _
      $region36: #{unet_forward.1} parent=11 // pred_fallthru
        _
      // Predicated region
      $region37: #{unet_forward.1} parent=11 // pred_check
        %p268 = pneg %p188
      $region38: #{unet_forward.1} parent=11 // pred_check_branch
        %270 = sbr.rel (%p268) target = $region40
      $region39: #{unet_forward.1} parent=11 // pred_region
        _
      $region40: #{unet_forward.1} parent=11 // pred_fallthru
        _
      // Predicated region
      $region41: #{unet_forward.1} parent=11 // pred_check
        %p271 = pneg %p209
      $region42: #{unet_forward.1} parent=11 // pred_check_branch
        %273 = sbr.rel (%p271) target = $region44
      $region43: #{unet_forward.1} parent=11 // pred_region
        _
      $region44: #{unet_forward.1} parent=11 // pred_fallthru
        _
    $region12: #{unet_forward.1} parent=5 // pred_fallthru
      _
    %p274 = scmp.lt.s32.totalorder %s15, 2
    // Predicated region
    $region45: #{unet_forward.1} parent=5 // pred_check
      %p275 = pneg %p274
    $region46: #{unet_forward.1} parent=5 // pred_check_branch
      %277 = sbr.rel (%p275) target = $region48
    $region47: #{unet_forward.1} parent=5 // pred_region
      // Predicated region
      $region49: #{unet_forward.1} parent=47 // pred_check
        %p278 = pneg %p35
      $region50: #{unet_forward.1} parent=47 // pred_check_branch
        %280 = sbr.rel (%p278) target = $region52
      $region51: #{unet_forward.1} parent=47 // pred_region
        %p281 = scmp.lt.s32.totalorder %s15, 1
        %s282 = scalar_select %p281, %s15, 1
        %s283 = smul.addr %s282, 32
        %s284 = smul.addr %s283, 4
        %s285 = scalar_lea.vmem %s0, %s284
      $region52: #{unet_forward.1} parent=47 // pred_fallthru
        _
    $region48: #{unet_forward.1} parent=5 // pred_fallthru
      _
    %p286 = scmp.le.s32.totalorder 1, %s15
    %p287 = scmp.lt.s32.totalorder %s15, 3
    %p288 = pnand %p286, %p287
    %p289 = pneg %p288
    // Predicated region
    $region53: #{unet_forward.1} parent=5 // pred_check
      _
    $region54: #{unet_forward.1} parent=5 // pred_check_branch
      %291 = sbr.rel (%p288) target = $region56
    $region55: #{unet_forward.1} parent=5 // pred_region
      %s292 = ssub.s32 %s15, 1
      %p293 = scmp.lt.s32.totalorder %s20, 1
      %s294 = scalar_select %p293, %s20, 1
      %s295 = smul.addr %s294, 32
      %s296 = smul.addr %s295, 4
      %s297 = scalar_lea.vmem %s0, %s296
      %p298 = pneg %p41
      %p299 = pneg %p38
      %p300 = pneg %p62
      %p301 = pneg %p59
      %p302 = pneg %p83
      %p303 = pneg %p80
      %p304 = pneg %p104
      %p305 = pneg %p101
      %p306 = pneg %p125
      %p307 = pneg %p122
      %p308 = pneg %p146
      %p309 = pneg %p143
      %p310 = pneg %p167
      %p311 = pneg %p164
      %p312 = pneg %p188
      %p313 = pneg %p185
      %p314 = pneg %p209
      %p315 = pneg %p206
      %p316 = pneg %p235
      %p317 = pneg %p232
      %p318 = scmp.lt.s32.totalorder %s20, 1
      %s319 = scalar_select %p318, %s20, 1
      %s320 = smul.addr %s319, 16
      %s321 = smul.addr %s320, 8
      %s322 = scalar_lea.vmem %s9, %s321
      %p323 = scmp.lt.s32.totalorder %s20, 1
      %s324 = scalar_select %p323, %s20, 1
      %s325 = smul.addr %s324, 32
      %s326 = smul.addr %s325, 4
      %s327 = scalar_lea.vmem %s0, %s326
      %p328 = scmp.lt.s32.totalorder %s20, 1
      %s329 = scalar_select %p328, %s20, 1
      %s330 = smul.addr %s329, 16
      %s331 = smul.addr %s330, 8
      %s332 = scalar_lea.vmem %s9, %s331
      %vm334 = vcmask 523264
      %335 = vst.msk [vmem:[#allocation2] sm:$0xff] %vm334, 0.0
      %336 = vst.msk [vmem:[#allocation2 + $0x8] sm:$0xff] %vm334, 0.0
      %vm337 = vcmask 517120
      %338 = vst.msk [vmem:[#allocation2 + $0x10] sm:$0x3] %vm337, 0.0
      %s339 = scalar_lea.vmem [#allocation2], 408
      %340 = vst.msk [vmem:[%s339] sm:$0xff] %vm334, 0.0
      %341 = vst.msk [vmem:[%s339 + $0x8] sm:$0xff] %vm334, 0.0
      %342 = vst.msk [vmem:[%s339 + $0x10] sm:$0x3] %vm337, 0.0
      %vm343 = vcmask 516096
      %344 = vst.msk [vmem:[#allocation2] sm:$0x1] %vm343, 0.0
      %345 = vst.msk [vmem:[#allocation2 + $0x18] sm:$0x1] %vm343, 0.0
      %346 = vst.msk [vmem:[#allocation2 + $0x30] sm:$0x1] %vm343, 0.0
      %347 = vst.msk [vmem:[#allocation2 + $0x48] sm:$0x1] %vm343, 0.0
      %348 = vst.msk [vmem:[#allocation2 + $0x60] sm:$0x1] %vm343, 0.0
      %349 = vst.msk [vmem:[#allocation2 + $0x78] sm:$0x1] %vm343, 0.0
      %350 = vst.msk [vmem:[#allocation2 + $0x90] sm:$0x1] %vm343, 0.0
      %351 = vst.msk [vmem:[#allocation2 + $0xa8] sm:$0x1] %vm343, 0.0
      %352 = vst.msk [vmem:[#allocation2 + $0xc0] sm:$0x1] %vm343, 0.0
      %353 = vst.msk [vmem:[#allocation2 + $0xd8] sm:$0x1] %vm343, 0.0
      %354 = vst.msk [vmem:[#allocation2 + $0xf0] sm:$0x1] %vm343, 0.0
      %355 = vst.msk [vmem:[#allocation2 + $0x108] sm:$0x1] %vm343, 0.0
      %356 = vst.msk [vmem:[#allocation2 + $0x120] sm:$0x1] %vm343, 0.0
      %357 = vst.msk [vmem:[#allocation2 + $0x138] sm:$0x1] %vm343, 0.0
      %358 = vst.msk [vmem:[#allocation2 + $0x150] sm:$0x1] %vm343, 0.0
      %359 = vst.msk [vmem:[#allocation2 + $0x168] sm:$0x1] %vm343, 0.0
      %360 = vst.msk [vmem:[#allocation2 + $0x180] sm:$0x1] %vm343, 0.0
      %361 = vst.msk [vmem:[#allocation2 + $0x198] sm:$0x1] %vm343, 0.0
      %362 = vst.msk [vmem:[#allocation2 + $0x11] sm:$0x1] %vm343, 0.0
      %363 = vst.msk [vmem:[#allocation2 + $0x29] sm:$0x1] %vm343, 0.0
      %364 = vst.msk [vmem:[#allocation2 + $0x41] sm:$0x1] %vm343, 0.0
      %365 = vst.msk [vmem:[#allocation2 + $0x59] sm:$0x1] %vm343, 0.0
      %366 = vst.msk [vmem:[#allocation2 + $0x71] sm:$0x1] %vm343, 0.0
      %367 = vst.msk [vmem:[#allocation2 + $0x89] sm:$0x1] %vm343, 0.0
      %368 = vst.msk [vmem:[#allocation2 + $0xa1] sm:$0x1] %vm343, 0.0
      %369 = vst.msk [vmem:[#allocation2 + $0xb9] sm:$0x1] %vm343, 0.0
      %370 = vst.msk [vmem:[#allocation2 + $0xd1] sm:$0x1] %vm343, 0.0
      %371 = vst.msk [vmem:[#allocation2 + $0xe9] sm:$0x1] %vm343, 0.0
      %372 = vst.msk [vmem:[#allocation2 + $0x101] sm:$0x1] %vm343, 0.0
      %373 = vst.msk [vmem:[#allocation2 + $0x119] sm:$0x1] %vm343, 0.0
      %374 = vst.msk [vmem:[#allocation2 + $0x131] sm:$0x1] %vm343, 0.0
      %375 = vst.msk [vmem:[#allocation2 + $0x149] sm:$0x1] %vm343, 0.0
      %376 = vst.msk [vmem:[#allocation2 + $0x161] sm:$0x1] %vm343, 0.0
      %377 = vst.msk [vmem:[#allocation2 + $0x179] sm:$0x1] %vm343, 0.0
      %378 = vst.msk [vmem:[#allocation2 + $0x191] sm:$0x1] %vm343, 0.0
      %379 = vst.msk [vmem:[#allocation2 + $0x1a9] sm:$0x1] %vm343, 0.0
      %380 = vst.msk [vmem:[#allocation4] sm:$0xff] %vm334, 0.0
      %381 = vst.msk [vmem:[#allocation4 + $0x8] sm:$0x3] %vm337, 0.0
      %s382 = scalar_lea.vmem [#allocation4], 144
      %383 = vst.msk [vmem:[%s382] sm:$0xff] %vm334, 0.0
      %384 = vst.msk [vmem:[%s382 + $0x8] sm:$0x3] %vm337, 0.0
      %385 = vst.msk [vmem:[#allocation4] sm:$0x1] %vm343, 0.0
      %386 = vst.msk [vmem:[#allocation4 + $0x10] sm:$0x1] %vm343, 0.0
      %387 = vst.msk [vmem:[#allocation4 + $0x20] sm:$0x1] %vm343, 0.0
      %388 = vst.msk [vmem:[#allocation4 + $0x30] sm:$0x1] %vm343, 0.0
      %389 = vst.msk [vmem:[#allocation4 + $0x40] sm:$0x1] %vm343, 0.0
      %390 = vst.msk [vmem:[#allocation4 + $0x50] sm:$0x1] %vm343, 0.0
      %391 = vst.msk [vmem:[#allocation4 + $0x60] sm:$0x1] %vm343, 0.0
      %392 = vst.msk [vmem:[#allocation4 + $0x70] sm:$0x1] %vm343, 0.0
      %393 = vst.msk [vmem:[#allocation4 + $0x80] sm:$0x1] %vm343, 0.0
      %394 = vst.msk [vmem:[#allocation4 + $0x90] sm:$0x1] %vm343, 0.0
      %395 = vst.msk [vmem:[#allocation4 + $0x9] sm:$0x1] %vm343, 0.0
      %396 = vst.msk [vmem:[#allocation4 + $0x19] sm:$0x1] %vm343, 0.0
      %397 = vst.msk [vmem:[#allocation4 + $0x29] sm:$0x1] %vm343, 0.0
      %398 = vst.msk [vmem:[#allocation4 + $0x39] sm:$0x1] %vm343, 0.0
      %399 = vst.msk [vmem:[#allocation4 + $0x49] sm:$0x1] %vm343, 0.0
      %400 = vst.msk [vmem:[#allocation4 + $0x59] sm:$0x1] %vm343, 0.0
      %401 = vst.msk [vmem:[#allocation4 + $0x69] sm:$0x1] %vm343, 0.0
      %402 = vst.msk [vmem:[#allocation4 + $0x79] sm:$0x1] %vm343, 0.0
      %403 = vst.msk [vmem:[#allocation4 + $0x89] sm:$0x1] %vm343, 0.0
      %404 = vst.msk [vmem:[#allocation4 + $0x99] sm:$0x1] %vm343, 0.0
      %405 = vst.msk [vmem:[#allocation5] sm:$0xff] %vm334, 0.0
      %406 = vst.msk [vmem:[#allocation5 + $0x8] sm:$0x3] %vm337, 0.0
      %s407 = scalar_lea.vmem [#allocation5], 144
      %408 = vst.msk [vmem:[%s407] sm:$0xff] %vm334, 0.0
      %409 = vst.msk [vmem:[%s407 + $0x8] sm:$0x3] %vm337, 0.0
      %410 = vst.msk [vmem:[#allocation5] sm:$0x1] %vm343, 0.0
      %411 = vst.msk [vmem:[#allocation5 + $0x10] sm:$0x1] %vm343, 0.0
      %412 = vst.msk [vmem:[#allocation5 + $0x20] sm:$0x1] %vm343, 0.0
      %413 = vst.msk [vmem:[#allocation5 + $0x30] sm:$0x1] %vm343, 0.0
      %414 = vst.msk [vmem:[#allocation5 + $0x40] sm:$0x1] %vm343, 0.0
      %415 = vst.msk [vmem:[#allocation5 + $0x50] sm:$0x1] %vm343, 0.0
      %416 = vst.msk [vmem:[#allocation5 + $0x60] sm:$0x1] %vm343, 0.0
      %417 = vst.msk [vmem:[#allocation5 + $0x70] sm:$0x1] %vm343, 0.0
      %418 = vst.msk [vmem:[#allocation5 + $0x80] sm:$0x1] %vm343, 0.0
      %419 = vst.msk [vmem:[#allocation5 + $0x90] sm:$0x1] %vm343, 0.0
      %420 = vst.msk [vmem:[#allocation5 + $0x9] sm:$0x1] %vm343, 0.0
      %421 = vst.msk [vmem:[#allocation5 + $0x19] sm:$0x1] %vm343, 0.0
      %422 = vst.msk [vmem:[#allocation5 + $0x29] sm:$0x1] %vm343, 0.0
      %423 = vst.msk [vmem:[#allocation5 + $0x39] sm:$0x1] %vm343, 0.0
      %424 = vst.msk [vmem:[#allocation5 + $0x49] sm:$0x1] %vm343, 0.0
      %425 = vst.msk [vmem:[#allocation5 + $0x59] sm:$0x1] %vm343, 0.0
      %426 = vst.msk [vmem:[#allocation5 + $0x69] sm:$0x1] %vm343, 0.0
      %427 = vst.msk [vmem:[#allocation5 + $0x79] sm:$0x1] %vm343, 0.0
      %428 = vst.msk [vmem:[#allocation5 + $0x89] sm:$0x1] %vm343, 0.0
      %429 = vst.msk [vmem:[#allocation5 + $0x99] sm:$0x1] %vm343, 0.0
      %v430 = vld [vmem:[%s327] sm:$0xf]
      %v431 = vld [vmem:[%s327 + $0x4] sm:$0xf]
      %v432 = vld [vmem:[%s327 + $0x8] sm:$0xf]
      %v433 = vld [vmem:[%s327 + $0xc] sm:$0xf]
      %v434 = vld [vmem:[%s327 + $0x10] sm:$0xf]
      %v435 = vld [vmem:[%s327 + $0x14] sm:$0xf]
      %v436 = vld [vmem:[%s327 + $0x18] sm:$0xf]
      %v437 = vld [vmem:[%s327 + $0x1c] sm:$0xf]
      %v438 = vld [vmem:[%s327 + $0x20] sm:$0xf]
      %v439 = vld [vmem:[%s327 + $0x24] sm:$0xf]
      %v440 = vld [vmem:[%s327 + $0x28] sm:$0xf]
      %v441 = vld [vmem:[%s327 + $0x2c] sm:$0xf]
      %v442 = vld [vmem:[%s327 + $0x30] sm:$0xf]
      %v443 = vld [vmem:[%s327 + $0x34] sm:$0xf]
      %v444 = vld [vmem:[%s327 + $0x38] sm:$0xf]
      %v445 = vld [vmem:[%s327 + $0x3c] sm:$0xf]
      %v446 = vld [vmem:[%s327 + $0x40] sm:$0xf]
      %v447 = vld [vmem:[%s327 + $0x44] sm:$0xf]
      %v448 = vld [vmem:[%s327 + $0x48] sm:$0xf]
      %v449 = vld [vmem:[%s327 + $0x4c] sm:$0xf]
      %v450 = vld [vmem:[%s327 + $0x50] sm:$0xf]
      %v451 = vld [vmem:[%s327 + $0x54] sm:$0xf]
      %v452 = vld [vmem:[%s327 + $0x58] sm:$0xf]
      %v453 = vld [vmem:[%s327 + $0x5c] sm:$0xf]
      %v454 = vld [vmem:[%s327 + $0x60] sm:$0xf]
      %v455 = vld [vmem:[%s327 + $0x64] sm:$0xf]
      %v456 = vld [vmem:[%s327 + $0x68] sm:$0xf]
      %v457 = vld [vmem:[%s327 + $0x6c] sm:$0xf]
      %v458 = vld [vmem:[%s327 + $0x70] sm:$0xf]
      %v459 = vld [vmem:[%s327 + $0x74] sm:$0xf]
      %v460 = vld [vmem:[%s327 + $0x78] sm:$0xf]
      %v461 = vld [vmem:[%s327 + $0x7c] sm:$0xf]
      %v462 = vld [vmem:[%s1] sm:$0xf]
      %v463 = vld [vmem:[%s1 + $0x4] sm:$0xf]
      %v464 = vld [vmem:[%s1 + $0x8] sm:$0xf]
      %v465 = vld [vmem:[%s1 + $0xc] sm:$0xf]
      %v466 = vld [vmem:[%s2] sm:$0x1]
      %v468 = vperm.slane %v466, 0
      %v502 = vunpack.c.l.b16 %v430
      %v503 = vunpack.c.l.b16 %v431
      %v504 = vunpack.c.l.b16 %v432
      %v505 = vunpack.c.l.b16 %v433
      %v506 = vunpack.c.l.b16 %v434
      %v507 = vunpack.c.l.b16 %v435
      %v508 = vunpack.c.l.b16 %v436
      %v509 = vunpack.c.l.b16 %v437
      %v510 = vunpack.c.l.b16 %v438
      %v511 = vunpack.c.l.b16 %v439
      %v512 = vunpack.c.l.b16 %v440
      %v513 = vunpack.c.l.b16 %v441
      %v514 = vunpack.c.l.b16 %v442
      %v515 = vunpack.c.l.b16 %v443
      %v516 = vunpack.c.l.b16 %v444
      %v517 = vunpack.c.l.b16 %v445
      %v518 = vunpack.c.l.b16 %v446
      %v519 = vunpack.c.l.b16 %v447
      %v520 = vunpack.c.l.b16 %v448
      %v521 = vunpack.c.l.b16 %v449
      %v522 = vunpack.c.l.b16 %v450
      %v523 = vunpack.c.l.b16 %v451
      %v524 = vunpack.c.l.b16 %v452
      %v525 = vunpack.c.l.b16 %v453
      %v526 = vunpack.c.l.b16 %v454
      %v527 = vunpack.c.l.b16 %v455
      %v528 = vunpack.c.l.b16 %v456
      %v529 = vunpack.c.l.b16 %v457
      %v530 = vunpack.c.l.b16 %v458
      %v531 = vunpack.c.l.b16 %v459
      %v532 = vunpack.c.l.b16 %v460
      %v533 = vunpack.c.l.b16 %v461
      %v534 = vpack.c.b16 %v503, %v502
      %v535 = vpack.c.b16 %v505, %v504
      %v536 = vpack.c.b16 %v507, %v506
      %v537 = vpack.c.b16 %v509, %v508
      %v538 = vpack.c.b16 %v511, %v510
      %v539 = vpack.c.b16 %v513, %v512
      %v540 = vpack.c.b16 %v515, %v514
      %v541 = vpack.c.b16 %v517, %v516
      %v542 = vpack.c.b16 %v519, %v518
      %v543 = vpack.c.b16 %v521, %v520
      %v544 = vpack.c.b16 %v523, %v522
      %v545 = vpack.c.b16 %v525, %v524
      %v546 = vpack.c.b16 %v527, %v526
      %v547 = vpack.c.b16 %v529, %v528
      %v548 = vpack.c.b16 %v531, %v530
      %v549 = vpack.c.b16 %v533, %v532
      %v554 = vunpack.c.l.b16 %v462
      %v555 = vunpack.c.l.b16 %v463
      %v556 = vunpack.c.l.b16 %v464
      %v557 = vunpack.c.l.b16 %v465
      %v558 = vpack.c.b16 %v555, %v554
      %v559 = vpack.c.b16 %v557, %v556
      %vm562 = vcmask 261120
      %v564 = vsel %vm562, %v534, 0
      %v567 = vsel %vm562, %v535, 0
      %v570 = vsel %vm562, %v536, 0
      %v573 = vsel %vm562, %v537, 0
      %v576 = vsel %vm562, %v538, 0
      %v579 = vsel %vm562, %v539, 0
      %v582 = vsel %vm562, %v540, 0
      %v585 = vsel %vm562, %v541, 0
      %v588 = vsel %vm562, %v542, 0
      %v591 = vsel %vm562, %v543, 0
      %v594 = vsel %vm562, %v544, 0
      %v597 = vsel %vm562, %v545, 0
      %v600 = vsel %vm562, %v546, 0
      %v603 = vsel %vm562, %v547, 0
      %v606 = vsel %vm562, %v548, 0
      %v609 = vsel %vm562, %v549, 0
      %611 = vmatpush.bf16.msra.mxu0 0
      %612 = vmatpush.bf16.msra.mxu0 0
      %613 = vmatpush.bf16.msra.mxu0 0
      %614 = vmatpush.bf16.msra.mxu0 0
      %615 = vmatpush.bf16.msra.mxu0 0
      %616 = vmatpush.bf16.msra.mxu0 0
      %617 = vmatpush.bf16.msra.mxu0 %v559
      %618 = vmatpush.bf16.msra.mxu0 %v558
      %619 = vmatmul.bf16.gmra.mxu0 %v564
      %v620 = vpop.f32.mrf.mxu0
      %v621 = vadd.f32 %v468, %v620
      %v622 = vpop.f32.mrf.mxu0
      %v623 = vadd.f32 %v468, %v622
      %624 = vmatmul.bf16.gmra.mxu0 %v567
      %v625 = vpop.f32.mrf.mxu0
      %v626 = vadd.f32 %v468, %v625
      %v627 = vpop.f32.mrf.mxu0
      %v628 = vadd.f32 %v468, %v627
      %629 = vmatmul.bf16.gmra.mxu0 %v570
      %v630 = vpop.f32.mrf.mxu0
      %v631 = vadd.f32 %v468, %v630
      %v632 = vpop.f32.mrf.mxu0
      %v633 = vadd.f32 %v468, %v632
      %634 = vmatmul.bf16.gmra.mxu0 %v573
      %v635 = vpop.f32.mrf.mxu0
      %v636 = vadd.f32 %v468, %v635
      %v637 = vpop.f32.mrf.mxu0
      %v638 = vadd.f32 %v468, %v637
      %639 = vmatmul.bf16.gmra.mxu0 %v576
      %v640 = vpop.f32.mrf.mxu0
      %v641 = vadd.f32 %v468, %v640
      %v642 = vpop.f32.mrf.mxu0
      %v643 = vadd.f32 %v468, %v642
      %644 = vmatmul.bf16.gmra.mxu0 %v579
      %v645 = vpop.f32.mrf.mxu0
      %v646 = vadd.f32 %v468, %v645
      %v647 = vpop.f32.mrf.mxu0
      %v648 = vadd.f32 %v468, %v647
      %649 = vmatmul.bf16.gmra.mxu0 %v582
      %v650 = vpop.f32.mrf.mxu0
      %v651 = vadd.f32 %v468, %v650
      %v652 = vpop.f32.mrf.mxu0
      %v653 = vadd.f32 %v468, %v652
      %654 = vmatmul.bf16.gmra.mxu0 %v585
      %v655 = vpop.f32.mrf.mxu0
      %v656 = vadd.f32 %v468, %v655
      %v657 = vpop.f32.mrf.mxu0
      %v658 = vadd.f32 %v468, %v657
      %659 = vmatmul.bf16.gmra.mxu0 %v588
      %v660 = vpop.f32.mrf.mxu0
      %v661 = vadd.f32 %v468, %v660
      %v662 = vpop.f32.mrf.mxu0
      %v663 = vadd.f32 %v468, %v662
      %664 = vmatmul.bf16.gmra.mxu0 %v591
      %v665 = vpop.f32.mrf.mxu0
      %v666 = vadd.f32 %v468, %v665
      %v667 = vpop.f32.mrf.mxu0
      %v668 = vadd.f32 %v468, %v667
      %669 = vmatmul.bf16.gmra.mxu0 %v594
      %v670 = vpop.f32.mrf.mxu0
      %v671 = vadd.f32 %v468, %v670
      %v672 = vpop.f32.mrf.mxu0
      %v673 = vadd.f32 %v468, %v672
      %674 = vmatmul.bf16.gmra.mxu0 %v597
      %v675 = vpop.f32.mrf.mxu0
      %v676 = vadd.f32 %v468, %v675
      %v677 = vpop.f32.mrf.mxu0
      %v678 = vadd.f32 %v468, %v677
      %679 = vmatmul.bf16.gmra.mxu0 %v600
      %v680 = vpop.f32.mrf.mxu0
      %v681 = vadd.f32 %v468, %v680
      %v682 = vpop.f32.mrf.mxu0
      %v683 = vadd.f32 %v468, %v682
      %684 = vmatmul.bf16.gmra.mxu0 %v603
      %v685 = vpop.f32.mrf.mxu0
      %v686 = vadd.f32 %v468, %v685
      %v687 = vpop.f32.mrf.mxu0
      %v688 = vadd.f32 %v468, %v687
      %689 = vmatmul.bf16.gmra.mxu0 %v606
      %v690 = vpop.f32.mrf.mxu0
      %v691 = vadd.f32 %v468, %v690
      %v692 = vpop.f32.mrf.mxu0
      %v693 = vadd.f32 %v468, %v692
      %694 = vmatmul.bf16.gmra.mxu0 %v609
      %v695 = vpop.f32.mrf.mxu0
      %v696 = vadd.f32 %v468, %v695
      %v697 = vpop.f32.mrf.mxu0
      %v698 = vadd.f32 %v468, %v697
      %699 = vdwg.mxu0
      %v700 = vmax.f32 %v621, 0.0
      %v701 = vmax.f32 %v623, 0.0
      %v702 = vmax.f32 %v626, 0.0
      %v703 = vmax.f32 %v628, 0.0
      %v704 = vmax.f32 %v631, 0.0
      %v705 = vmax.f32 %v633, 0.0
      %v706 = vmax.f32 %v636, 0.0
      %v707 = vmax.f32 %v638, 0.0
      %v708 = vmax.f32 %v641, 0.0
      %v709 = vmax.f32 %v643, 0.0
      %v710 = vmax.f32 %v646, 0.0
      %v711 = vmax.f32 %v648, 0.0
      %v712 = vmax.f32 %v651, 0.0
      %v713 = vmax.f32 %v653, 0.0
      %v714 = vmax.f32 %v656, 0.0
      %v715 = vmax.f32 %v658, 0.0
      %v716 = vmax.f32 %v661, 0.0
      %v717 = vmax.f32 %v663, 0.0
      %v718 = vmax.f32 %v666, 0.0
      %v719 = vmax.f32 %v668, 0.0
      %v720 = vmax.f32 %v671, 0.0
      %v721 = vmax.f32 %v673, 0.0
      %v722 = vmax.f32 %v676, 0.0
      %v723 = vmax.f32 %v678, 0.0
      %v724 = vmax.f32 %v681, 0.0
      %v725 = vmax.f32 %v683, 0.0
      %v726 = vmax.f32 %v686, 0.0
      %v727 = vmax.f32 %v688, 0.0
      %v728 = vmax.f32 %v691, 0.0
      %v729 = vmax.f32 %v693, 0.0
      %v730 = vmax.f32 %v696, 0.0
      %v731 = vmax.f32 %v698, 0.0
      %s732 = scalar_lea.vmem [#allocation2], 24
      %733 = vst.msk [vmem:[%s732 + $0x1] sm:$0xff] %vm334, %v700
      %734 = vst.msk [vmem:[%s732 + $0x9] sm:$0xff] %vm334, %v701
      %735 = vst.msk [vmem:[%s732 + $0x19] sm:$0xff] %vm334, %v702
      %736 = vst.msk [vmem:[%s732 + $0x21] sm:$0xff] %vm334, %v703
      %737 = vst.msk [vmem:[%s732 + $0x31] sm:$0xff] %vm334, %v704
      %738 = vst.msk [vmem:[%s732 + $0x39] sm:$0xff] %vm334, %v705
      %739 = vst.msk [vmem:[%s732 + $0x49] sm:$0xff] %vm334, %v706
      %740 = vst.msk [vmem:[%s732 + $0x51] sm:$0xff] %vm334, %v707
      %741 = vst.msk [vmem:[%s732 + $0x61] sm:$0xff] %vm334, %v708
      %742 = vst.msk [vmem:[%s732 + $0x69] sm:$0xff] %vm334, %v709
      %743 = vst.msk [vmem:[%s732 + $0x79] sm:$0xff] %vm334, %v710
      %744 = vst.msk [vmem:[%s732 + $0x81] sm:$0xff] %vm334, %v711
      %745 = vst.msk [vmem:[%s732 + $0x91] sm:$0xff] %vm334, %v712
      %746 = vst.msk [vmem:[%s732 + $0x99] sm:$0xff] %vm334, %v713
      %747 = vst.msk [vmem:[%s732 + $0xa9] sm:$0xff] %vm334, %v714
      %748 = vst.msk [vmem:[%s732 + $0xb1] sm:$0xff] %vm334, %v715
      %749 = vst.msk [vmem:[%s732 + $0xc1] sm:$0xff] %vm334, %v716
      %750 = vst.msk [vmem:[%s732 + $0xc9] sm:$0xff] %vm334, %v717
      %751 = vst.msk [vmem:[%s732 + $0xd9] sm:$0xff] %vm334, %v718
      %752 = vst.msk [vmem:[%s732 + $0xe1] sm:$0xff] %vm334, %v719
      %753 = vst.msk [vmem:[%s732 + $0xf1] sm:$0xff] %vm334, %v720
      %754 = vst.msk [vmem:[%s732 + $0xf9] sm:$0xff] %vm334, %v721
      %755 = vst.msk [vmem:[%s732 + $0x109] sm:$0xff] %vm334, %v722
      %756 = vst.msk [vmem:[%s732 + $0x111] sm:$0xff] %vm334, %v723
      %757 = vst.msk [vmem:[%s732 + $0x121] sm:$0xff] %vm334, %v724
      %758 = vst.msk [vmem:[%s732 + $0x129] sm:$0xff] %vm334, %v725
      %759 = vst.msk [vmem:[%s732 + $0x139] sm:$0xff] %vm334, %v726
      %760 = vst.msk [vmem:[%s732 + $0x141] sm:$0xff] %vm334, %v727
      %761 = vst.msk [vmem:[%s732 + $0x151] sm:$0xff] %vm334, %v728
      %762 = vst.msk [vmem:[%s732 + $0x159] sm:$0xff] %vm334, %v729
      %763 = vst.msk [vmem:[%s732 + $0x169] sm:$0xff] %vm334, %v730
      %764 = vst.msk [vmem:[%s732 + $0x171] sm:$0xff] %vm334, %v731
      %v765 = vld [vmem:[#allocation2] sm:$0xff]
      %v766 = vld [vmem:[#allocation2 + $0x8] sm:$0xff]
      %v767 = vld [vmem:[#allocation2 + $0x18] sm:$0xff]
      %v768 = vld [vmem:[#allocation2 + $0x20] sm:$0xff]
      %v769 = vld [vmem:[#allocation2 + $0x30] sm:$0xff]
      %v770 = vld [vmem:[#allocation2 + $0x38] sm:$0xff]
      %v771 = vld [vmem:[#allocation2 + $0x48] sm:$0xff]
      %v772 = vld [vmem:[#allocation2 + $0x50] sm:$0xff]
      %v773 = vld [vmem:[#allocation2 + $0x60] sm:$0xff]
      %v774 = vld [vmem:[#allocation2 + $0x68] sm:$0xff]
      %v775 = vld [vmem:[#allocation2 + $0x78] sm:$0xff]
      %v776 = vld [vmem:[#allocation2 + $0x80] sm:$0xff]
      %v777 = vld [vmem:[#allocation2 + $0x90] sm:$0xff]
      %v778 = vld [vmem:[#allocation2 + $0x98] sm:$0xff]
      %v779 = vld [vmem:[#allocation2 + $0xa8] sm:$0xff]
      %v780 = vld [vmem:[#allocation2 + $0xb0] sm:$0xff]
      %v781 = vld [vmem:[#allocation2 + $0xc0] sm:$0xff]
      %v782 = vld [vmem:[#allocation2 + $0xc8] sm:$0xff]
      %v783 = vld [vmem:[#allocation2 + $0xd8] sm:$0xff]
      %v784 = vld [vmem:[#allocation2 + $0xe0] sm:$0xff]
      %v785 = vld [vmem:[#allocation2 + $0xf0] sm:$0xff]
      %v786 = vld [vmem:[#allocation2 + $0xf8] sm:$0xff]
      %v787 = vld [vmem:[#allocation2 + $0x108] sm:$0xff]
      %v788 = vld [vmem:[#allocation2 + $0x110] sm:$0xff]
      %v789 = vld [vmem:[#allocation2 + $0x120] sm:$0xff]
      %v790 = vld [vmem:[#allocation2 + $0x128] sm:$0xff]
      %v791 = vld [vmem:[#allocation2 + $0x138] sm:$0xff]
      %v792 = vld [vmem:[#allocation2 + $0x140] sm:$0xff]
      %v793 = vld [vmem:[#allocation2 + $0x150] sm:$0xff]
      %v794 = vld [vmem:[#allocation2 + $0x158] sm:$0xff]
      %v795 = vld [vmem:[#allocation2 + $0x168] sm:$0xff]
      %v796 = vld [vmem:[#allocation2 + $0x170] sm:$0xff]
      %v797 = vpack.c.bf16 %v766, %v765
      %v798 = vpack.c.bf16 %v768, %v767
      %v799 = vpack.c.bf16 %v770, %v769
      %v800 = vpack.c.bf16 %v772, %v771
      %v801 = vpack.c.bf16 %v774, %v773
      %v802 = vpack.c.bf16 %v776, %v775
      %v803 = vpack.c.bf16 %v778, %v777
      %v804 = vpack.c.bf16 %v780, %v779
      %v805 = vpack.c.bf16 %v782, %v781
      %v806 = vpack.c.bf16 %v784, %v783
      %v807 = vpack.c.bf16 %v786, %v785
      %v808 = vpack.c.bf16 %v788, %v787
      %v809 = vpack.c.bf16 %v790, %v789
      %v810 = vpack.c.bf16 %v792, %v791
      %v811 = vpack.c.bf16 %v794, %v793
      %v812 = vpack.c.bf16 %v796, %v795
      %v813 = vld [vmem:[%s3] sm:$0xf]
      %v814 = vld [vmem:[%s3 + $0x4] sm:$0xf]
      %v815 = vld [vmem:[%s3 + $0x8] sm:$0xf]
      %v816 = vld [vmem:[%s3 + $0xc] sm:$0xf]
      %v817 = vld [vmem:[%s3 + $0x10] sm:$0xf]
      %v818 = vld [vmem:[%s3 + $0x14] sm:$0xf]
      %v819 = vld [vmem:[%s3 + $0x18] sm:$0xf]
      %v820 = vld [vmem:[%s3 + $0x1c] sm:$0xf]
      %v821 = vld [vmem:[#allocation2 + $0x1] sm:$0xff]
      %v822 = vld [vmem:[#allocation2 + $0x9] sm:$0xff]
      %v823 = vld [vmem:[#allocation2 + $0x19] sm:$0xff]
      %v824 = vld [vmem:[#allocation2 + $0x21] sm:$0xff]
      %v825 = vld [vmem:[#allocation2 + $0x31] sm:$0xff]
      %v826 = vld [vmem:[#allocation2 + $0x39] sm:$0xff]
      %v827 = vld [vmem:[#allocation2 + $0x49] sm:$0xff]
      %v828 = vld [vmem:[#allocation2 + $0x51] sm:$0xff]
      %v829 = vld [vmem:[#allocation2 + $0x61] sm:$0xff]
      %v830 = vld [vmem:[#allocation2 + $0x69] sm:$0xff]
      %v831 = vld [vmem:[#allocation2 + $0x79] sm:$0xff]
      %v832 = vld [vmem:[#allocation2 + $0x81] sm:$0xff]
      %v833 = vld [vmem:[#allocation2 + $0x91] sm:$0xff]
      %v834 = vld [vmem:[#allocation2 + $0x99] sm:$0xff]
      %v835 = vld [vmem:[#allocation2 + $0xa9] sm:$0xff]
      %v836 = vld [vmem:[#allocation2 + $0xb1] sm:$0xff]
      %v837 = vld [vmem:[#allocation2 + $0xc1] sm:$0xff]
      %v838 = vld [vmem:[#allocation2 + $0xc9] sm:$0xff]
      %v839 = vld [vmem:[#allocation2 + $0xd9] sm:$0xff]
      %v840 = vld [vmem:[#allocation2 + $0xe1] sm:$0xff]
      %v841 = vld [vmem:[#allocation2 + $0xf1] sm:$0xff]
      %v842 = vld [vmem:[#allocation2 + $0xf9] sm:$0xff]
      %v843 = vld [vmem:[#allocation2 + $0x109] sm:$0xff]
      %v844 = vld [vmem:[#allocation2 + $0x111] sm:$0xff]
      %v845 = vld [vmem:[#allocation2 + $0x121] sm:$0xff]
      %v846 = vld [vmem:[#allocation2 + $0x129] sm:$0xff]
      %v847 = vld [vmem:[#allocation2 + $0x139] sm:$0xff]
      %v848 = vld [vmem:[#allocation2 + $0x141] sm:$0xff]
      %v849 = vld [vmem:[#allocation2 + $0x151] sm:$0xff]
      %v850 = vld [vmem:[#allocation2 + $0x159] sm:$0xff]
      %v851 = vld [vmem:[#allocation2 + $0x169] sm:$0xff]
      %v852 = vld [vmem:[#allocation2 + $0x171] sm:$0xff]
      %v853 = vpack.c.bf16 %v822, %v821
      %v854 = vpack.c.bf16 %v824, %v823
      %v855 = vpack.c.bf16 %v826, %v825
      %v856 = vpack.c.bf16 %v828, %v827
      %v857 = vpack.c.bf16 %v830, %v829
      %v858 = vpack.c.bf16 %v832, %v831
      %v859 = vpack.c.bf16 %v834, %v833
      %v860 = vpack.c.bf16 %v836, %v835
      %v861 = vpack.c.bf16 %v838, %v837
      %v862 = vpack.c.bf16 %v840, %v839
      %v863 = vpack.c.bf16 %v842, %v841
      %v864 = vpack.c.bf16 %v844, %v843
      %v865 = vpack.c.bf16 %v846, %v845
      %v866 = vpack.c.bf16 %v848, %v847
      %v867 = vpack.c.bf16 %v850, %v849
      %v868 = vpack.c.bf16 %v852, %v851
      %v869 = vld [vmem:[%s3 + $0x20] sm:$0xf]
      %v870 = vld [vmem:[%s3 + $0x24] sm:$0xf]
      %v871 = vld [vmem:[%s3 + $0x28] sm:$0xf]
      %v872 = vld [vmem:[%s3 + $0x2c] sm:$0xf]
      %v873 = vld [vmem:[%s3 + $0x30] sm:$0xf]
      %v874 = vld [vmem:[%s3 + $0x34] sm:$0xf]
      %v875 = vld [vmem:[%s3 + $0x38] sm:$0xf]
      %v876 = vld [vmem:[%s3 + $0x3c] sm:$0xf]
      %v885 = vunpack.c.l.b16 %v869
      %v886 = vunpack.c.l.b16 %v870
      %v887 = vunpack.c.l.b16 %v871
      %v888 = vunpack.c.l.b16 %v872
      %v889 = vunpack.c.l.b16 %v873
      %v890 = vunpack.c.l.b16 %v874
      %v891 = vunpack.c.l.b16 %v875
      %v892 = vunpack.c.l.b16 %v876
      %v893 = vpack.c.b16 %v886, %v885
      %v894 = vpack.c.b16 %v888, %v887
      %v895 = vpack.c.b16 %v890, %v889
      %v896 = vpack.c.b16 %v892, %v891
      %v902 = vsel %vm334, %v853, 0
      %v905 = vsel %vm334, %v854, 0
      %v908 = vsel %vm334, %v855, 0
      %v911 = vsel %vm334, %v856, 0
      %v914 = vsel %vm334, %v857, 0
      %v917 = vsel %vm334, %v858, 0
      %v920 = vsel %vm334, %v859, 0
      %v923 = vsel %vm334, %v860, 0
      %v926 = vsel %vm334, %v861, 0
      %v929 = vsel %vm334, %v862, 0
      %v932 = vsel %vm334, %v863, 0
      %v935 = vsel %vm334, %v864, 0
      %v938 = vsel %vm334, %v865, 0
      %v941 = vsel %vm334, %v866, 0
      %v944 = vsel %vm334, %v867, 0
      %v947 = vsel %vm334, %v868, 0
      %949 = vmatpush.bf16.msra.mxu0 0
      %950 = vmatpush.bf16.msra.mxu0 0
      %951 = vmatpush.bf16.msra.mxu0 0
      %952 = vmatpush.bf16.msra.mxu0 0
      %953 = vmatpush.bf16.msra.mxu0 %v896
      %954 = vmatpush.bf16.msra.mxu0 %v895
      %955 = vmatpush.bf16.msra.mxu0 %v894
      %956 = vmatpush.bf16.msra.mxu0 %v893
      %957 = vmatmul.bf16.gmra.mxu0 %v902
      %v958 = vpop.f32.mrf.mxu0
      %v959 = vadd.f32 0.0, %v958
      %v960 = vpop.f32.mrf.mxu0
      %v961 = vadd.f32 0.0, %v960
      %962 = vmatmul.bf16.gmra.mxu0 %v905
      %v963 = vpop.f32.mrf.mxu0
      %v964 = vadd.f32 0.0, %v963
      %v965 = vpop.f32.mrf.mxu0
      %v966 = vadd.f32 0.0, %v965
      %967 = vmatmul.bf16.gmra.mxu0 %v908
      %v968 = vpop.f32.mrf.mxu0
      %v969 = vadd.f32 0.0, %v968
      %v970 = vpop.f32.mrf.mxu0
      %v971 = vadd.f32 0.0, %v970
      %972 = vmatmul.bf16.gmra.mxu0 %v911
      %v973 = vpop.f32.mrf.mxu0
      %v974 = vadd.f32 0.0, %v973
      %v975 = vpop.f32.mrf.mxu0
      %v976 = vadd.f32 0.0, %v975
      %977 = vmatmul.bf16.gmra.mxu0 %v914
      %v978 = vpop.f32.mrf.mxu0
      %v979 = vadd.f32 0.0, %v978
      %v980 = vpop.f32.mrf.mxu0
      %v981 = vadd.f32 0.0, %v980
      %982 = vmatmul.bf16.gmra.mxu0 %v917
      %v983 = vpop.f32.mrf.mxu0
      %v984 = vadd.f32 0.0, %v983
      %v985 = vpop.f32.mrf.mxu0
      %v986 = vadd.f32 0.0, %v985
      %987 = vmatmul.bf16.gmra.mxu0 %v920
      %v988 = vpop.f32.mrf.mxu0
      %v989 = vadd.f32 0.0, %v988
      %v990 = vpop.f32.mrf.mxu0
      %v991 = vadd.f32 0.0, %v990
      %992 = vmatmul.bf16.gmra.mxu0 %v923
      %v993 = vpop.f32.mrf.mxu0
      %v994 = vadd.f32 0.0, %v993
      %v995 = vpop.f32.mrf.mxu0
      %v996 = vadd.f32 0.0, %v995
      %997 = vmatmul.bf16.gmra.mxu0 %v926
      %v998 = vpop.f32.mrf.mxu0
      %v999 = vadd.f32 0.0, %v998
      %v1000 = vpop.f32.mrf.mxu0
      %v1001 = vadd.f32 0.0, %v1000
      %1002 = vmatmul.bf16.gmra.mxu0 %v929
      %v1003 = vpop.f32.mrf.mxu0
      %v1004 = vadd.f32 0.0, %v1003
      %v1005 = vpop.f32.mrf.mxu0
      %v1006 = vadd.f32 0.0, %v1005
      %1007 = vmatmul.bf16.gmra.mxu0 %v932
      %v1008 = vpop.f32.mrf.mxu0
      %v1009 = vadd.f32 0.0, %v1008
      %v1010 = vpop.f32.mrf.mxu0
      %v1011 = vadd.f32 0.0, %v1010
      %1012 = vmatmul.bf16.gmra.mxu0 %v935
      %v1013 = vpop.f32.mrf.mxu0
      %v1014 = vadd.f32 0.0, %v1013
      %v1015 = vpop.f32.mrf.mxu0
      %v1016 = vadd.f32 0.0, %v1015
      %1017 = vmatmul.bf16.gmra.mxu0 %v938
      %v1018 = vpop.f32.mrf.mxu0
      %v1019 = vadd.f32 0.0, %v1018
      %v1020 = vpop.f32.mrf.mxu0
      %v1021 = vadd.f32 0.0, %v1020
      %1022 = vmatmul.bf16.gmra.mxu0 %v941
      %v1023 = vpop.f32.mrf.mxu0
      %v1024 = vadd.f32 0.0, %v1023
      %v1025 = vpop.f32.mrf.mxu0
      %v1026 = vadd.f32 0.0, %v1025
      %1027 = vmatmul.bf16.gmra.mxu0 %v944
      %v1028 = vpop.f32.mrf.mxu0
      %v1029 = vadd.f32 0.0, %v1028
      %v1030 = vpop.f32.mrf.mxu0
      %v1031 = vadd.f32 0.0, %v1030
      %1032 = vmatmul.bf16.gmra.mxu0 %v947
      %v1033 = vpop.f32.mrf.mxu0
      %v1034 = vadd.f32 0.0, %v1033
      %v1035 = vpop.f32.mrf.mxu0
      %v1036 = vadd.f32 0.0, %v1035
      %1037 = vdwg.mxu0
      %v1046 = vunpack.c.l.b16 %v813
      %v1047 = vunpack.c.l.b16 %v814
      %v1048 = vunpack.c.l.b16 %v815
      %v1049 = vunpack.c.l.b16 %v816
      %v1050 = vunpack.c.l.b16 %v817
      %v1051 = vunpack.c.l.b16 %v818
      %v1052 = vunpack.c.l.b16 %v819
      %v1053 = vunpack.c.l.b16 %v820
      %v1054 = vpack.c.b16 %v1047, %v1046
      %v1055 = vpack.c.b16 %v1049, %v1048
      %v1056 = vpack.c.b16 %v1051, %v1050
      %v1057 = vpack.c.b16 %v1053, %v1052
      %v1063 = vsel %vm334, %v797, 0
      %v1066 = vsel %vm334, %v798, 0
      %v1069 = vsel %vm334, %v799, 0
      %v1072 = vsel %vm334, %v800, 0
      %v1075 = vsel %vm334, %v801, 0
      %v1078 = vsel %vm334, %v802, 0
      %v1081 = vsel %vm334, %v803, 0
      %v1084 = vsel %vm334, %v804, 0
      %v1087 = vsel %vm334, %v805, 0
      %v1090 = vsel %vm334, %v806, 0
      %v1093 = vsel %vm334, %v807, 0
      %v1096 = vsel %vm334, %v808, 0
      %v1099 = vsel %vm334, %v809, 0
      %v1102 = vsel %vm334, %v810, 0
      %v1105 = vsel %vm334, %v811, 0
      %v1108 = vsel %vm334, %v812, 0
      %1110 = vmatpush.bf16.msra.mxu0 0
      %1111 = vmatpush.bf16.msra.mxu0 0
      %1112 = vmatpush.bf16.msra.mxu0 0
      %1113 = vmatpush.bf16.msra.mxu0 0
      %1114 = vmatpush.bf16.msra.mxu0 %v1057
      %1115 = vmatpush.bf16.msra.mxu0 %v1056
      %1116 = vmatpush.bf16.msra.mxu0 %v1055
      %1117 = vmatpush.bf16.msra.mxu0 %v1054
      %1118 = vmatmul.bf16.gmra.mxu0 %v1063
      %v1119 = vpop.f32.mrf.mxu0
      %v1120 = vadd.f32 %v959, %v1119
      %v1121 = vpop.f32.mrf.mxu0
      %v1122 = vadd.f32 %v961, %v1121
      %1123 = vmatmul.bf16.gmra.mxu0 %v1066
      %v1124 = vpop.f32.mrf.mxu0
      %v1125 = vadd.f32 %v964, %v1124
      %v1126 = vpop.f32.mrf.mxu0
      %v1127 = vadd.f32 %v966, %v1126
      %1128 = vmatmul.bf16.gmra.mxu0 %v1069
      %v1129 = vpop.f32.mrf.mxu0
      %v1130 = vadd.f32 %v969, %v1129
      %v1131 = vpop.f32.mrf.mxu0
      %v1132 = vadd.f32 %v971, %v1131
      %1133 = vmatmul.bf16.gmra.mxu0 %v1072
      %v1134 = vpop.f32.mrf.mxu0
      %v1135 = vadd.f32 %v974, %v1134
      %v1136 = vpop.f32.mrf.mxu0
      %v1137 = vadd.f32 %v976, %v1136
      %1138 = vmatmul.bf16.gmra.mxu0 %v1075
      %v1139 = vpop.f32.mrf.mxu0
      %v1140 = vadd.f32 %v979, %v1139
      %v1141 = vpop.f32.mrf.mxu0
      %v1142 = vadd.f32 %v981, %v1141
      %1143 = vmatmul.bf16.gmra.mxu0 %v1078
      %v1144 = vpop.f32.mrf.mxu0
      %v1145 = vadd.f32 %v984, %v1144
      %v1146 = vpop.f32.mrf.mxu0
      %v1147 = vadd.f32 %v986, %v1146
      %1148 = vmatmul.bf16.gmra.mxu0 %v1081
      %v1149 = vpop.f32.mrf.mxu0
      %v1150 = vadd.f32 %v989, %v1149
      %v1151 = vpop.f32.mrf.mxu0
      %v1152 = vadd.f32 %v991, %v1151
      %1153 = vmatmul.bf16.gmra.mxu0 %v1084
      %v1154 = vpop.f32.mrf.mxu0
      %v1155 = vadd.f32 %v994, %v1154
      %v1156 = vpop.f32.mrf.mxu0
      %v1157 = vadd.f32 %v996, %v1156
      %1158 = vmatmul.bf16.gmra.mxu0 %v1087
      %v1159 = vpop.f32.mrf.mxu0
      %v1160 = vadd.f32 %v999, %v1159
      %v1161 = vpop.f32.mrf.mxu0
      %v1162 = vadd.f32 %v1001, %v1161
      %1163 = vmatmul.bf16.gmra.mxu0 %v1090
      %v1164 = vpop.f32.mrf.mxu0
      %v1165 = vadd.f32 %v1004, %v1164
      %v1166 = vpop.f32.mrf.mxu0
      %v1167 = vadd.f32 %v1006, %v1166
      %1168 = vmatmul.bf16.gmra.mxu0 %v1093
      %v1169 = vpop.f32.mrf.mxu0
      %v1170 = vadd.f32 %v1009, %v1169
      %v1171 = vpop.f32.mrf.mxu0
      %v1172 = vadd.f32 %v1011, %v1171
      %1173 = vmatmul.bf16.gmra.mxu0 %v1096
      %v1174 = vpop.f32.mrf.mxu0
      %v1175 = vadd.f32 %v1014, %v1174
      %v1176 = vpop.f32.mrf.mxu0
      %v1177 = vadd.f32 %v1016, %v1176
      %1178 = vmatmul.bf16.gmra.mxu0 %v1099
      %v1179 = vpop.f32.mrf.mxu0
      %v1180 = vadd.f32 %v1019, %v1179
      %v1181 = vpop.f32.mrf.mxu0
      %v1182 = vadd.f32 %v1021, %v1181
      %1183 = vmatmul.bf16.gmra.mxu0 %v1102
      %v1184 = vpop.f32.mrf.mxu0
      %v1185 = vadd.f32 %v1024, %v1184
      %v1186 = vpop.f32.mrf.mxu0
      %v1187 = vadd.f32 %v1026, %v1186
      %1188 = vmatmul.bf16.gmra.mxu0 %v1105
      %v1189 = vpop.f32.mrf.mxu0
      %v1190 = vadd.f32 %v1029, %v1189
      %v1191 = vpop.f32.mrf.mxu0
      %v1192 = vadd.f32 %v1031, %v1191
      %1193 = vmatmul.bf16.gmra.mxu0 %v1108
      %v1194 = vpop.f32.mrf.mxu0
      %v1195 = vadd.f32 %v1034, %v1194
      %v1196 = vpop.f32.mrf.mxu0
      %v1197 = vadd.f32 %v1036, %v1196
      %1198 = vdwg.mxu0
      %v1199 = vld [vmem:[#allocation2 + $0x2] sm:$0xff]
      %v1200 = vld [vmem:[#allocation2 + $0xa] sm:$0xff]
      %v1201 = vld [vmem:[#allocation2 + $0x1a] sm:$0xff]
      %v1202 = vld [vmem:[#allocation2 + $0x22] sm:$0xff]
      %v1203 = vld [vmem:[#allocation2 + $0x32] sm:$0xff]
      %v1204 = vld [vmem:[#allocation2 + $0x3a] sm:$0xff]
      %v1205 = vld [vmem:[#allocation2 + $0x4a] sm:$0xff]
      %v1206 = vld [vmem:[#allocation2 + $0x52] sm:$0xff]
      %v1207 = vld [vmem:[#allocation2 + $0x62] sm:$0xff]
      %v1208 = vld [vmem:[#allocation2 + $0x6a] sm:$0xff]
      %v1209 = vld [vmem:[#allocation2 + $0x7a] sm:$0xff]
      %v1210 = vld [vmem:[#allocation2 + $0x82] sm:$0xff]
      %v1211 = vld [vmem:[#allocation2 + $0x92] sm:$0xff]
      %v1212 = vld [vmem:[#allocation2 + $0x9a] sm:$0xff]
      %v1213 = vld [vmem:[#allocation2 + $0xaa] sm:$0xff]
      %v1214 = vld [vmem:[#allocation2 + $0xb2] sm:$0xff]
      %v1215 = vld [vmem:[#allocation2 + $0xc2] sm:$0xff]
      %v1216 = vld [vmem:[#allocation2 + $0xca] sm:$0xff]
      %v1217 = vld [vmem:[#allocation2 + $0xda] sm:$0xff]
      %v1218 = vld [vmem:[#allocation2 + $0xe2] sm:$0xff]
      %v1219 = vld [vmem:[#allocation2 + $0xf2] sm:$0xff]
      %v1220 = vld [vmem:[#allocation2 + $0xfa] sm:$0xff]
      %v1221 = vld [vmem:[#allocation2 + $0x10a] sm:$0xff]
      %v1222 = vld [vmem:[#allocation2 + $0x112] sm:$0xff]
      %v1223 = vld [vmem:[#allocation2 + $0x122] sm:$0xff]
      %v1224 = vld [vmem:[#allocation2 + $0x12a] sm:$0xff]
      %v1225 = vld [vmem:[#allocation2 + $0x13a] sm:$0xff]
      %v1226 = vld [vmem:[#allocation2 + $0x142] sm:$0xff]
      %v1227 = vld [vmem:[#allocation2 + $0x152] sm:$0xff]
      %v1228 = vld [vmem:[#allocation2 + $0x15a] sm:$0xff]
      %v1229 = vld [vmem:[#allocation2 + $0x16a] sm:$0xff]
      %v1230 = vld [vmem:[#allocation2 + $0x172] sm:$0xff]
      %v1231 = vpack.c.bf16 %v1200, %v1199
      %v1232 = vpack.c.bf16 %v1202, %v1201
      %v1233 = vpack.c.bf16 %v1204, %v1203
      %v1234 = vpack.c.bf16 %v1206, %v1205
      %v1235 = vpack.c.bf16 %v1208, %v1207
      %v1236 = vpack.c.bf16 %v1210, %v1209
      %v1237 = vpack.c.bf16 %v1212, %v1211
      %v1238 = vpack.c.bf16 %v1214, %v1213
      %v1239 = vpack.c.bf16 %v1216, %v1215
      %v1240 = vpack.c.bf16 %v1218, %v1217
      %v1241 = vpack.c.bf16 %v1220, %v1219
      %v1242 = vpack.c.bf16 %v1222, %v1221
      %v1243 = vpack.c.bf16 %v1224, %v1223
      %v1244 = vpack.c.bf16 %v1226, %v1225
      %v1245 = vpack.c.bf16 %v1228, %v1227
      %v1246 = vpack.c.bf16 %v1230, %v1229
      %v1247 = vld [vmem:[%s3 + $0x40] sm:$0xf]
      %v1248 = vld [vmem:[%s3 + $0x44] sm:$0xf]
      %v1249 = vld [vmem:[%s3 + $0x48] sm:$0xf]
      %v1250 = vld [vmem:[%s3 + $0x4c] sm:$0xf]
      %v1251 = vld [vmem:[%s3 + $0x50] sm:$0xf]
      %v1252 = vld [vmem:[%s3 + $0x54] sm:$0xf]
      %v1253 = vld [vmem:[%s3 + $0x58] sm:$0xf]
      %v1254 = vld [vmem:[%s3 + $0x5c] sm:$0xf]
      %v1263 = vunpack.c.l.b16 %v1247
      %v1264 = vunpack.c.l.b16 %v1248
      %v1265 = vunpack.c.l.b16 %v1249
      %v1266 = vunpack.c.l.b16 %v1250
      %v1267 = vunpack.c.l.b16 %v1251
      %v1268 = vunpack.c.l.b16 %v1252
      %v1269 = vunpack.c.l.b16 %v1253
      %v1270 = vunpack.c.l.b16 %v1254
      %v1271 = vpack.c.b16 %v1264, %v1263
      %v1272 = vpack.c.b16 %v1266, %v1265
      %v1273 = vpack.c.b16 %v1268, %v1267
      %v1274 = vpack.c.b16 %v1270, %v1269
      %v1280 = vsel %vm334, %v1231, 0
      %v1283 = vsel %vm334, %v1232, 0
      %v1286 = vsel %vm334, %v1233, 0
      %v1289 = vsel %vm334, %v1234, 0
      %v1292 = vsel %vm334, %v1235, 0
      %v1295 = vsel %vm334, %v1236, 0
      %v1298 = vsel %vm334, %v1237, 0
      %v1301 = vsel %vm334, %v1238, 0
      %v1304 = vsel %vm334, %v1239, 0
      %v1307 = vsel %vm334, %v1240, 0
      %v1310 = vsel %vm334, %v1241, 0
      %v1313 = vsel %vm334, %v1242, 0
      %v1316 = vsel %vm334, %v1243, 0
      %v1319 = vsel %vm334, %v1244, 0
      %v1322 = vsel %vm334, %v1245, 0
      %v1325 = vsel %vm334, %v1246, 0
      %1327 = vmatpush.bf16.msra.mxu0 0
      %1328 = vmatpush.bf16.msra.mxu0 0
      %1329 = vmatpush.bf16.msra.mxu0 0
      %1330 = vmatpush.bf16.msra.mxu0 0
      %1331 = vmatpush.bf16.msra.mxu0 %v1274
      %1332 = vmatpush.bf16.msra.mxu0 %v1273
      %1333 = vmatpush.bf16.msra.mxu0 %v1272
      %1334 = vmatpush.bf16.msra.mxu0 %v1271
      %1335 = vmatmul.bf16.gmra.mxu0 %v1280
      %v1336 = vpop.f32.mrf.mxu0
      %v1337 = vadd.f32 0.0, %v1336
      %v1338 = vpop.f32.mrf.mxu0
      %v1339 = vadd.f32 0.0, %v1338
      %1340 = vmatmul.bf16.gmra.mxu0 %v1283
      %v1341 = vpop.f32.mrf.mxu0
      %v1342 = vadd.f32 0.0, %v1341
      %v1343 = vpop.f32.mrf.mxu0
      %v1344 = vadd.f32 0.0, %v1343
      %1345 = vmatmul.bf16.gmra.mxu0 %v1286
      %v1346 = vpop.f32.mrf.mxu0
      %v1347 = vadd.f32 0.0, %v1346
      %v1348 = vpop.f32.mrf.mxu0
      %v1349 = vadd.f32 0.0, %v1348
      %1350 = vmatmul.bf16.gmra.mxu0 %v1289
      %v1351 = vpop.f32.mrf.mxu0
      %v1352 = vadd.f32 0.0, %v1351
      %v1353 = vpop.f32.mrf.mxu0
      %v1354 = vadd.f32 0.0, %v1353
      %1355 = vmatmul.bf16.gmra.mxu0 %v1292
      %v1356 = vpop.f32.mrf.mxu0
      %v1357 = vadd.f32 0.0, %v1356
      %v1358 = vpop.f32.mrf.mxu0
      %v1359 = vadd.f32 0.0, %v1358
      %1360 = vmatmul.bf16.gmra.mxu0 %v1295
      %v1361 = vpop.f32.mrf.mxu0
      %v1362 = vadd.f32 0.0, %v1361
      %v1363 = vpop.f32.mrf.mxu0
      %v1364 = vadd.f32 0.0, %v1363
      %1365 = vmatmul.bf16.gmra.mxu0 %v1298
      %v1366 = vpop.f32.mrf.mxu0
      %v1367 = vadd.f32 0.0, %v1366
      %v1368 = vpop.f32.mrf.mxu0
      %v1369 = vadd.f32 0.0, %v1368
      %1370 = vmatmul.bf16.gmra.mxu0 %v1301
      %v1371 = vpop.f32.mrf.mxu0
      %v1372 = vadd.f32 0.0, %v1371
      %v1373 = vpop.f32.mrf.mxu0
      %v1374 = vadd.f32 0.0, %v1373
      %1375 = vmatmul.bf16.gmra.mxu0 %v1304
      %v1376 = vpop.f32.mrf.mxu0
      %v1377 = vadd.f32 0.0, %v1376
      %v1378 = vpop.f32.mrf.mxu0
      %v1379 = vadd.f32 0.0, %v1378
      %1380 = vmatmul.bf16.gmra.mxu0 %v1307
      %v1381 = vpop.f32.mrf.mxu0
      %v1382 = vadd.f32 0.0, %v1381
      %v1383 = vpop.f32.mrf.mxu0
      %v1384 = vadd.f32 0.0, %v1383
      %1385 = vmatmul.bf16.gmra.mxu0 %v1310
      %v1386 = vpop.f32.mrf.mxu0
      %v1387 = vadd.f32 0.0, %v1386
      %v1388 = vpop.f32.mrf.mxu0
      %v1389 = vadd.f32 0.0, %v1388
      %1390 = vmatmul.bf16.gmra.mxu0 %v1313
      %v1391 = vpop.f32.mrf.mxu0
      %v1392 = vadd.f32 0.0, %v1391
      %v1393 = vpop.f32.mrf.mxu0
      %v1394 = vadd.f32 0.0, %v1393
      %1395 = vmatmul.bf16.gmra.mxu0 %v1316
      %v1396 = vpop.f32.mrf.mxu0
      %v1397 = vadd.f32 0.0, %v1396
      %v1398 = vpop.f32.mrf.mxu0
      %v1399 = vadd.f32 0.0, %v1398
      %1400 = vmatmul.bf16.gmra.mxu0 %v1319
      %v1401 = vpop.f32.mrf.mxu0
      %v1402 = vadd.f32 0.0, %v1401
      %v1403 = vpop.f32.mrf.mxu0
      %v1404 = vadd.f32 0.0, %v1403
      %1405 = vmatmul.bf16.gmra.mxu0 %v1322
      %v1406 = vpop.f32.mrf.mxu0
      %v1407 = vadd.f32 0.0, %v1406
      %v1408 = vpop.f32.mrf.mxu0
      %v1409 = vadd.f32 0.0, %v1408
      %1410 = vmatmul.bf16.gmra.mxu0 %v1325
      %v1411 = vpop.f32.mrf.mxu0
      %v1412 = vadd.f32 0.0, %v1411
      %v1413 = vpop.f32.mrf.mxu0
      %v1414 = vadd.f32 0.0, %v1413
      %1415 = vdwg.mxu0
      %v1416 = vadd.f32 %v1120, %v1337
      %v1417 = vadd.f32 %v1122, %v1339
      %v1418 = vadd.f32 %v1125, %v1342
      %v1419 = vadd.f32 %v1127, %v1344
      %v1420 = vadd.f32 %v1130, %v1347
      %v1421 = vadd.f32 %v1132, %v1349
      %v1422 = vadd.f32 %v1135, %v1352
      %v1423 = vadd.f32 %v1137, %v1354
      %v1424 = vadd.f32 %v1140, %v1357
      %v1425 = vadd.f32 %v1142, %v1359
      %v1426 = vadd.f32 %v1145, %v1362
      %v1427 = vadd.f32 %v1147, %v1364
      %v1428 = vadd.f32 %v1150, %v1367
      %v1429 = vadd.f32 %v1152, %v1369
      %v1430 = vadd.f32 %v1155, %v1372
      %v1431 = vadd.f32 %v1157, %v1374
      %v1432 = vadd.f32 %v1160, %v1377
      %v1433 = vadd.f32 %v1162, %v1379
      %v1434 = vadd.f32 %v1165, %v1382
      %v1435 = vadd.f32 %v1167, %v1384
      %v1436 = vadd.f32 %v1170, %v1387
      %v1437 = vadd.f32 %v1172, %v1389
      %v1438 = vadd.f32 %v1175, %v1392
      %v1439 = vadd.f32 %v1177, %v1394
      %v1440 = vadd.f32 %v1180, %v1397
      %v1441 = vadd.f32 %v1182, %v1399
      %v1442 = vadd.f32 %v1185, %v1402
      %v1443 = vadd.f32 %v1187, %v1404
      %v1444 = vadd.f32 %v1190, %v1407
      %v1445 = vadd.f32 %v1192, %v1409
      %v1446 = vadd.f32 %v1195, %v1412
      %v1447 = vadd.f32 %v1197, %v1414
      %v1448 = vld [vmem:[%s732] sm:$0xff]
      %v1449 = vld [vmem:[%s732 + $0x8] sm:$0xff]
      %v1450 = vld [vmem:[%s732 + $0x18] sm:$0xff]
      %v1451 = vld [vmem:[%s732 + $0x20] sm:$0xff]
      %v1452 = vld [vmem:[%s732 + $0x30] sm:$0xff]
      %v1453 = vld [vmem:[%s732 + $0x38] sm:$0xff]
      %v1454 = vld [vmem:[%s732 + $0x48] sm:$0xff]
      %v1455 = vld [vmem:[%s732 + $0x50] sm:$0xff]
      %v1456 = vld [vmem:[%s732 + $0x60] sm:$0xff]
      %v1457 = vld [vmem:[%s732 + $0x68] sm:$0xff]
      %v1458 = vld [vmem:[%s732 + $0x78] sm:$0xff]
      %v1459 = vld [vmem:[%s732 + $0x80] sm:$0xff]
      %v1460 = vld [vmem:[%s732 + $0x90] sm:$0xff]
      %v1461 = vld [vmem:[%s732 + $0x98] sm:$0xff]
      %v1462 = vld [vmem:[%s732 + $0xa8] sm:$0xff]
      %v1463 = vld [vmem:[%s732 + $0xb0] sm:$0xff]
      %v1464 = vld [vmem:[%s732 + $0xc0] sm:$0xff]
      %v1465 = vld [vmem:[%s732 + $0xc8] sm:$0xff]
      %v1466 = vld [vmem:[%s732 + $0xd8] sm:$0xff]
      %v1467 = vld [vmem:[%s732 + $0xe0] sm:$0xff]
      %v1468 = vld [vmem:[%s732 + $0xf0] sm:$0xff]
      %v1469 = vld [vmem:[%s732 + $0xf8] sm:$0xff]
      %v1470 = vld [vmem:[%s732 + $0x108] sm:$0xff]
      %v1471 = vld [vmem:[%s732 + $0x110] sm:$0xff]
      %v1472 = vld [vmem:[%s732 + $0x120] sm:$0xff]
      %v1473 = vld [vmem:[%s732 + $0x128] sm:$0xff]
      %v1474 = vld [vmem:[%s732 + $0x138] sm:$0xff]
      %v1475 = vld [vmem:[%s732 + $0x140] sm:$0xff]
      %v1476 = vld [vmem:[%s732 + $0x150] sm:$0xff]
      %v1477 = vld [vmem:[%s732 + $0x158] sm:$0xff]
      %v1478 = vld [vmem:[%s732 + $0x168] sm:$0xff]
      %v1479 = vld [vmem:[%s732 + $0x170] sm:$0xff]
      %v1480 = vpack.c.bf16 %v1449, %v1448
      %v1481 = vpack.c.bf16 %v1451, %v1450
      %v1482 = vpack.c.bf16 %v1453, %v1452
      %v1483 = vpack.c.bf16 %v1455, %v1454
      %v1484 = vpack.c.bf16 %v1457, %v1456
      %v1485 = vpack.c.bf16 %v1459, %v1458
      %v1486 = vpack.c.bf16 %v1461, %v1460
      %v1487 = vpack.c.bf16 %v1463, %v1462
      %v1488 = vpack.c.bf16 %v1465, %v1464
      %v1489 = vpack.c.bf16 %v1467, %v1466
      %v1490 = vpack.c.bf16 %v1469, %v1468
      %v1491 = vpack.c.bf16 %v1471, %v1470
      %v1492 = vpack.c.bf16 %v1473, %v1472
      %v1493 = vpack.c.bf16 %v1475, %v1474
      %v1494 = vpack.c.bf16 %v1477, %v1476
      %v1495 = vpack.c.bf16 %v1479, %v1478
      %v1496 = vld [vmem:[%s3 + $0x60] sm:$0xf]
      %v1497 = vld [vmem:[%s3 + $0x64] sm:$0xf]
      %v1498 = vld [vmem:[%s3 + $0x68] sm:$0xf]
      %v1499 = vld [vmem:[%s3 + $0x6c] sm:$0xf]
      %v1500 = vld [vmem:[%s3 + $0x70] sm:$0xf]
      %v1501 = vld [vmem:[%s3 + $0x74] sm:$0xf]
      %v1502 = vld [vmem:[%s3 + $0x78] sm:$0xf]
      %v1503 = vld [vmem:[%s3 + $0x7c] sm:$0xf]
      %v1512 = vunpack.c.l.b16 %v1496
      %v1513 = vunpack.c.l.b16 %v1497
      %v1514 = vunpack.c.l.b16 %v1498
      %v1515 = vunpack.c.l.b16 %v1499
      %v1516 = vunpack.c.l.b16 %v1500
      %v1517 = vunpack.c.l.b16 %v1501
      %v1518 = vunpack.c.l.b16 %v1502
      %v1519 = vunpack.c.l.b16 %v1503
      %v1520 = vpack.c.b16 %v1513, %v1512
      %v1521 = vpack.c.b16 %v1515, %v1514
      %v1522 = vpack.c.b16 %v1517, %v1516
      %v1523 = vpack.c.b16 %v1519, %v1518
      %v1529 = vsel %vm334, %v1480, 0
      %v1532 = vsel %vm334, %v1481, 0
      %v1535 = vsel %vm334, %v1482, 0
      %v1538 = vsel %vm334, %v1483, 0
      %v1541 = vsel %vm334, %v1484, 0
      %v1544 = vsel %vm334, %v1485, 0
      %v1547 = vsel %vm334, %v1486, 0
      %v1550 = vsel %vm334, %v1487, 0
      %v1553 = vsel %vm334, %v1488, 0
      %v1556 = vsel %vm334, %v1489, 0
      %v1559 = vsel %vm334, %v1490, 0
      %v1562 = vsel %vm334, %v1491, 0
      %v1565 = vsel %vm334, %v1492, 0
      %v1568 = vsel %vm334, %v1493, 0
      %v1571 = vsel %vm334, %v1494, 0
      %v1574 = vsel %vm334, %v1495, 0
      %1576 = vmatpush.bf16.msra.mxu0 0
      %1577 = vmatpush.bf16.msra.mxu0 0
      %1578 = vmatpush.bf16.msra.mxu0 0
      %1579 = vmatpush.bf16.msra.mxu0 0
      %1580 = vmatpush.bf16.msra.mxu0 %v1523
      %1581 = vmatpush.bf16.msra.mxu0 %v1522
      %1582 = vmatpush.bf16.msra.mxu0 %v1521
      %1583 = vmatpush.bf16.msra.mxu0 %v1520
      %1584 = vmatmul.bf16.gmra.mxu0 %v1529
      %v1585 = vpop.f32.mrf.mxu0
      %v1586 = vadd.f32 0.0, %v1585
      %v1587 = vpop.f32.mrf.mxu0
      %v1588 = vadd.f32 0.0, %v1587
      %1589 = vmatmul.bf16.gmra.mxu0 %v1532
      %v1590 = vpop.f32.mrf.mxu0
      %v1591 = vadd.f32 0.0, %v1590
      %v1592 = vpop.f32.mrf.mxu0
      %v1593 = vadd.f32 0.0, %v1592
      %1594 = vmatmul.bf16.gmra.mxu0 %v1535
      %v1595 = vpop.f32.mrf.mxu0
      %v1596 = vadd.f32 0.0, %v1595
      %v1597 = vpop.f32.mrf.mxu0
      %v1598 = vadd.f32 0.0, %v1597
      %1599 = vmatmul.bf16.gmra.mxu0 %v1538
      %v1600 = vpop.f32.mrf.mxu0
      %v1601 = vadd.f32 0.0, %v1600
      %v1602 = vpop.f32.mrf.mxu0
      %v1603 = vadd.f32 0.0, %v1602
      %1604 = vmatmul.bf16.gmra.mxu0 %v1541
      %v1605 = vpop.f32.mrf.mxu0
      %v1606 = vadd.f32 0.0, %v1605
      %v1607 = vpop.f32.mrf.mxu0
      %v1608 = vadd.f32 0.0, %v1607
      %1609 = vmatmul.bf16.gmra.mxu0 %v1544
      %v1610 = vpop.f32.mrf.mxu0
      %v1611 = vadd.f32 0.0, %v1610
      %v1612 = vpop.f32.mrf.mxu0
      %v1613 = vadd.f32 0.0, %v1612
      %1614 = vmatmul.bf16.gmra.mxu0 %v1547
      %v1615 = vpop.f32.mrf.mxu0
      %v1616 = vadd.f32 0.0, %v1615
      %v1617 = vpop.f32.mrf.mxu0
      %v1618 = vadd.f32 0.0, %v1617
      %1619 = vmatmul.bf16.gmra.mxu0 %v1550
      %v1620 = vpop.f32.mrf.mxu0
      %v1621 = vadd.f32 0.0, %v1620
      %v1622 = vpop.f32.mrf.mxu0
      %v1623 = vadd.f32 0.0, %v1622
      %1624 = vmatmul.bf16.gmra.mxu0 %v1553
      %v1625 = vpop.f32.mrf.mxu0
      %v1626 = vadd.f32 0.0, %v1625
      %v1627 = vpop.f32.mrf.mxu0
      %v1628 = vadd.f32 0.0, %v1627
      %1629 = vmatmul.bf16.gmra.mxu0 %v1556
      %v1630 = vpop.f32.mrf.mxu0
      %v1631 = vadd.f32 0.0, %v1630
      %v1632 = vpop.f32.mrf.mxu0
      %v1633 = vadd.f32 0.0, %v1632
      %1634 = vmatmul.bf16.gmra.mxu0 %v1559
      %v1635 = vpop.f32.mrf.mxu0
      %v1636 = vadd.f32 0.0, %v1635
      %v1637 = vpop.f32.mrf.mxu0
      %v1638 = vadd.f32 0.0, %v1637
      %1639 = vmatmul.bf16.gmra.mxu0 %v1562
      %v1640 = vpop.f32.mrf.mxu0
      %v1641 = vadd.f32 0.0, %v1640
      %v1642 = vpop.f32.mrf.mxu0
      %v1643 = vadd.f32 0.0, %v1642
      %1644 = vmatmul.bf16.gmra.mxu0 %v1565
      %v1645 = vpop.f32.mrf.mxu0
      %v1646 = vadd.f32 0.0, %v1645
      %v1647 = vpop.f32.mrf.mxu0
      %v1648 = vadd.f32 0.0, %v1647
      %1649 = vmatmul.bf16.gmra.mxu0 %v1568
      %v1650 = vpop.f32.mrf.mxu0
      %v1651 = vadd.f32 0.0, %v1650
      %v1652 = vpop.f32.mrf.mxu0
      %v1653 = vadd.f32 0.0, %v1652
      %1654 = vmatmul.bf16.gmra.mxu0 %v1571
      %v1655 = vpop.f32.mrf.mxu0
      %v1656 = vadd.f32 0.0, %v1655
      %v1657 = vpop.f32.mrf.mxu0
      %v1658 = vadd.f32 0.0, %v1657
      %1659 = vmatmul.bf16.gmra.mxu0 %v1574
      %v1660 = vpop.f32.mrf.mxu0
      %v1661 = vadd.f32 0.0, %v1660
      %v1662 = vpop.f32.mrf.mxu0
      %v1663 = vadd.f32 0.0, %v1662
      %1664 = vdwg.mxu0
      %v1665 = vadd.f32 %v1416, %v1586
      %v1666 = vadd.f32 %v1417, %v1588
      %v1667 = vadd.f32 %v1418, %v1591
      %v1668 = vadd.f32 %v1419, %v1593
      %v1669 = vadd.f32 %v1420, %v1596
      %v1670 = vadd.f32 %v1421, %v1598
      %v1671 = vadd.f32 %v1422, %v1601
      %v1672 = vadd.f32 %v1423, %v1603
      %v1673 = vadd.f32 %v1424, %v1606
      %v1674 = vadd.f32 %v1425, %v1608
      %v1675 = vadd.f32 %v1426, %v1611
      %v1676 = vadd.f32 %v1427, %v1613
      %v1677 = vadd.f32 %v1428, %v1616
      %v1678 = vadd.f32 %v1429, %v1618
      %v1679 = vadd.f32 %v1430, %v1621
      %v1680 = vadd.f32 %v1431, %v1623
      %v1681 = vadd.f32 %v1432, %v1626
      %v1682 = vadd.f32 %v1433, %v1628
      %v1683 = vadd.f32 %v1434, %v1631
      %v1684 = vadd.f32 %v1435, %v1633
      %v1685 = vadd.f32 %v1436, %v1636
      %v1686 = vadd.f32 %v1437, %v1638
      %v1687 = vadd.f32 %v1438, %v1641
      %v1688 = vadd.f32 %v1439, %v1643
      %v1689 = vadd.f32 %v1440, %v1646
      %v1690 = vadd.f32 %v1441, %v1648
      %v1691 = vadd.f32 %v1442, %v1651
      %v1692 = vadd.f32 %v1443, %v1653
      %v1693 = vadd.f32 %v1444, %v1656
      %v1694 = vadd.f32 %v1445, %v1658
      %v1695 = vadd.f32 %v1446, %v1661
      %v1696 = vadd.f32 %v1447, %v1663
      %v1697 = vld [vmem:[%s732 + $0x1] sm:$0xff]
      %v1698 = vld [vmem:[%s732 + $0x9] sm:$0xff]
      %v1699 = vld [vmem:[%s732 + $0x19] sm:$0xff]
      %v1700 = vld [vmem:[%s732 + $0x21] sm:$0xff]
      %v1701 = vld [vmem:[%s732 + $0x31] sm:$0xff]
      %v1702 = vld [vmem:[%s732 + $0x39] sm:$0xff]
      %v1703 = vld [vmem:[%s732 + $0x49] sm:$0xff]
      %v1704 = vld [vmem:[%s732 + $0x51] sm:$0xff]
      %v1705 = vld [vmem:[%s732 + $0x61] sm:$0xff]
      %v1706 = vld [vmem:[%s732 + $0x69] sm:$0xff]
      %v1707 = vld [vmem:[%s732 + $0x79] sm:$0xff]
      %v1708 = vld [vmem:[%s732 + $0x81] sm:$0xff]
      %v1709 = vld [vmem:[%s732 + $0x91] sm:$0xff]
      %v1710 = vld [vmem:[%s732 + $0x99] sm:$0xff]
      %v1711 = vld [vmem:[%s732 + $0xa9] sm:$0xff]
      %v1712 = vld [vmem:[%s732 + $0xb1] sm:$0xff]
      %v1713 = vld [vmem:[%s732 + $0xc1] sm:$0xff]
      %v1714 = vld [vmem:[%s732 + $0xc9] sm:$0xff]
      %v1715 = vld [vmem:[%s732 + $0xd9] sm:$0xff]
      %v1716 = vld [vmem:[%s732 + $0xe1] sm:$0xff]
      %v1717 = vld [vmem:[%s732 + $0xf1] sm:$0xff]
      %v1718 = vld [vmem:[%s732 + $0xf9] sm:$0xff]
      %v1719 = vld [vmem:[%s732 + $0x109] sm:$0xff]
      %v1720 = vld [vmem:[%s732 + $0x111] sm:$0xff]
      %v1721 = vld [vmem:[%s732 + $0x121] sm:$0xff]
      %v1722 = vld [vmem:[%s732 + $0x129] sm:$0xff]
      %v1723 = vld [vmem:[%s732 + $0x139] sm:$0xff]
      %v1724 = vld [vmem:[%s732 + $0x141] sm:$0xff]
      %v1725 = vld [vmem:[%s732 + $0x151] sm:$0xff]
      %v1726 = vld [vmem:[%s732 + $0x159] sm:$0xff]
      %v1727 = vld [vmem:[%s732 + $0x169] sm:$0xff]
      %v1728 = vld [vmem:[%s732 + $0x171] sm:$0xff]
      %v1729 = vpack.c.bf16 %v1698, %v1697
      %v1730 = vpack.c.bf16 %v1700, %v1699
      %v1731 = vpack.c.bf16 %v1702, %v1701
      %v1732 = vpack.c.bf16 %v1704, %v1703
      %v1733 = vpack.c.bf16 %v1706, %v1705
      %v1734 = vpack.c.bf16 %v1708, %v1707
      %v1735 = vpack.c.bf16 %v1710, %v1709
      %v1736 = vpack.c.bf16 %v1712, %v1711
      %v1737 = vpack.c.bf16 %v1714, %v1713
      %v1738 = vpack.c.bf16 %v1716, %v1715
      %v1739 = vpack.c.bf16 %v1718, %v1717
      %v1740 = vpack.c.bf16 %v1720, %v1719
      %v1741 = vpack.c.bf16 %v1722, %v1721
      %v1742 = vpack.c.bf16 %v1724, %v1723
      %v1743 = vpack.c.bf16 %v1726, %v1725
      %v1744 = vpack.c.bf16 %v1728, %v1727
      %v1745 = vld [vmem:[%s3 + $0x80] sm:$0xf]
      %v1746 = vld [vmem:[%s3 + $0x84] sm:$0xf]
      %v1747 = vld [vmem:[%s3 + $0x88] sm:$0xf]
      %v1748 = vld [vmem:[%s3 + $0x8c] sm:$0xf]
      %v1749 = vld [vmem:[%s3 + $0x90] sm:$0xf]
      %v1750 = vld [vmem:[%s3 + $0x94] sm:$0xf]
      %v1751 = vld [vmem:[%s3 + $0x98] sm:$0xf]
      %v1752 = vld [vmem:[%s3 + $0x9c] sm:$0xf]
      %v1761 = vunpack.c.l.b16 %v1745
      %v1762 = vunpack.c.l.b16 %v1746
      %v1763 = vunpack.c.l.b16 %v1747
      %v1764 = vunpack.c.l.b16 %v1748
      %v1765 = vunpack.c.l.b16 %v1749
      %v1766 = vunpack.c.l.b16 %v1750
      %v1767 = vunpack.c.l.b16 %v1751
      %v1768 = vunpack.c.l.b16 %v1752
      %v1769 = vpack.c.b16 %v1762, %v1761
      %v1770 = vpack.c.b16 %v1764, %v1763
      %v1771 = vpack.c.b16 %v1766, %v1765
      %v1772 = vpack.c.b16 %v1768, %v1767
      %v1778 = vsel %vm334, %v1729, 0
      %v1781 = vsel %vm334, %v1730, 0
      %v1784 = vsel %vm334, %v1731, 0
      %v1787 = vsel %vm334, %v1732, 0
      %v1790 = vsel %vm334, %v1733, 0
      %v1793 = vsel %vm334, %v1734, 0
      %v1796 = vsel %vm334, %v1735, 0
      %v1799 = vsel %vm334, %v1736, 0
      %v1802 = vsel %vm334, %v1737, 0
      %v1805 = vsel %vm334, %v1738, 0
      %v1808 = vsel %vm334, %v1739, 0
      %v1811 = vsel %vm334, %v1740, 0
      %v1814 = vsel %vm334, %v1741, 0
      %v1817 = vsel %vm334, %v1742, 0
      %v1820 = vsel %vm334, %v1743, 0
      %v1823 = vsel %vm334, %v1744, 0
      %1825 = vmatpush.bf16.msra.mxu0 0
      %1826 = vmatpush.bf16.msra.mxu0 0
      %1827 = vmatpush.bf16.msra.mxu0 0
      %1828 = vmatpush.bf16.msra.mxu0 0
      %1829 = vmatpush.bf16.msra.mxu0 %v1772
      %1830 = vmatpush.bf16.msra.mxu0 %v1771
      %1831 = vmatpush.bf16.msra.mxu0 %v1770
      %1832 = vmatpush.bf16.msra.mxu0 %v1769
      %1833 = vmatmul.bf16.gmra.mxu0 %v1778
      %v1834 = vpop.f32.mrf.mxu0
      %v1835 = vadd.f32 0.0, %v1834
      %v1836 = vpop.f32.mrf.mxu0
      %v1837 = vadd.f32 0.0, %v1836
      %1838 = vmatmul.bf16.gmra.mxu0 %v1781
      %v1839 = vpop.f32.mrf.mxu0
      %v1840 = vadd.f32 0.0, %v1839
      %v1841 = vpop.f32.mrf.mxu0
      %v1842 = vadd.f32 0.0, %v1841
      %1843 = vmatmul.bf16.gmra.mxu0 %v1784
      %v1844 = vpop.f32.mrf.mxu0
      %v1845 = vadd.f32 0.0, %v1844
      %v1846 = vpop.f32.mrf.mxu0
      %v1847 = vadd.f32 0.0, %v1846
      %1848 = vmatmul.bf16.gmra.mxu0 %v1787
      %v1849 = vpop.f32.mrf.mxu0
      %v1850 = vadd.f32 0.0, %v1849
      %v1851 = vpop.f32.mrf.mxu0
      %v1852 = vadd.f32 0.0, %v1851
      %1853 = vmatmul.bf16.gmra.mxu0 %v1790
      %v1854 = vpop.f32.mrf.mxu0
      %v1855 = vadd.f32 0.0, %v1854
      %v1856 = vpop.f32.mrf.mxu0
      %v1857 = vadd.f32 0.0, %v1856
      %1858 = vmatmul.bf16.gmra.mxu0 %v1793
      %v1859 = vpop.f32.mrf.mxu0
      %v1860 = vadd.f32 0.0, %v1859
      %v1861 = vpop.f32.mrf.mxu0
      %v1862 = vadd.f32 0.0, %v1861
      %1863 = vmatmul.bf16.gmra.mxu0 %v1796
      %v1864 = vpop.f32.mrf.mxu0
      %v1865 = vadd.f32 0.0, %v1864
      %v1866 = vpop.f32.mrf.mxu0
      %v1867 = vadd.f32 0.0, %v1866
      %1868 = vmatmul.bf16.gmra.mxu0 %v1799
      %v1869 = vpop.f32.mrf.mxu0
      %v1870 = vadd.f32 0.0, %v1869
      %v1871 = vpop.f32.mrf.mxu0
      %v1872 = vadd.f32 0.0, %v1871
      %1873 = vmatmul.bf16.gmra.mxu0 %v1802
      %v1874 = vpop.f32.mrf.mxu0
      %v1875 = vadd.f32 0.0, %v1874
      %v1876 = vpop.f32.mrf.mxu0
      %v1877 = vadd.f32 0.0, %v1876
      %1878 = vmatmul.bf16.gmra.mxu0 %v1805
      %v1879 = vpop.f32.mrf.mxu0
      %v1880 = vadd.f32 0.0, %v1879
      %v1881 = vpop.f32.mrf.mxu0
      %v1882 = vadd.f32 0.0, %v1881
      %1883 = vmatmul.bf16.gmra.mxu0 %v1808
      %v1884 = vpop.f32.mrf.mxu0
      %v1885 = vadd.f32 0.0, %v1884
      %v1886 = vpop.f32.mrf.mxu0
      %v1887 = vadd.f32 0.0, %v1886
      %1888 = vmatmul.bf16.gmra.mxu0 %v1811
      %v1889 = vpop.f32.mrf.mxu0
      %v1890 = vadd.f32 0.0, %v1889
      %v1891 = vpop.f32.mrf.mxu0
      %v1892 = vadd.f32 0.0, %v1891
      %1893 = vmatmul.bf16.gmra.mxu0 %v1814
      %v1894 = vpop.f32.mrf.mxu0
      %v1895 = vadd.f32 0.0, %v1894
      %v1896 = vpop.f32.mrf.mxu0
      %v1897 = vadd.f32 0.0, %v1896
      %1898 = vmatmul.bf16.gmra.mxu0 %v1817
      %v1899 = vpop.f32.mrf.mxu0
      %v1900 = vadd.f32 0.0, %v1899
      %v1901 = vpop.f32.mrf.mxu0
      %v1902 = vadd.f32 0.0, %v1901
      %1903 = vmatmul.bf16.gmra.mxu0 %v1820
      %v1904 = vpop.f32.mrf.mxu0
      %v1905 = vadd.f32 0.0, %v1904
      %v1906 = vpop.f32.mrf.mxu0
      %v1907 = vadd.f32 0.0, %v1906
      %1908 = vmatmul.bf16.gmra.mxu0 %v1823
      %v1909 = vpop.f32.mrf.mxu0
      %v1910 = vadd.f32 0.0, %v1909
      %v1911 = vpop.f32.mrf.mxu0
      %v1912 = vadd.f32 0.0, %v1911
      %1913 = vdwg.mxu0
      %v1914 = vadd.f32 %v1665, %v1835
      %v1915 = vadd.f32 %v1666, %v1837
      %v1916 = vadd.f32 %v1667, %v1840
      %v1917 = vadd.f32 %v1668, %v1842
      %v1918 = vadd.f32 %v1669, %v1845
      %v1919 = vadd.f32 %v1670, %v1847
      %v1920 = vadd.f32 %v1671, %v1850
      %v1921 = vadd.f32 %v1672, %v1852
      %v1922 = vadd.f32 %v1673, %v1855
      %v1923 = vadd.f32 %v1674, %v1857
      %v1924 = vadd.f32 %v1675, %v1860
      %v1925 = vadd.f32 %v1676, %v1862
      %v1926 = vadd.f32 %v1677, %v1865
      %v1927 = vadd.f32 %v1678, %v1867
      %v1928 = vadd.f32 %v1679, %v1870
      %v1929 = vadd.f32 %v1680, %v1872
      %v1930 = vadd.f32 %v1681, %v1875
      %v1931 = vadd.f32 %v1682, %v1877
      %v1932 = vadd.f32 %v1683, %v1880
      %v1933 = vadd.f32 %v1684, %v1882
      %v1934 = vadd.f32 %v1685, %v1885
      %v1935 = vadd.f32 %v1686, %v1887
      %v1936 = vadd.f32 %v1687, %v1890
      %v1937 = vadd.f32 %v1688, %v1892
      %v1938 = vadd.f32 %v1689, %v1895
      %v1939 = vadd.f32 %v1690, %v1897
      %v1940 = vadd.f32 %v1691, %v1900
      %v1941 = vadd.f32 %v1692, %v1902
      %v1942 = vadd.f32 %v1693, %v1905
      %v1943 = vadd.f32 %v1694, %v1907
      %v1944 = vadd.f32 %v1695, %v1910
      %v1945 = vadd.f32 %v1696, %v1912
      %v1946 = vld [vmem:[%s732 + $0x2] sm:$0xff]
      %v1947 = vld [vmem:[%s732 + $0xa] sm:$0xff]
      %v1948 = vld [vmem:[%s732 + $0x1a] sm:$0xff]
      %v1949 = vld [vmem:[%s732 + $0x22] sm:$0xff]
      %v1950 = vld [vmem:[%s732 + $0x32] sm:$0xff]
      %v1951 = vld [vmem:[%s732 + $0x3a] sm:$0xff]
      %v1952 = vld [vmem:[%s732 + $0x4a] sm:$0xff]
      %v1953 = vld [vmem:[%s732 + $0x52] sm:$0xff]
      %v1954 = vld [vmem:[%s732 + $0x62] sm:$0xff]
      %v1955 = vld [vmem:[%s732 + $0x6a] sm:$0xff]
      %v1956 = vld [vmem:[%s732 + $0x7a] sm:$0xff]
      %v1957 = vld [vmem:[%s732 + $0x82] sm:$0xff]
      %v1958 = vld [vmem:[%s732 + $0x92] sm:$0xff]
      %v1959 = vld [vmem:[%s732 + $0x9a] sm:$0xff]
      %v1960 = vld [vmem:[%s732 + $0xaa] sm:$0xff]
      %v1961 = vld [vmem:[%s732 + $0xb2] sm:$0xff]
      %v1962 = vld [vmem:[%s732 + $0xc2] sm:$0xff]
      %v1963 = vld [vmem:[%s732 + $0xca] sm:$0xff]
      %v1964 = vld [vmem:[%s732 + $0xda] sm:$0xff]
      %v1965 = vld [vmem:[%s732 + $0xe2] sm:$0xff]
      %v1966 = vld [vmem:[%s732 + $0xf2] sm:$0xff]
      %v1967 = vld [vmem:[%s732 + $0xfa] sm:$0xff]
      %v1968 = vld [vmem:[%s732 + $0x10a] sm:$0xff]
      %v1969 = vld [vmem:[%s732 + $0x112] sm:$0xff]
      %v1970 = vld [vmem:[%s732 + $0x122] sm:$0xff]
      %v1971 = vld [vmem:[%s732 + $0x12a] sm:$0xff]
      %v1972 = vld [vmem:[%s732 + $0x13a] sm:$0xff]
      %v1973 = vld [vmem:[%s732 + $0x142] sm:$0xff]
      %v1974 = vld [vmem:[%s732 + $0x152] sm:$0xff]
      %v1975 = vld [vmem:[%s732 + $0x15a] sm:$0xff]
      %v1976 = vld [vmem:[%s732 + $0x16a] sm:$0xff]
      %v1977 = vld [vmem:[%s732 + $0x172] sm:$0xff]
      %v1978 = vpack.c.bf16 %v1947, %v1946
      %v1979 = vpack.c.bf16 %v1949, %v1948
      %v1980 = vpack.c.bf16 %v1951, %v1950
      %v1981 = vpack.c.bf16 %v1953, %v1952
      %v1982 = vpack.c.bf16 %v1955, %v1954
      %v1983 = vpack.c.bf16 %v1957, %v1956
      %v1984 = vpack.c.bf16 %v1959, %v1958
      %v1985 = vpack.c.bf16 %v1961, %v1960
      %v1986 = vpack.c.bf16 %v1963, %v1962
      %v1987 = vpack.c.bf16 %v1965, %v1964
      %v1988 = vpack.c.bf16 %v1967, %v1966
      %v1989 = vpack.c.bf16 %v1969, %v1968
      %v1990 = vpack.c.bf16 %v1971, %v1970
      %v1991 = vpack.c.bf16 %v1973, %v1972
      %v1992 = vpack.c.bf16 %v1975, %v1974
      %v1993 = vpack.c.bf16 %v1977, %v1976
      %v1994 = vld [vmem:[%s3 + $0xa0] sm:$0xf]
      %v1995 = vld [vmem:[%s3 + $0xa4] sm:$0xf]
      %v1996 = vld [vmem:[%s3 + $0xa8] sm:$0xf]
      %v1997 = vld [vmem:[%s3 + $0xac] sm:$0xf]
      %v1998 = vld [vmem:[%s3 + $0xb0] sm:$0xf]
      %v1999 = vld [vmem:[%s3 + $0xb4] sm:$0xf]
      %v2000 = vld [vmem:[%s3 + $0xb8] sm:$0xf]
      %v2001 = vld [vmem:[%s3 + $0xbc] sm:$0xf]
      %v2010 = vunpack.c.l.b16 %v1994
      %v2011 = vunpack.c.l.b16 %v1995
      %v2012 = vunpack.c.l.b16 %v1996
      %v2013 = vunpack.c.l.b16 %v1997
      %v2014 = vunpack.c.l.b16 %v1998
      %v2015 = vunpack.c.l.b16 %v1999
      %v2016 = vunpack.c.l.b16 %v2000
      %v2017 = vunpack.c.l.b16 %v2001
      %v2018 = vpack.c.b16 %v2011, %v2010
      %v2019 = vpack.c.b16 %v2013, %v2012
      %v2020 = vpack.c.b16 %v2015, %v2014
      %v2021 = vpack.c.b16 %v2017, %v2016
      %v2027 = vsel %vm334, %v1978, 0
      %v2030 = vsel %vm334, %v1979, 0
      %v2033 = vsel %vm334, %v1980, 0
      %v2036 = vsel %vm334, %v1981, 0
      %v2039 = vsel %vm334, %v1982, 0
      %v2042 = vsel %vm334, %v1983, 0
      %v2045 = vsel %vm334, %v1984, 0
      %v2048 = vsel %vm334, %v1985, 0
      %v2051 = vsel %vm334, %v1986, 0
      %v2054 = vsel %vm334, %v1987, 0
      %v2057 = vsel %vm334, %v1988, 0
      %v2060 = vsel %vm334, %v1989, 0
      %v2063 = vsel %vm334, %v1990, 0
      %v2066 = vsel %vm334, %v1991, 0
      %v2069 = vsel %vm334, %v1992, 0
      %v2072 = vsel %vm334, %v1993, 0
      %2074 = vmatpush.bf16.msra.mxu0 0
      %2075 = vmatpush.bf16.msra.mxu0 0
      %2076 = vmatpush.bf16.msra.mxu0 0
      %2077 = vmatpush.bf16.msra.mxu0 0
      %2078 = vmatpush.bf16.msra.mxu0 %v2021
      %2079 = vmatpush.bf16.msra.mxu0 %v2020
      %2080 = vmatpush.bf16.msra.mxu0 %v2019
      %2081 = vmatpush.bf16.msra.mxu0 %v2018
      %2082 = vmatmul.bf16.gmra.mxu0 %v2027
      %v2083 = vpop.f32.mrf.mxu0
      %v2084 = vadd.f32 0.0, %v2083
      %v2085 = vpop.f32.mrf.mxu0
      %v2086 = vadd.f32 0.0, %v2085
      %2087 = vmatmul.bf16.gmra.mxu0 %v2030
      %v2088 = vpop.f32.mrf.mxu0
      %v2089 = vadd.f32 0.0, %v2088
      %v2090 = vpop.f32.mrf.mxu0
      %v2091 = vadd.f32 0.0, %v2090
      %2092 = vmatmul.bf16.gmra.mxu0 %v2033
      %v2093 = vpop.f32.mrf.mxu0
      %v2094 = vadd.f32 0.0, %v2093
      %v2095 = vpop.f32.mrf.mxu0
      %v2096 = vadd.f32 0.0, %v2095
      %2097 = vmatmul.bf16.gmra.mxu0 %v2036
      %v2098 = vpop.f32.mrf.mxu0
      %v2099 = vadd.f32 0.0, %v2098
      %v2100 = vpop.f32.mrf.mxu0
      %v2101 = vadd.f32 0.0, %v2100
      %2102 = vmatmul.bf16.gmra.mxu0 %v2039
      %v2103 = vpop.f32.mrf.mxu0
      %v2104 = vadd.f32 0.0, %v2103
      %v2105 = vpop.f32.mrf.mxu0
      %v2106 = vadd.f32 0.0, %v2105
      %2107 = vmatmul.bf16.gmra.mxu0 %v2042
      %v2108 = vpop.f32.mrf.mxu0
      %v2109 = vadd.f32 0.0, %v2108
      %v2110 = vpop.f32.mrf.mxu0
      %v2111 = vadd.f32 0.0, %v2110
      %2112 = vmatmul.bf16.gmra.mxu0 %v2045
      %v2113 = vpop.f32.mrf.mxu0
      %v2114 = vadd.f32 0.0, %v2113
      %v2115 = vpop.f32.mrf.mxu0
      %v2116 = vadd.f32 0.0, %v2115
      %2117 = vmatmul.bf16.gmra.mxu0 %v2048
      %v2118 = vpop.f32.mrf.mxu0
      %v2119 = vadd.f32 0.0, %v2118
      %v2120 = vpop.f32.mrf.mxu0
      %v2121 = vadd.f32 0.0, %v2120
      %2122 = vmatmul.bf16.gmra.mxu0 %v2051
      %v2123 = vpop.f32.mrf.mxu0
      %v2124 = vadd.f32 0.0, %v2123
      %v2125 = vpop.f32.mrf.mxu0
      %v2126 = vadd.f32 0.0, %v2125
      %2127 = vmatmul.bf16.gmra.mxu0 %v2054
      %v2128 = vpop.f32.mrf.mxu0
      %v2129 = vadd.f32 0.0, %v2128
      %v2130 = vpop.f32.mrf.mxu0
      %v2131 = vadd.f32 0.0, %v2130
      %2132 = vmatmul.bf16.gmra.mxu0 %v2057
      %v2133 = vpop.f32.mrf.mxu0
      %v2134 = vadd.f32 0.0, %v2133
      %v2135 = vpop.f32.mrf.mxu0
      %v2136 = vadd.f32 0.0, %v2135
      %2137 = vmatmul.bf16.gmra.mxu0 %v2060
      %v2138 = vpop.f32.mrf.mxu0
      %v2139 = vadd.f32 0.0, %v2138
      %v2140 = vpop.f32.mrf.mxu0
      %v2141 = vadd.f32 0.0, %v2140
      %2142 = vmatmul.bf16.gmra.mxu0 %v2063
      %v2143 = vpop.f32.mrf.mxu0
      %v2144 = vadd.f32 0.0, %v2143
      %v2145 = vpop.f32.mrf.mxu0
      %v2146 = vadd.f32 0.0, %v2145
      %2147 = vmatmul.bf16.gmra.mxu0 %v2066
      %v2148 = vpop.f32.mrf.mxu0
      %v2149 = vadd.f32 0.0, %v2148
      %v2150 = vpop.f32.mrf.mxu0
      %v2151 = vadd.f32 0.0, %v2150
      %2152 = vmatmul.bf16.gmra.mxu0 %v2069
      %v2153 = vpop.f32.mrf.mxu0
      %v2154 = vadd.f32 0.0, %v2153
      %v2155 = vpop.f32.mrf.mxu0
      %v2156 = vadd.f32 0.0, %v2155
      %2157 = vmatmul.bf16.gmra.mxu0 %v2072
      %v2158 = vpop.f32.mrf.mxu0
      %v2159 = vadd.f32 0.0, %v2158
      %v2160 = vpop.f32.mrf.mxu0
      %v2161 = vadd.f32 0.0, %v2160
      %2162 = vdwg.mxu0
      %v2163 = vadd.f32 %v1914, %v2084
      %v2164 = vadd.f32 %v1915, %v2086
      %v2165 = vadd.f32 %v1916, %v2089
      %v2166 = vadd.f32 %v1917, %v2091
      %v2167 = vadd.f32 %v1918, %v2094
      %v2168 = vadd.f32 %v1919, %v2096
      %v2169 = vadd.f32 %v1920, %v2099
      %v2170 = vadd.f32 %v1921, %v2101
      %v2171 = vadd.f32 %v1922, %v2104
      %v2172 = vadd.f32 %v1923, %v2106
      %v2173 = vadd.f32 %v1924, %v2109
      %v2174 = vadd.f32 %v1925, %v2111
      %v2175 = vadd.f32 %v1926, %v2114
      %v2176 = vadd.f32 %v1927, %v2116
      %v2177 = vadd.f32 %v1928, %v2119
      %v2178 = vadd.f32 %v1929, %v2121
      %v2179 = vadd.f32 %v1930, %v2124
      %v2180 = vadd.f32 %v1931, %v2126
      %v2181 = vadd.f32 %v1932, %v2129
      %v2182 = vadd.f32 %v1933, %v2131
      %v2183 = vadd.f32 %v1934, %v2134
      %v2184 = vadd.f32 %v1935, %v2136
      %v2185 = vadd.f32 %v1936, %v2139
      %v2186 = vadd.f32 %v1937, %v2141
      %v2187 = vadd.f32 %v1938, %v2144
      %v2188 = vadd.f32 %v1939, %v2146
      %v2189 = vadd.f32 %v1940, %v2149
      %v2190 = vadd.f32 %v1941, %v2151
      %v2191 = vadd.f32 %v1942, %v2154
      %v2192 = vadd.f32 %v1943, %v2156
      %v2193 = vadd.f32 %v1944, %v2159
      %v2194 = vadd.f32 %v1945, %v2161
      %s2195 = scalar_lea.vmem [#allocation2], 48
      %v2196 = vld [vmem:[%s2195] sm:$0xff]
      %v2197 = vld [vmem:[%s2195 + $0x8] sm:$0xff]
      %v2198 = vld [vmem:[%s2195 + $0x18] sm:$0xff]
      %v2199 = vld [vmem:[%s2195 + $0x20] sm:$0xff]
      %v2200 = vld [vmem:[%s2195 + $0x30] sm:$0xff]
      %v2201 = vld [vmem:[%s2195 + $0x38] sm:$0xff]
      %v2202 = vld [vmem:[%s2195 + $0x48] sm:$0xff]
      %v2203 = vld [vmem:[%s2195 + $0x50] sm:$0xff]
      %v2204 = vld [vmem:[%s2195 + $0x60] sm:$0xff]
      %v2205 = vld [vmem:[%s2195 + $0x68] sm:$0xff]
      %v2206 = vld [vmem:[%s2195 + $0x78] sm:$0xff]
      %v2207 = vld [vmem:[%s2195 + $0x80] sm:$0xff]
      %v2208 = vld [vmem:[%s2195 + $0x90] sm:$0xff]
      %v2209 = vld [vmem:[%s2195 + $0x98] sm:$0xff]
      %v2210 = vld [vmem:[%s2195 + $0xa8] sm:$0xff]
      %v2211 = vld [vmem:[%s2195 + $0xb0] sm:$0xff]
      %v2212 = vld [vmem:[%s2195 + $0xc0] sm:$0xff]
      %v2213 = vld [vmem:[%s2195 + $0xc8] sm:$0xff]
      %v2214 = vld [vmem:[%s2195 + $0xd8] sm:$0xff]
      %v2215 = vld [vmem:[%s2195 + $0xe0] sm:$0xff]
      %v2216 = vld [vmem:[%s2195 + $0xf0] sm:$0xff]
      %v2217 = vld [vmem:[%s2195 + $0xf8] sm:$0xff]
      %v2218 = vld [vmem:[%s2195 + $0x108] sm:$0xff]
      %v2219 = vld [vmem:[%s2195 + $0x110] sm:$0xff]
      %v2220 = vld [vmem:[%s2195 + $0x120] sm:$0xff]
      %v2221 = vld [vmem:[%s2195 + $0x128] sm:$0xff]
      %v2222 = vld [vmem:[%s2195 + $0x138] sm:$0xff]
      %v2223 = vld [vmem:[%s2195 + $0x140] sm:$0xff]
      %v2224 = vld [vmem:[%s2195 + $0x150] sm:$0xff]
      %v2225 = vld [vmem:[%s2195 + $0x158] sm:$0xff]
      %v2226 = vld [vmem:[%s2195 + $0x168] sm:$0xff]
      %v2227 = vld [vmem:[%s2195 + $0x170] sm:$0xff]
      %v2228 = vpack.c.bf16 %v2197, %v2196
      %v2229 = vpack.c.bf16 %v2199, %v2198
      %v2230 = vpack.c.bf16 %v2201, %v2200
      %v2231 = vpack.c.bf16 %v2203, %v2202
      %v2232 = vpack.c.bf16 %v2205, %v2204
      %v2233 = vpack.c.bf16 %v2207, %v2206
      %v2234 = vpack.c.bf16 %v2209, %v2208
      %v2235 = vpack.c.bf16 %v2211, %v2210
      %v2236 = vpack.c.bf16 %v2213, %v2212
      %v2237 = vpack.c.bf16 %v2215, %v2214
      %v2238 = vpack.c.bf16 %v2217, %v2216
      %v2239 = vpack.c.bf16 %v2219, %v2218
      %v2240 = vpack.c.bf16 %v2221, %v2220
      %v2241 = vpack.c.bf16 %v2223, %v2222
      %v2242 = vpack.c.bf16 %v2225, %v2224
      %v2243 = vpack.c.bf16 %v2227, %v2226
      %v2244 = vld [vmem:[%s3 + $0xc0] sm:$0xf]
      %v2245 = vld [vmem:[%s3 + $0xc4] sm:$0xf]
      %v2246 = vld [vmem:[%s3 + $0xc8] sm:$0xf]
      %v2247 = vld [vmem:[%s3 + $0xcc] sm:$0xf]
      %v2248 = vld [vmem:[%s3 + $0xd0] sm:$0xf]
      %v2249 = vld [vmem:[%s3 + $0xd4] sm:$0xf]
      %v2250 = vld [vmem:[%s3 + $0xd8] sm:$0xf]
      %v2251 = vld [vmem:[%s3 + $0xdc] sm:$0xf]
      %v2260 = vunpack.c.l.b16 %v2244
      %v2261 = vunpack.c.l.b16 %v2245
      %v2262 = vunpack.c.l.b16 %v2246
      %v2263 = vunpack.c.l.b16 %v2247
      %v2264 = vunpack.c.l.b16 %v2248
      %v2265 = vunpack.c.l.b16 %v2249
      %v2266 = vunpack.c.l.b16 %v2250
      %v2267 = vunpack.c.l.b16 %v2251
      %v2268 = vpack.c.b16 %v2261, %v2260
      %v2269 = vpack.c.b16 %v2263, %v2262
      %v2270 = vpack.c.b16 %v2265, %v2264
      %v2271 = vpack.c.b16 %v2267, %v2266
      %v2277 = vsel %vm334, %v2228, 0
      %v2280 = vsel %vm334, %v2229, 0
      %v2283 = vsel %vm334, %v2230, 0
      %v2286 = vsel %vm334, %v2231, 0
      %v2289 = vsel %vm334, %v2232, 0
      %v2292 = vsel %vm334, %v2233, 0
      %v2295 = vsel %vm334, %v2234, 0
      %v2298 = vsel %vm334, %v2235, 0
      %v2301 = vsel %vm334, %v2236, 0
      %v2304 = vsel %vm334, %v2237, 0
      %v2307 = vsel %vm334, %v2238, 0
      %v2310 = vsel %vm334, %v2239, 0
      %v2313 = vsel %vm334, %v2240, 0
      %v2316 = vsel %vm334, %v2241, 0
      %v2319 = vsel %vm334, %v2242, 0
      %v2322 = vsel %vm334, %v2243, 0
      %2324 = vmatpush.bf16.msra.mxu0 0
      %2325 = vmatpush.bf16.msra.mxu0 0
      %2326 = vmatpush.bf16.msra.mxu0 0
      %2327 = vmatpush.bf16.msra.mxu0 0
      %2328 = vmatpush.bf16.msra.mxu0 %v2271
      %2329 = vmatpush.bf16.msra.mxu0 %v2270
      %2330 = vmatpush.bf16.msra.mxu0 %v2269
      %2331 = vmatpush.bf16.msra.mxu0 %v2268
      %2332 = vmatmul.bf16.gmra.mxu0 %v2277
      %v2333 = vpop.f32.mrf.mxu0
      %v2334 = vadd.f32 0.0, %v2333
      %v2335 = vpop.f32.mrf.mxu0
      %v2336 = vadd.f32 0.0, %v2335
      %2337 = vmatmul.bf16.gmra.mxu0 %v2280
      %v2338 = vpop.f32.mrf.mxu0
      %v2339 = vadd.f32 0.0, %v2338
      %v2340 = vpop.f32.mrf.mxu0
      %v2341 = vadd.f32 0.0, %v2340
      %2342 = vmatmul.bf16.gmra.mxu0 %v2283
      %v2343 = vpop.f32.mrf.mxu0
      %v2344 = vadd.f32 0.0, %v2343
      %v2345 = vpop.f32.mrf.mxu0
      %v2346 = vadd.f32 0.0, %v2345
      %2347 = vmatmul.bf16.gmra.mxu0 %v2286
      %v2348 = vpop.f32.mrf.mxu0
      %v2349 = vadd.f32 0.0, %v2348
      %v2350 = vpop.f32.mrf.mxu0
      %v2351 = vadd.f32 0.0, %v2350
      %2352 = vmatmul.bf16.gmra.mxu0 %v2289
      %v2353 = vpop.f32.mrf.mxu0
      %v2354 = vadd.f32 0.0, %v2353
      %v2355 = vpop.f32.mrf.mxu0
      %v2356 = vadd.f32 0.0, %v2355
      %2357 = vmatmul.bf16.gmra.mxu0 %v2292
      %v2358 = vpop.f32.mrf.mxu0
      %v2359 = vadd.f32 0.0, %v2358
      %v2360 = vpop.f32.mrf.mxu0
      %v2361 = vadd.f32 0.0, %v2360
      %2362 = vmatmul.bf16.gmra.mxu0 %v2295
      %v2363 = vpop.f32.mrf.mxu0
      %v2364 = vadd.f32 0.0, %v2363
      %v2365 = vpop.f32.mrf.mxu0
      %v2366 = vadd.f32 0.0, %v2365
      %2367 = vmatmul.bf16.gmra.mxu0 %v2298
      %v2368 = vpop.f32.mrf.mxu0
      %v2369 = vadd.f32 0.0, %v2368
      %v2370 = vpop.f32.mrf.mxu0
      %v2371 = vadd.f32 0.0, %v2370
      %2372 = vmatmul.bf16.gmra.mxu0 %v2301
      %v2373 = vpop.f32.mrf.mxu0
      %v2374 = vadd.f32 0.0, %v2373
      %v2375 = vpop.f32.mrf.mxu0
      %v2376 = vadd.f32 0.0, %v2375
      %2377 = vmatmul.bf16.gmra.mxu0 %v2304
      %v2378 = vpop.f32.mrf.mxu0
      %v2379 = vadd.f32 0.0, %v2378
      %v2380 = vpop.f32.mrf.mxu0
      %v2381 = vadd.f32 0.0, %v2380
      %2382 = vmatmul.bf16.gmra.mxu0 %v2307
      %v2383 = vpop.f32.mrf.mxu0
      %v2384 = vadd.f32 0.0, %v2383
      %v2385 = vpop.f32.mrf.mxu0
      %v2386 = vadd.f32 0.0, %v2385
      %2387 = vmatmul.bf16.gmra.mxu0 %v2310
      %v2388 = vpop.f32.mrf.mxu0
      %v2389 = vadd.f32 0.0, %v2388
      %v2390 = vpop.f32.mrf.mxu0
      %v2391 = vadd.f32 0.0, %v2390
      %2392 = vmatmul.bf16.gmra.mxu0 %v2313
      %v2393 = vpop.f32.mrf.mxu0
      %v2394 = vadd.f32 0.0, %v2393
      %v2395 = vpop.f32.mrf.mxu0
      %v2396 = vadd.f32 0.0, %v2395
      %2397 = vmatmul.bf16.gmra.mxu0 %v2316
      %v2398 = vpop.f32.mrf.mxu0
      %v2399 = vadd.f32 0.0, %v2398
      %v2400 = vpop.f32.mrf.mxu0
      %v2401 = vadd.f32 0.0, %v2400
      %2402 = vmatmul.bf16.gmra.mxu0 %v2319
      %v2403 = vpop.f32.mrf.mxu0
      %v2404 = vadd.f32 0.0, %v2403
      %v2405 = vpop.f32.mrf.mxu0
      %v2406 = vadd.f32 0.0, %v2405
      %2407 = vmatmul.bf16.gmra.mxu0 %v2322
      %v2408 = vpop.f32.mrf.mxu0
      %v2409 = vadd.f32 0.0, %v2408
      %v2410 = vpop.f32.mrf.mxu0
      %v2411 = vadd.f32 0.0, %v2410
      %2412 = vdwg.mxu0
      %v2413 = vadd.f32 %v2163, %v2334
      %v2414 = vadd.f32 %v2164, %v2336
      %v2415 = vadd.f32 %v2165, %v2339
      %v2416 = vadd.f32 %v2166, %v2341
      %v2417 = vadd.f32 %v2167, %v2344
      %v2418 = vadd.f32 %v2168, %v2346
      %v2419 = vadd.f32 %v2169, %v2349
      %v2420 = vadd.f32 %v2170, %v2351
      %v2421 = vadd.f32 %v2171, %v2354
      %v2422 = vadd.f32 %v2172, %v2356
      %v2423 = vadd.f32 %v2173, %v2359
      %v2424 = vadd.f32 %v2174, %v2361
      %v2425 = vadd.f32 %v2175, %v2364
      %v2426 = vadd.f32 %v2176, %v2366
      %v2427 = vadd.f32 %v2177, %v2369
      %v2428 = vadd.f32 %v2178, %v2371
      %v2429 = vadd.f32 %v2179, %v2374
      %v2430 = vadd.f32 %v2180, %v2376
      %v2431 = vadd.f32 %v2181, %v2379
      %v2432 = vadd.f32 %v2182, %v2381
      %v2433 = vadd.f32 %v2183, %v2384
      %v2434 = vadd.f32 %v2184, %v2386
      %v2435 = vadd.f32 %v2185, %v2389
      %v2436 = vadd.f32 %v2186, %v2391
      %v2437 = vadd.f32 %v2187, %v2394
      %v2438 = vadd.f32 %v2188, %v2396
      %v2439 = vadd.f32 %v2189, %v2399
      %v2440 = vadd.f32 %v2190, %v2401
      %v2441 = vadd.f32 %v2191, %v2404
      %v2442 = vadd.f32 %v2192, %v2406
      %v2443 = vadd.f32 %v2193, %v2409
      %v2444 = vadd.f32 %v2194, %v2411
      %v2445 = vld [vmem:[%s2195 + $0x1] sm:$0xff]
      %v2446 = vld [vmem:[%s2195 + $0x9] sm:$0xff]
      %v2447 = vld [vmem:[%s2195 + $0x19] sm:$0xff]
      %v2448 = vld [vmem:[%s2195 + $0x21] sm:$0xff]
      %v2449 = vld [vmem:[%s2195 + $0x31] sm:$0xff]
      %v2450 = vld [vmem:[%s2195 + $0x39] sm:$0xff]
      %v2451 = vld [vmem:[%s2195 + $0x49] sm:$0xff]
      %v2452 = vld [vmem:[%s2195 + $0x51] sm:$0xff]
      %v2453 = vld [vmem:[%s2195 + $0x61] sm:$0xff]
      %v2454 = vld [vmem:[%s2195 + $0x69] sm:$0xff]
      %v2455 = vld [vmem:[%s2195 + $0x79] sm:$0xff]
      %v2456 = vld [vmem:[%s2195 + $0x81] sm:$0xff]
      %v2457 = vld [vmem:[%s2195 + $0x91] sm:$0xff]
      %v2458 = vld [vmem:[%s2195 + $0x99] sm:$0xff]
      %v2459 = vld [vmem:[%s2195 + $0xa9] sm:$0xff]
      %v2460 = vld [vmem:[%s2195 + $0xb1] sm:$0xff]
      %v2461 = vld [vmem:[%s2195 + $0xc1] sm:$0xff]
      %v2462 = vld [vmem:[%s2195 + $0xc9] sm:$0xff]
      %v2463 = vld [vmem:[%s2195 + $0xd9] sm:$0xff]
      %v2464 = vld [vmem:[%s2195 + $0xe1] sm:$0xff]
      %v2465 = vld [vmem:[%s2195 + $0xf1] sm:$0xff]
      %v2466 = vld [vmem:[%s2195 + $0xf9] sm:$0xff]
      %v2467 = vld [vmem:[%s2195 + $0x109] sm:$0xff]
      %v2468 = vld [vmem:[%s2195 + $0x111] sm:$0xff]
      %v2469 = vld [vmem:[%s2195 + $0x121] sm:$0xff]
      %v2470 = vld [vmem:[%s2195 + $0x129] sm:$0xff]
      %v2471 = vld [vmem:[%s2195 + $0x139] sm:$0xff]
      %v2472 = vld [vmem:[%s2195 + $0x141] sm:$0xff]
      %v2473 = vld [vmem:[%s2195 + $0x151] sm:$0xff]
      %v2474 = vld [vmem:[%s2195 + $0x159] sm:$0xff]
      %v2475 = vld [vmem:[%s2195 + $0x169] sm:$0xff]
      %v2476 = vld [vmem:[%s2195 + $0x171] sm:$0xff]
      %v2477 = vpack.c.bf16 %v2446, %v2445
      %v2478 = vpack.c.bf16 %v2448, %v2447
      %v2479 = vpack.c.bf16 %v2450, %v2449
      %v2480 = vpack.c.bf16 %v2452, %v2451
      %v2481 = vpack.c.bf16 %v2454, %v2453
      %v2482 = vpack.c.bf16 %v2456, %v2455
      %v2483 = vpack.c.bf16 %v2458, %v2457
      %v2484 = vpack.c.bf16 %v2460, %v2459
      %v2485 = vpack.c.bf16 %v2462, %v2461
      %v2486 = vpack.c.bf16 %v2464, %v2463
      %v2487 = vpack.c.bf16 %v2466, %v2465
      %v2488 = vpack.c.bf16 %v2468, %v2467
      %v2489 = vpack.c.bf16 %v2470, %v2469
      %v2490 = vpack.c.bf16 %v2472, %v2471
      %v2491 = vpack.c.bf16 %v2474, %v2473
      %v2492 = vpack.c.bf16 %v2476, %v2475
      %v2493 = vld [vmem:[%s3 + $0xe0] sm:$0xf]
      %v2494 = vld [vmem:[%s3 + $0xe4] sm:$0xf]
      %v2495 = vld [vmem:[%s3 + $0xe8] sm:$0xf]
      %v2496 = vld [vmem:[%s3 + $0xec] sm:$0xf]
      %v2497 = vld [vmem:[%s3 + $0xf0] sm:$0xf]
      %v2498 = vld [vmem:[%s3 + $0xf4] sm:$0xf]
      %v2499 = vld [vmem:[%s3 + $0xf8] sm:$0xf]
      %v2500 = vld [vmem:[%s3 + $0xfc] sm:$0xf]
      %v2509 = vunpack.c.l.b16 %v2493
      %v2510 = vunpack.c.l.b16 %v2494
      %v2511 = vunpack.c.l.b16 %v2495
      %v2512 = vunpack.c.l.b16 %v2496
      %v2513 = vunpack.c.l.b16 %v2497
      %v2514 = vunpack.c.l.b16 %v2498
      %v2515 = vunpack.c.l.b16 %v2499
      %v2516 = vunpack.c.l.b16 %v2500
      %v2517 = vpack.c.b16 %v2510, %v2509
      %v2518 = vpack.c.b16 %v2512, %v2511
      %v2519 = vpack.c.b16 %v2514, %v2513
      %v2520 = vpack.c.b16 %v2516, %v2515
      %v2526 = vsel %vm334, %v2477, 0
      %v2529 = vsel %vm334, %v2478, 0
      %v2532 = vsel %vm334, %v2479, 0
      %v2535 = vsel %vm334, %v2480, 0
      %v2538 = vsel %vm334, %v2481, 0
      %v2541 = vsel %vm334, %v2482, 0
      %v2544 = vsel %vm334, %v2483, 0
      %v2547 = vsel %vm334, %v2484, 0
      %v2550 = vsel %vm334, %v2485, 0
      %v2553 = vsel %vm334, %v2486, 0
      %v2556 = vsel %vm334, %v2487, 0
      %v2559 = vsel %vm334, %v2488, 0
      %v2562 = vsel %vm334, %v2489, 0
      %v2565 = vsel %vm334, %v2490, 0
      %v2568 = vsel %vm334, %v2491, 0
      %v2571 = vsel %vm334, %v2492, 0
      %2573 = vmatpush.bf16.msra.mxu0 0
      %2574 = vmatpush.bf16.msra.mxu0 0
      %2575 = vmatpush.bf16.msra.mxu0 0
      %2576 = vmatpush.bf16.msra.mxu0 0
      %2577 = vmatpush.bf16.msra.mxu0 %v2520
      %2578 = vmatpush.bf16.msra.mxu0 %v2519
      %2579 = vmatpush.bf16.msra.mxu0 %v2518
      %2580 = vmatpush.bf16.msra.mxu0 %v2517
      %2581 = vmatmul.bf16.gmra.mxu0 %v2526
      %v2582 = vpop.f32.mrf.mxu0
      %v2583 = vadd.f32 0.0, %v2582
      %v2584 = vpop.f32.mrf.mxu0
      %v2585 = vadd.f32 0.0, %v2584
      %2586 = vmatmul.bf16.gmra.mxu0 %v2529
      %v2587 = vpop.f32.mrf.mxu0
      %v2588 = vadd.f32 0.0, %v2587
      %v2589 = vpop.f32.mrf.mxu0
      %v2590 = vadd.f32 0.0, %v2589
      %2591 = vmatmul.bf16.gmra.mxu0 %v2532
      %v2592 = vpop.f32.mrf.mxu0
      %v2593 = vadd.f32 0.0, %v2592
      %v2594 = vpop.f32.mrf.mxu0
      %v2595 = vadd.f32 0.0, %v2594
      %2596 = vmatmul.bf16.gmra.mxu0 %v2535
      %v2597 = vpop.f32.mrf.mxu0
      %v2598 = vadd.f32 0.0, %v2597
      %v2599 = vpop.f32.mrf.mxu0
      %v2600 = vadd.f32 0.0, %v2599
      %2601 = vmatmul.bf16.gmra.mxu0 %v2538
      %v2602 = vpop.f32.mrf.mxu0
      %v2603 = vadd.f32 0.0, %v2602
      %v2604 = vpop.f32.mrf.mxu0
      %v2605 = vadd.f32 0.0, %v2604
      %2606 = vmatmul.bf16.gmra.mxu0 %v2541
      %v2607 = vpop.f32.mrf.mxu0
      %v2608 = vadd.f32 0.0, %v2607
      %v2609 = vpop.f32.mrf.mxu0
      %v2610 = vadd.f32 0.0, %v2609
      %2611 = vmatmul.bf16.gmra.mxu0 %v2544
      %v2612 = vpop.f32.mrf.mxu0
      %v2613 = vadd.f32 0.0, %v2612
      %v2614 = vpop.f32.mrf.mxu0
      %v2615 = vadd.f32 0.0, %v2614
      %2616 = vmatmul.bf16.gmra.mxu0 %v2547
      %v2617 = vpop.f32.mrf.mxu0
      %v2618 = vadd.f32 0.0, %v2617
      %v2619 = vpop.f32.mrf.mxu0
      %v2620 = vadd.f32 0.0, %v2619
      %2621 = vmatmul.bf16.gmra.mxu0 %v2550
      %v2622 = vpop.f32.mrf.mxu0
      %v2623 = vadd.f32 0.0, %v2622
      %v2624 = vpop.f32.mrf.mxu0
      %v2625 = vadd.f32 0.0, %v2624
      %2626 = vmatmul.bf16.gmra.mxu0 %v2553
      %v2627 = vpop.f32.mrf.mxu0
      %v2628 = vadd.f32 0.0, %v2627
      %v2629 = vpop.f32.mrf.mxu0
      %v2630 = vadd.f32 0.0, %v2629
      %2631 = vmatmul.bf16.gmra.mxu0 %v2556
      %v2632 = vpop.f32.mrf.mxu0
      %v2633 = vadd.f32 0.0, %v2632
      %v2634 = vpop.f32.mrf.mxu0
      %v2635 = vadd.f32 0.0, %v2634
      %2636 = vmatmul.bf16.gmra.mxu0 %v2559
      %v2637 = vpop.f32.mrf.mxu0
      %v2638 = vadd.f32 0.0, %v2637
      %v2639 = vpop.f32.mrf.mxu0
      %v2640 = vadd.f32 0.0, %v2639
      %2641 = vmatmul.bf16.gmra.mxu0 %v2562
      %v2642 = vpop.f32.mrf.mxu0
      %v2643 = vadd.f32 0.0, %v2642
      %v2644 = vpop.f32.mrf.mxu0
      %v2645 = vadd.f32 0.0, %v2644
      %2646 = vmatmul.bf16.gmra.mxu0 %v2565
      %v2647 = vpop.f32.mrf.mxu0
      %v2648 = vadd.f32 0.0, %v2647
      %v2649 = vpop.f32.mrf.mxu0
      %v2650 = vadd.f32 0.0, %v2649
      %2651 = vmatmul.bf16.gmra.mxu0 %v2568
      %v2652 = vpop.f32.mrf.mxu0
      %v2653 = vadd.f32 0.0, %v2652
      %v2654 = vpop.f32.mrf.mxu0
      %v2655 = vadd.f32 0.0, %v2654
      %2656 = vmatmul.bf16.gmra.mxu0 %v2571
      %v2657 = vpop.f32.mrf.mxu0
      %v2658 = vadd.f32 0.0, %v2657
      %v2659 = vpop.f32.mrf.mxu0
      %v2660 = vadd.f32 0.0, %v2659
      %2661 = vdwg.mxu0
      %v2662 = vadd.f32 %v2413, %v2583
      %v2663 = vadd.f32 %v2414, %v2585
      %v2664 = vadd.f32 %v2415, %v2588
      %v2665 = vadd.f32 %v2416, %v2590
      %v2666 = vadd.f32 %v2417, %v2593
      %v2667 = vadd.f32 %v2418, %v2595
      %v2668 = vadd.f32 %v2419, %v2598
      %v2669 = vadd.f32 %v2420, %v2600
      %v2670 = vadd.f32 %v2421, %v2603
      %v2671 = vadd.f32 %v2422, %v2605
      %v2672 = vadd.f32 %v2423, %v2608
      %v2673 = vadd.f32 %v2424, %v2610
      %v2674 = vadd.f32 %v2425, %v2613
      %v2675 = vadd.f32 %v2426, %v2615
      %v2676 = vadd.f32 %v2427, %v2618
      %v2677 = vadd.f32 %v2428, %v2620
      %v2678 = vadd.f32 %v2429, %v2623
      %v2679 = vadd.f32 %v2430, %v2625
      %v2680 = vadd.f32 %v2431, %v2628
      %v2681 = vadd.f32 %v2432, %v2630
      %v2682 = vadd.f32 %v2433, %v2633
      %v2683 = vadd.f32 %v2434, %v2635
      %v2684 = vadd.f32 %v2435, %v2638
      %v2685 = vadd.f32 %v2436, %v2640
      %v2686 = vadd.f32 %v2437, %v2643
      %v2687 = vadd.f32 %v2438, %v2645
      %v2688 = vadd.f32 %v2439, %v2648
      %v2689 = vadd.f32 %v2440, %v2650
      %v2690 = vadd.f32 %v2441, %v2653
      %v2691 = vadd.f32 %v2442, %v2655
      %v2692 = vadd.f32 %v2443, %v2658
      %v2693 = vadd.f32 %v2444, %v2660
      %v2694 = vld [vmem:[%s2195 + $0x2] sm:$0xff]
      %v2695 = vld [vmem:[%s2195 + $0xa] sm:$0xff]
      %v2696 = vld [vmem:[%s2195 + $0x1a] sm:$0xff]
      %v2697 = vld [vmem:[%s2195 + $0x22] sm:$0xff]
      %v2698 = vld [vmem:[%s2195 + $0x32] sm:$0xff]
      %v2699 = vld [vmem:[%s2195 + $0x3a] sm:$0xff]
      %v2700 = vld [vmem:[%s2195 + $0x4a] sm:$0xff]
      %v2701 = vld [vmem:[%s2195 + $0x52] sm:$0xff]
      %v2702 = vld [vmem:[%s2195 + $0x62] sm:$0xff]
      %v2703 = vld [vmem:[%s2195 + $0x6a] sm:$0xff]
      %v2704 = vld [vmem:[%s2195 + $0x7a] sm:$0xff]
      %v2705 = vld [vmem:[%s2195 + $0x82] sm:$0xff]
      %v2706 = vld [vmem:[%s2195 + $0x92] sm:$0xff]
      %v2707 = vld [vmem:[%s2195 + $0x9a] sm:$0xff]
      %v2708 = vld [vmem:[%s2195 + $0xaa] sm:$0xff]
      %v2709 = vld [vmem:[%s2195 + $0xb2] sm:$0xff]
      %v2710 = vld [vmem:[%s2195 + $0xc2] sm:$0xff]
      %v2711 = vld [vmem:[%s2195 + $0xca] sm:$0xff]
      %v2712 = vld [vmem:[%s2195 + $0xda] sm:$0xff]
      %v2713 = vld [vmem:[%s2195 + $0xe2] sm:$0xff]
      %v2714 = vld [vmem:[%s2195 + $0xf2] sm:$0xff]
      %v2715 = vld [vmem:[%s2195 + $0xfa] sm:$0xff]
      %v2716 = vld [vmem:[%s2195 + $0x10a] sm:$0xff]
      %v2717 = vld [vmem:[%s2195 + $0x112] sm:$0xff]
      %v2718 = vld [vmem:[%s2195 + $0x122] sm:$0xff]
      %v2719 = vld [vmem:[%s2195 + $0x12a] sm:$0xff]
      %v2720 = vld [vmem:[%s2195 + $0x13a] sm:$0xff]
      %v2721 = vld [vmem:[%s2195 + $0x142] sm:$0xff]
      %v2722 = vld [vmem:[%s2195 + $0x152] sm:$0xff]
      %v2723 = vld [vmem:[%s2195 + $0x15a] sm:$0xff]
      %v2724 = vld [vmem:[%s2195 + $0x16a] sm:$0xff]
      %v2725 = vld [vmem:[%s2195 + $0x172] sm:$0xff]
      %v2726 = vpack.c.bf16 %v2695, %v2694
      %v2727 = vpack.c.bf16 %v2697, %v2696
      %v2728 = vpack.c.bf16 %v2699, %v2698
      %v2729 = vpack.c.bf16 %v2701, %v2700
      %v2730 = vpack.c.bf16 %v2703, %v2702
      %v2731 = vpack.c.bf16 %v2705, %v2704
      %v2732 = vpack.c.bf16 %v2707, %v2706
      %v2733 = vpack.c.bf16 %v2709, %v2708
      %v2734 = vpack.c.bf16 %v2711, %v2710
      %v2735 = vpack.c.bf16 %v2713, %v2712
      %v2736 = vpack.c.bf16 %v2715, %v2714
      %v2737 = vpack.c.bf16 %v2717, %v2716
      %v2738 = vpack.c.bf16 %v2719, %v2718
      %v2739 = vpack.c.bf16 %v2721, %v2720
      %v2740 = vpack.c.bf16 %v2723, %v2722
      %v2741 = vpack.c.bf16 %v2725, %v2724
      %v2742 = vld [vmem:[%s3 + $0x100] sm:$0xf]
      %v2743 = vld [vmem:[%s3 + $0x104] sm:$0xf]
      %v2744 = vld [vmem:[%s3 + $0x108] sm:$0xf]
      %v2745 = vld [vmem:[%s3 + $0x10c] sm:$0xf]
      %v2746 = vld [vmem:[%s3 + $0x110] sm:$0xf]
      %v2747 = vld [vmem:[%s3 + $0x114] sm:$0xf]
      %v2748 = vld [vmem:[%s3 + $0x118] sm:$0xf]
      %v2749 = vld [vmem:[%s3 + $0x11c] sm:$0xf]
      %v2758 = vunpack.c.l.b16 %v2742
      %v2759 = vunpack.c.l.b16 %v2743
      %v2760 = vunpack.c.l.b16 %v2744
      %v2761 = vunpack.c.l.b16 %v2745
      %v2762 = vunpack.c.l.b16 %v2746
      %v2763 = vunpack.c.l.b16 %v2747
      %v2764 = vunpack.c.l.b16 %v2748
      %v2765 = vunpack.c.l.b16 %v2749
      %v2766 = vpack.c.b16 %v2759, %v2758
      %v2767 = vpack.c.b16 %v2761, %v2760
      %v2768 = vpack.c.b16 %v2763, %v2762
      %v2769 = vpack.c.b16 %v2765, %v2764
      %v2775 = vsel %vm334, %v2726, 0
      %v2778 = vsel %vm334, %v2727, 0
      %v2781 = vsel %vm334, %v2728, 0
      %v2784 = vsel %vm334, %v2729, 0
      %v2787 = vsel %vm334, %v2730, 0
      %v2790 = vsel %vm334, %v2731, 0
      %v2793 = vsel %vm334, %v2732, 0
      %v2796 = vsel %vm334, %v2733, 0
      %v2799 = vsel %vm334, %v2734, 0
      %v2802 = vsel %vm334, %v2735, 0
      %v2805 = vsel %vm334, %v2736, 0
      %v2808 = vsel %vm334, %v2737, 0
      %v2811 = vsel %vm334, %v2738, 0
      %v2814 = vsel %vm334, %v2739, 0
      %v2817 = vsel %vm334, %v2740, 0
      %v2820 = vsel %vm334, %v2741, 0
      %2822 = vmatpush.bf16.msra.mxu0 0
      %2823 = vmatpush.bf16.msra.mxu0 0
      %2824 = vmatpush.bf16.msra.mxu0 0
      %2825 = vmatpush.bf16.msra.mxu0 0
      %2826 = vmatpush.bf16.msra.mxu0 %v2769
      %2827 = vmatpush.bf16.msra.mxu0 %v2768
      %2828 = vmatpush.bf16.msra.mxu0 %v2767
      %2829 = vmatpush.bf16.msra.mxu0 %v2766
      %2830 = vmatmul.bf16.gmra.mxu0 %v2775
      %v2831 = vpop.f32.mrf.mxu0
      %v2832 = vadd.f32 0.0, %v2831
      %v2833 = vpop.f32.mrf.mxu0
      %v2834 = vadd.f32 0.0, %v2833
      %2835 = vmatmul.bf16.gmra.mxu0 %v2778
      %v2836 = vpop.f32.mrf.mxu0
      %v2837 = vadd.f32 0.0, %v2836
      %v2838 = vpop.f32.mrf.mxu0
      %v2839 = vadd.f32 0.0, %v2838
      %2840 = vmatmul.bf16.gmra.mxu0 %v2781
      %v2841 = vpop.f32.mrf.mxu0
      %v2842 = vadd.f32 0.0, %v2841
      %v2843 = vpop.f32.mrf.mxu0
      %v2844 = vadd.f32 0.0, %v2843
      %2845 = vmatmul.bf16.gmra.mxu0 %v2784
      %v2846 = vpop.f32.mrf.mxu0
      %v2847 = vadd.f32 0.0, %v2846
      %v2848 = vpop.f32.mrf.mxu0
      %v2849 = vadd.f32 0.0, %v2848
      %2850 = vmatmul.bf16.gmra.mxu0 %v2787
      %v2851 = vpop.f32.mrf.mxu0
      %v2852 = vadd.f32 0.0, %v2851
      %v2853 = vpop.f32.mrf.mxu0
      %v2854 = vadd.f32 0.0, %v2853
      %2855 = vmatmul.bf16.gmra.mxu0 %v2790
      %v2856 = vpop.f32.mrf.mxu0
      %v2857 = vadd.f32 0.0, %v2856
      %v2858 = vpop.f32.mrf.mxu0
      %v2859 = vadd.f32 0.0, %v2858
      %2860 = vmatmul.bf16.gmra.mxu0 %v2793
      %v2861 = vpop.f32.mrf.mxu0
      %v2862 = vadd.f32 0.0, %v2861
      %v2863 = vpop.f32.mrf.mxu0
      %v2864 = vadd.f32 0.0, %v2863
      %2865 = vmatmul.bf16.gmra.mxu0 %v2796
      %v2866 = vpop.f32.mrf.mxu0
      %v2867 = vadd.f32 0.0, %v2866
      %v2868 = vpop.f32.mrf.mxu0
      %v2869 = vadd.f32 0.0, %v2868
      %2870 = vmatmul.bf16.gmra.mxu0 %v2799
      %v2871 = vpop.f32.mrf.mxu0
      %v2872 = vadd.f32 0.0, %v2871
      %v2873 = vpop.f32.mrf.mxu0
      %v2874 = vadd.f32 0.0, %v2873
      %2875 = vmatmul.bf16.gmra.mxu0 %v2802
      %v2876 = vpop.f32.mrf.mxu0
      %v2877 = vadd.f32 0.0, %v2876
      %v2878 = vpop.f32.mrf.mxu0
      %v2879 = vadd.f32 0.0, %v2878
      %2880 = vmatmul.bf16.gmra.mxu0 %v2805
      %v2881 = vpop.f32.mrf.mxu0
      %v2882 = vadd.f32 0.0, %v2881
      %v2883 = vpop.f32.mrf.mxu0
      %v2884 = vadd.f32 0.0, %v2883
      %2885 = vmatmul.bf16.gmra.mxu0 %v2808
      %v2886 = vpop.f32.mrf.mxu0
      %v2887 = vadd.f32 0.0, %v2886
      %v2888 = vpop.f32.mrf.mxu0
      %v2889 = vadd.f32 0.0, %v2888
      %2890 = vmatmul.bf16.gmra.mxu0 %v2811
      %v2891 = vpop.f32.mrf.mxu0
      %v2892 = vadd.f32 0.0, %v2891
      %v2893 = vpop.f32.mrf.mxu0
      %v2894 = vadd.f32 0.0, %v2893
      %2895 = vmatmul.bf16.gmra.mxu0 %v2814
      %v2896 = vpop.f32.mrf.mxu0
      %v2897 = vadd.f32 0.0, %v2896
      %v2898 = vpop.f32.mrf.mxu0
      %v2899 = vadd.f32 0.0, %v2898
      %2900 = vmatmul.bf16.gmra.mxu0 %v2817
      %v2901 = vpop.f32.mrf.mxu0
      %v2902 = vadd.f32 0.0, %v2901
      %v2903 = vpop.f32.mrf.mxu0
      %v2904 = vadd.f32 0.0, %v2903
      %2905 = vmatmul.bf16.gmra.mxu0 %v2820
      %v2906 = vpop.f32.mrf.mxu0
      %v2907 = vadd.f32 0.0, %v2906
      %v2908 = vpop.f32.mrf.mxu0
      %v2909 = vadd.f32 0.0, %v2908
      %2910 = vdwg.mxu0
      %v2911 = vadd.f32 %v2662, %v2832
      %v2912 = vadd.f32 %v2663, %v2834
      %v2913 = vadd.f32 %v2664, %v2837
      %v2914 = vadd.f32 %v2665, %v2839
      %v2915 = vadd.f32 %v2666, %v2842
      %v2916 = vadd.f32 %v2667, %v2844
      %v2917 = vadd.f32 %v2668, %v2847
      %v2918 = vadd.f32 %v2669, %v2849
      %v2919 = vadd.f32 %v2670, %v2852
      %v2920 = vadd.f32 %v2671, %v2854
      %v2921 = vadd.f32 %v2672, %v2857
      %v2922 = vadd.f32 %v2673, %v2859
      %v2923 = vadd.f32 %v2674, %v2862
      %v2924 = vadd.f32 %v2675, %v2864
      %v2925 = vadd.f32 %v2676, %v2867
      %v2926 = vadd.f32 %v2677, %v2869
      %v2927 = vadd.f32 %v2678, %v2872
      %v2928 = vadd.f32 %v2679, %v2874
      %v2929 = vadd.f32 %v2680, %v2877
      %v2930 = vadd.f32 %v2681, %v2879
      %v2931 = vadd.f32 %v2682, %v2882
      %v2932 = vadd.f32 %v2683, %v2884
      %v2933 = vadd.f32 %v2684, %v2887
      %v2934 = vadd.f32 %v2685, %v2889
      %v2935 = vadd.f32 %v2686, %v2892
      %v2936 = vadd.f32 %v2687, %v2894
      %v2937 = vadd.f32 %v2688, %v2897
      %v2938 = vadd.f32 %v2689, %v2899
      %v2939 = vadd.f32 %v2690, %v2902
      %v2940 = vadd.f32 %v2691, %v2904
      %v2941 = vadd.f32 %v2692, %v2907
      %v2942 = vadd.f32 %v2693, %v2909
      %v2943 = vld [vmem:[%s4] sm:$0x1]
      %v2945 = vperm.slane %v2943, 0
      %v2947 = vadd.f32 %v2911, %v2945
      %v2948 = vadd.f32 %v2912, %v2945
      %v2949 = vadd.f32 %v2913, %v2945
      %v2950 = vadd.f32 %v2914, %v2945
      %v2951 = vadd.f32 %v2915, %v2945
      %v2952 = vadd.f32 %v2916, %v2945
      %v2953 = vadd.f32 %v2917, %v2945
      %v2954 = vadd.f32 %v2918, %v2945
      %v2955 = vadd.f32 %v2919, %v2945
      %v2956 = vadd.f32 %v2920, %v2945
      %v2957 = vadd.f32 %v2921, %v2945
      %v2958 = vadd.f32 %v2922, %v2945
      %v2959 = vadd.f32 %v2923, %v2945
      %v2960 = vadd.f32 %v2924, %v2945
      %v2961 = vadd.f32 %v2925, %v2945
      %v2962 = vadd.f32 %v2926, %v2945
      %v2963 = vadd.f32 %v2927, %v2945
      %v2964 = vadd.f32 %v2928, %v2945
      %v2965 = vadd.f32 %v2929, %v2945
      %v2966 = vadd.f32 %v2930, %v2945
      %v2967 = vadd.f32 %v2931, %v2945
      %v2968 = vadd.f32 %v2932, %v2945
      %v2969 = vadd.f32 %v2933, %v2945
      %v2970 = vadd.f32 %v2934, %v2945
      %v2971 = vadd.f32 %v2935, %v2945
      %v2972 = vadd.f32 %v2936, %v2945
      %v2973 = vadd.f32 %v2937, %v2945
      %v2974 = vadd.f32 %v2938, %v2945
      %v2975 = vadd.f32 %v2939, %v2945
      %v2976 = vadd.f32 %v2940, %v2945
      %v2977 = vadd.f32 %v2941, %v2945
      %v2978 = vadd.f32 %v2942, %v2945
      %v2979 = vmax.f32 %v2947, 0.0
      %v2980 = vmax.f32 %v2948, 0.0
      %v2981 = vmax.f32 %v2949, 0.0
      %v2982 = vmax.f32 %v2950, 0.0
      %v2983 = vmax.f32 %v2951, 0.0
      %v2984 = vmax.f32 %v2952, 0.0
      %v2985 = vmax.f32 %v2953, 0.0
      %v2986 = vmax.f32 %v2954, 0.0
      %v2987 = vmax.f32 %v2955, 0.0
      %v2988 = vmax.f32 %v2956, 0.0
      %v2989 = vmax.f32 %v2957, 0.0
      %v2990 = vmax.f32 %v2958, 0.0
      %v2991 = vmax.f32 %v2959, 0.0
      %v2992 = vmax.f32 %v2960, 0.0
      %v2993 = vmax.f32 %v2961, 0.0
      %v2994 = vmax.f32 %v2962, 0.0
      %v2995 = vmax.f32 %v2963, 0.0
      %v2996 = vmax.f32 %v2964, 0.0
      %v2997 = vmax.f32 %v2965, 0.0
      %v2998 = vmax.f32 %v2966, 0.0
      %v2999 = vmax.f32 %v2967, 0.0
      %v3000 = vmax.f32 %v2968, 0.0
      %v3001 = vmax.f32 %v2969, 0.0
      %v3002 = vmax.f32 %v2970, 0.0
      %v3003 = vmax.f32 %v2971, 0.0
      %v3004 = vmax.f32 %v2972, 0.0
      %v3005 = vmax.f32 %v2973, 0.0
      %v3006 = vmax.f32 %v2974, 0.0
      %v3007 = vmax.f32 %v2975, 0.0
      %v3008 = vmax.f32 %v2976, 0.0
      %v3009 = vmax.f32 %v2977, 0.0
      %v3010 = vmax.f32 %v2978, 0.0
      %v3011 = vmax.f32 %v2979, %v2981
      %v3012 = vmax.f32 %v2980, %v2982
      %v3013 = vmax.f32 %v2983, %v2985
      %v3014 = vmax.f32 %v2984, %v2986
      %v3015 = vmax.f32 %v2987, %v2989
      %v3016 = vmax.f32 %v2988, %v2990
      %v3017 = vmax.f32 %v2991, %v2993
      %v3018 = vmax.f32 %v2992, %v2994
      %v3019 = vmax.f32 %v2995, %v2997
      %v3020 = vmax.f32 %v2996, %v2998
      %v3021 = vmax.f32 %v2999, %v3001
      %v3022 = vmax.f32 %v3000, %v3002
      %v3023 = vmax.f32 %v3003, %v3005
      %v3024 = vmax.f32 %v3004, %v3006
      %v3025 = vmax.f32 %v3007, %v3009
      %v3026 = vmax.f32 %v3008, %v3010
      %3027 = vst.msk [vmem:[#allocation3] sm:$0xff] %vm334, %v3011
      %3028 = vst.msk [vmem:[#allocation3 + $0x8] sm:$0xff] %vm334, %v3012
      %3029 = vst.msk [vmem:[#allocation3 + $0x10] sm:$0xff] %vm334, %v3013
      %3030 = vst.msk [vmem:[#allocation3 + $0x18] sm:$0xff] %vm334, %v3014
      %3031 = vst.msk [vmem:[#allocation3 + $0x20] sm:$0xff] %vm334, %v3015
      %3032 = vst.msk [vmem:[#allocation3 + $0x28] sm:$0xff] %vm334, %v3016
      %3033 = vst.msk [vmem:[#allocation3 + $0x30] sm:$0xff] %vm334, %v3017
      %3034 = vst.msk [vmem:[#allocation3 + $0x38] sm:$0xff] %vm334, %v3018
      %3035 = vst.msk [vmem:[#allocation3 + $0x40] sm:$0xff] %vm334, %v3019
      %3036 = vst.msk [vmem:[#allocation3 + $0x48] sm:$0xff] %vm334, %v3020
      %3037 = vst.msk [vmem:[#allocation3 + $0x50] sm:$0xff] %vm334, %v3021
      %3038 = vst.msk [vmem:[#allocation3 + $0x58] sm:$0xff] %vm334, %v3022
      %3039 = vst.msk [vmem:[#allocation3 + $0x60] sm:$0xff] %vm334, %v3023
      %3040 = vst.msk [vmem:[#allocation3 + $0x68] sm:$0xff] %vm334, %v3024
      %3041 = vst.msk [vmem:[#allocation3 + $0x70] sm:$0xff] %vm334, %v3025
      %3042 = vst.msk [vmem:[#allocation3 + $0x78] sm:$0xff] %vm334, %v3026
      %v3043 = vld [vmem:[#allocation3] ss:$2 sm:$0xff]
      %s3044 = scalar_lea.vmem [#allocation3], 16
      %v3045 = vld [vmem:[%s3044] ss:$2 sm:$0xff]
      %s3046 = scalar_lea.vmem [#allocation3], 32
      %v3047 = vld [vmem:[%s3046] ss:$2 sm:$0xff]
      %s3048 = scalar_lea.vmem [#allocation3], 48
      %v3049 = vld [vmem:[%s3048] ss:$2 sm:$0xff]
      %s3050 = scalar_lea.vmem [#allocation3], 64
      %v3051 = vld [vmem:[%s3050] ss:$2 sm:$0xff]
      %s3052 = scalar_lea.vmem [#allocation3], 80
      %v3053 = vld [vmem:[%s3052] ss:$2 sm:$0xff]
      %s3054 = scalar_lea.vmem [#allocation3], 96
      %v3055 = vld [vmem:[%s3054] ss:$2 sm:$0xff]
      %s3056 = scalar_lea.vmem [#allocation3], 112
      %v3057 = vld [vmem:[%s3056] ss:$2 sm:$0xff]
      %s3058 = scalar_lea.vmem [#allocation3], 1
      %v3059 = vld [vmem:[%s3058] ss:$2 sm:$0xff]
      %s3060 = scalar_lea.vmem [#allocation3], 17
      %v3061 = vld [vmem:[%s3060] ss:$2 sm:$0xff]
      %s3062 = scalar_lea.vmem [#allocation3], 33
      %v3063 = vld [vmem:[%s3062] ss:$2 sm:$0xff]
      %s3064 = scalar_lea.vmem [#allocation3], 49
      %v3065 = vld [vmem:[%s3064] ss:$2 sm:$0xff]
      %s3066 = scalar_lea.vmem [#allocation3], 65
      %v3067 = vld [vmem:[%s3066] ss:$2 sm:$0xff]
      %s3068 = scalar_lea.vmem [#allocation3], 81
      %v3069 = vld [vmem:[%s3068] ss:$2 sm:$0xff]
      %s3070 = scalar_lea.vmem [#allocation3], 97
      %v3071 = vld [vmem:[%s3070] ss:$2 sm:$0xff]
      %s3072 = scalar_lea.vmem [#allocation3], 113
      %v3073 = vld [vmem:[%s3072] ss:$2 sm:$0xff]
      %v3074 = vmax.f32 %v3043, %v3059
      %v3075 = vmax.f32 %v3045, %v3061
      %v3076 = vmax.f32 %v3047, %v3063
      %v3077 = vmax.f32 %v3049, %v3065
      %v3078 = vmax.f32 %v3051, %v3067
      %v3079 = vmax.f32 %v3053, %v3069
      %v3080 = vmax.f32 %v3055, %v3071
      %v3081 = vmax.f32 %v3057, %v3073
      %s3082 = scalar_lea.vmem [#allocation4], 16
      %3083 = vst.msk [vmem:[%s3082 + $0x1] sm:$0xff] %vm334, %v3074
      %3084 = vst.msk [vmem:[%s3082 + $0x11] sm:$0xff] %vm334, %v3075
      %3085 = vst.msk [vmem:[%s3082 + $0x21] sm:$0xff] %vm334, %v3076
      %3086 = vst.msk [vmem:[%s3082 + $0x31] sm:$0xff] %vm334, %v3077
      %3087 = vst.msk [vmem:[%s3082 + $0x41] sm:$0xff] %vm334, %v3078
      %3088 = vst.msk [vmem:[%s3082 + $0x51] sm:$0xff] %vm334, %v3079
      %3089 = vst.msk [vmem:[%s3082 + $0x61] sm:$0xff] %vm334, %v3080
      %3090 = vst.msk [vmem:[%s3082 + $0x71] sm:$0xff] %vm334, %v3081
      %v3091 = vld [vmem:[#allocation4] sm:$0xff]
      %v3092 = vld [vmem:[#allocation4 + $0x10] sm:$0xff]
      %v3093 = vld [vmem:[#allocation4 + $0x20] sm:$0xff]
      %v3094 = vld [vmem:[#allocation4 + $0x30] sm:$0xff]
      %v3095 = vld [vmem:[#allocation4 + $0x40] sm:$0xff]
      %v3096 = vld [vmem:[#allocation4 + $0x50] sm:$0xff]
      %v3097 = vld [vmem:[#allocation4 + $0x60] sm:$0xff]
      %v3098 = vld [vmem:[#allocation4 + $0x70] sm:$0xff]
      %v3099 = vpack.c.bf16 %v3092, %v3091
      %v3100 = vpack.c.bf16 %v3094, %v3093
      %v3101 = vpack.c.bf16 %v3096, %v3095
      %v3102 = vpack.c.bf16 %v3098, %v3097
      %v3103 = vld [vmem:[%s5] sm:$0xf]
      %v3104 = vld [vmem:[%s5 + $0x4] sm:$0xf]
      %v3105 = vld [vmem:[%s5 + $0x8] sm:$0xf]
      %v3106 = vld [vmem:[%s5 + $0xc] sm:$0xf]
      %v3107 = vld [vmem:[%s5 + $0x10] sm:$0xf]
      %v3108 = vld [vmem:[%s5 + $0x14] sm:$0xf]
      %v3109 = vld [vmem:[%s5 + $0x18] sm:$0xf]
      %v3110 = vld [vmem:[%s5 + $0x1c] sm:$0xf]
      %v3111 = vld [vmem:[#allocation4 + $0x1] sm:$0xff]
      %v3112 = vld [vmem:[#allocation4 + $0x11] sm:$0xff]
      %v3113 = vld [vmem:[#allocation4 + $0x21] sm:$0xff]
      %v3114 = vld [vmem:[#allocation4 + $0x31] sm:$0xff]
      %v3115 = vld [vmem:[#allocation4 + $0x41] sm:$0xff]
      %v3116 = vld [vmem:[#allocation4 + $0x51] sm:$0xff]
      %v3117 = vld [vmem:[#allocation4 + $0x61] sm:$0xff]
      %v3118 = vld [vmem:[#allocation4 + $0x71] sm:$0xff]
      %v3119 = vpack.c.bf16 %v3112, %v3111
      %v3120 = vpack.c.bf16 %v3114, %v3113
      %v3121 = vpack.c.bf16 %v3116, %v3115
      %v3122 = vpack.c.bf16 %v3118, %v3117
      %v3123 = vld [vmem:[%s5 + $0x20] sm:$0xf]
      %v3124 = vld [vmem:[%s5 + $0x24] sm:$0xf]
      %v3125 = vld [vmem:[%s5 + $0x28] sm:$0xf]
      %v3126 = vld [vmem:[%s5 + $0x2c] sm:$0xf]
      %v3127 = vld [vmem:[%s5 + $0x30] sm:$0xf]
      %v3128 = vld [vmem:[%s5 + $0x34] sm:$0xf]
      %v3129 = vld [vmem:[%s5 + $0x38] sm:$0xf]
      %v3130 = vld [vmem:[%s5 + $0x3c] sm:$0xf]
      %v3139 = vunpack.c.l.b16 %v3123
      %v3140 = vunpack.c.l.b16 %v3124
      %v3141 = vunpack.c.l.b16 %v3125
      %v3142 = vunpack.c.l.b16 %v3126
      %v3143 = vunpack.c.l.b16 %v3127
      %v3144 = vunpack.c.l.b16 %v3128
      %v3145 = vunpack.c.l.b16 %v3129
      %v3146 = vunpack.c.l.b16 %v3130
      %v3147 = vpack.c.b16 %v3140, %v3139
      %v3148 = vpack.c.b16 %v3142, %v3141
      %v3149 = vpack.c.b16 %v3144, %v3143
      %v3150 = vpack.c.b16 %v3146, %v3145
      %v3156 = vsel %vm334, %v3119, 0
      %v3159 = vsel %vm334, %v3120, 0
      %v3162 = vsel %vm334, %v3121, 0
      %v3165 = vsel %vm334, %v3122, 0
      %3167 = vmatpush.bf16.msra.mxu0 0
      %3168 = vmatpush.bf16.msra.mxu0 0
      %3169 = vmatpush.bf16.msra.mxu0 0
      %3170 = vmatpush.bf16.msra.mxu0 0
      %3171 = vmatpush.bf16.msra.mxu0 %v3150
      %3172 = vmatpush.bf16.msra.mxu0 %v3149
      %3173 = vmatpush.bf16.msra.mxu0 %v3148
      %3174 = vmatpush.bf16.msra.mxu0 %v3147
      %3175 = vmatmul.bf16.gmra.mxu0 %v3156
      %v3176 = vpop.f32.mrf.mxu0
      %v3177 = vadd.f32 0.0, %v3176
      %v3178 = vpop.f32.mrf.mxu0
      %v3179 = vadd.f32 0.0, %v3178
      %3180 = vmatmul.bf16.gmra.mxu0 %v3159
      %v3181 = vpop.f32.mrf.mxu0
      %v3182 = vadd.f32 0.0, %v3181
      %v3183 = vpop.f32.mrf.mxu0
      %v3184 = vadd.f32 0.0, %v3183
      %3185 = vmatmul.bf16.gmra.mxu0 %v3162
      %v3186 = vpop.f32.mrf.mxu0
      %v3187 = vadd.f32 0.0, %v3186
      %v3188 = vpop.f32.mrf.mxu0
      %v3189 = vadd.f32 0.0, %v3188
      %3190 = vmatmul.bf16.gmra.mxu0 %v3165
      %v3191 = vpop.f32.mrf.mxu0
      %v3192 = vadd.f32 0.0, %v3191
      %v3193 = vpop.f32.mrf.mxu0
      %v3194 = vadd.f32 0.0, %v3193
      %3195 = vdwg.mxu0
      %v3204 = vunpack.c.l.b16 %v3103
      %v3205 = vunpack.c.l.b16 %v3104
      %v3206 = vunpack.c.l.b16 %v3105
      %v3207 = vunpack.c.l.b16 %v3106
      %v3208 = vunpack.c.l.b16 %v3107
      %v3209 = vunpack.c.l.b16 %v3108
      %v3210 = vunpack.c.l.b16 %v3109
      %v3211 = vunpack.c.l.b16 %v3110
      %v3212 = vpack.c.b16 %v3205, %v3204
      %v3213 = vpack.c.b16 %v3207, %v3206
      %v3214 = vpack.c.b16 %v3209, %v3208
      %v3215 = vpack.c.b16 %v3211, %v3210
      %v3221 = vsel %vm334, %v3099, 0
      %v3224 = vsel %vm334, %v3100, 0
      %v3227 = vsel %vm334, %v3101, 0
      %v3230 = vsel %vm334, %v3102, 0
      %3232 = vmatpush.bf16.msra.mxu0 0
      %3233 = vmatpush.bf16.msra.mxu0 0
      %3234 = vmatpush.bf16.msra.mxu0 0
      %3235 = vmatpush.bf16.msra.mxu0 0
      %3236 = vmatpush.bf16.msra.mxu0 %v3215
      %3237 = vmatpush.bf16.msra.mxu0 %v3214
      %3238 = vmatpush.bf16.msra.mxu0 %v3213
      %3239 = vmatpush.bf16.msra.mxu0 %v3212
      %3240 = vmatmul.bf16.gmra.mxu0 %v3221
      %v3241 = vpop.f32.mrf.mxu0
      %v3242 = vadd.f32 %v3177, %v3241
      %v3243 = vpop.f32.mrf.mxu0
      %v3244 = vadd.f32 %v3179, %v3243
      %3245 = vmatmul.bf16.gmra.mxu0 %v3224
      %v3246 = vpop.f32.mrf.mxu0
      %v3247 = vadd.f32 %v3182, %v3246
      %v3248 = vpop.f32.mrf.mxu0
      %v3249 = vadd.f32 %v3184, %v3248
      %3250 = vmatmul.bf16.gmra.mxu0 %v3227
      %v3251 = vpop.f32.mrf.mxu0
      %v3252 = vadd.f32 %v3187, %v3251
      %v3253 = vpop.f32.mrf.mxu0
      %v3254 = vadd.f32 %v3189, %v3253
      %3255 = vmatmul.bf16.gmra.mxu0 %v3230
      %v3256 = vpop.f32.mrf.mxu0
      %v3257 = vadd.f32 %v3192, %v3256
      %v3258 = vpop.f32.mrf.mxu0
      %v3259 = vadd.f32 %v3194, %v3258
      %3260 = vdwg.mxu0
      %v3261 = vld [vmem:[#allocation4 + $0x2] sm:$0xff]
      %v3262 = vld [vmem:[#allocation4 + $0x12] sm:$0xff]
      %v3263 = vld [vmem:[#allocation4 + $0x22] sm:$0xff]
      %v3264 = vld [vmem:[#allocation4 + $0x32] sm:$0xff]
      %v3265 = vld [vmem:[#allocation4 + $0x42] sm:$0xff]
      %v3266 = vld [vmem:[#allocation4 + $0x52] sm:$0xff]
      %v3267 = vld [vmem:[#allocation4 + $0x62] sm:$0xff]
      %v3268 = vld [vmem:[#allocation4 + $0x72] sm:$0xff]
      %v3269 = vpack.c.bf16 %v3262, %v3261
      %v3270 = vpack.c.bf16 %v3264, %v3263
      %v3271 = vpack.c.bf16 %v3266, %v3265
      %v3272 = vpack.c.bf16 %v3268, %v3267
      %v3273 = vld [vmem:[%s5 + $0x40] sm:$0xf]
      %v3274 = vld [vmem:[%s5 + $0x44] sm:$0xf]
      %v3275 = vld [vmem:[%s5 + $0x48] sm:$0xf]
      %v3276 = vld [vmem:[%s5 + $0x4c] sm:$0xf]
      %v3277 = vld [vmem:[%s5 + $0x50] sm:$0xf]
      %v3278 = vld [vmem:[%s5 + $0x54] sm:$0xf]
      %v3279 = vld [vmem:[%s5 + $0x58] sm:$0xf]
      %v3280 = vld [vmem:[%s5 + $0x5c] sm:$0xf]
      %v3289 = vunpack.c.l.b16 %v3273
      %v3290 = vunpack.c.l.b16 %v3274
      %v3291 = vunpack.c.l.b16 %v3275
      %v3292 = vunpack.c.l.b16 %v3276
      %v3293 = vunpack.c.l.b16 %v3277
      %v3294 = vunpack.c.l.b16 %v3278
      %v3295 = vunpack.c.l.b16 %v3279
      %v3296 = vunpack.c.l.b16 %v3280
      %v3297 = vpack.c.b16 %v3290, %v3289
      %v3298 = vpack.c.b16 %v3292, %v3291
      %v3299 = vpack.c.b16 %v3294, %v3293
      %v3300 = vpack.c.b16 %v3296, %v3295
      %v3306 = vsel %vm334, %v3269, 0
      %v3309 = vsel %vm334, %v3270, 0
      %v3312 = vsel %vm334, %v3271, 0
      %v3315 = vsel %vm334, %v3272, 0
      %3317 = vmatpush.bf16.msra.mxu0 0
      %3318 = vmatpush.bf16.msra.mxu0 0
      %3319 = vmatpush.bf16.msra.mxu0 0
      %3320 = vmatpush.bf16.msra.mxu0 0
      %3321 = vmatpush.bf16.msra.mxu0 %v3300
      %3322 = vmatpush.bf16.msra.mxu0 %v3299
      %3323 = vmatpush.bf16.msra.mxu0 %v3298
      %3324 = vmatpush.bf16.msra.mxu0 %v3297
      %3325 = vmatmul.bf16.gmra.mxu0 %v3306
      %v3326 = vpop.f32.mrf.mxu0
      %v3327 = vadd.f32 0.0, %v3326
      %v3328 = vpop.f32.mrf.mxu0
      %v3329 = vadd.f32 0.0, %v3328
      %3330 = vmatmul.bf16.gmra.mxu0 %v3309
      %v3331 = vpop.f32.mrf.mxu0
      %v3332 = vadd.f32 0.0, %v3331
      %v3333 = vpop.f32.mrf.mxu0
      %v3334 = vadd.f32 0.0, %v3333
      %3335 = vmatmul.bf16.gmra.mxu0 %v3312
      %v3336 = vpop.f32.mrf.mxu0
      %v3337 = vadd.f32 0.0, %v3336
      %v3338 = vpop.f32.mrf.mxu0
      %v3339 = vadd.f32 0.0, %v3338
      %3340 = vmatmul.bf16.gmra.mxu0 %v3315
      %v3341 = vpop.f32.mrf.mxu0
      %v3342 = vadd.f32 0.0, %v3341
      %v3343 = vpop.f32.mrf.mxu0
      %v3344 = vadd.f32 0.0, %v3343
      %3345 = vdwg.mxu0
      %v3346 = vadd.f32 %v3242, %v3327
      %v3347 = vadd.f32 %v3244, %v3329
      %v3348 = vadd.f32 %v3247, %v3332
      %v3349 = vadd.f32 %v3249, %v3334
      %v3350 = vadd.f32 %v3252, %v3337
      %v3351 = vadd.f32 %v3254, %v3339
      %v3352 = vadd.f32 %v3257, %v3342
      %v3353 = vadd.f32 %v3259, %v3344
      %v3354 = vld [vmem:[%s3082] sm:$0xff]
      %v3355 = vld [vmem:[%s3082 + $0x10] sm:$0xff]
      %v3356 = vld [vmem:[%s3082 + $0x20] sm:$0xff]
      %v3357 = vld [vmem:[%s3082 + $0x30] sm:$0xff]
      %v3358 = vld [vmem:[%s3082 + $0x40] sm:$0xff]
      %v3359 = vld [vmem:[%s3082 + $0x50] sm:$0xff]
      %v3360 = vld [vmem:[%s3082 + $0x60] sm:$0xff]
      %v3361 = vld [vmem:[%s3082 + $0x70] sm:$0xff]
      %v3362 = vpack.c.bf16 %v3355, %v3354
      %v3363 = vpack.c.bf16 %v3357, %v3356
      %v3364 = vpack.c.bf16 %v3359, %v3358
      %v3365 = vpack.c.bf16 %v3361, %v3360
      %v3366 = vld [vmem:[%s5 + $0x60] sm:$0xf]
      %v3367 = vld [vmem:[%s5 + $0x64] sm:$0xf]
      %v3368 = vld [vmem:[%s5 + $0x68] sm:$0xf]
      %v3369 = vld [vmem:[%s5 + $0x6c] sm:$0xf]
      %v3370 = vld [vmem:[%s5 + $0x70] sm:$0xf]
      %v3371 = vld [vmem:[%s5 + $0x74] sm:$0xf]
      %v3372 = vld [vmem:[%s5 + $0x78] sm:$0xf]
      %v3373 = vld [vmem:[%s5 + $0x7c] sm:$0xf]
      %v3382 = vunpack.c.l.b16 %v3366
      %v3383 = vunpack.c.l.b16 %v3367
      %v3384 = vunpack.c.l.b16 %v3368
      %v3385 = vunpack.c.l.b16 %v3369
      %v3386 = vunpack.c.l.b16 %v3370
      %v3387 = vunpack.c.l.b16 %v3371
      %v3388 = vunpack.c.l.b16 %v3372
      %v3389 = vunpack.c.l.b16 %v3373
      %v3390 = vpack.c.b16 %v3383, %v3382
      %v3391 = vpack.c.b16 %v3385, %v3384
      %v3392 = vpack.c.b16 %v3387, %v3386
      %v3393 = vpack.c.b16 %v3389, %v3388
      %v3399 = vsel %vm334, %v3362, 0
      %v3402 = vsel %vm334, %v3363, 0
      %v3405 = vsel %vm334, %v3364, 0
      %v3408 = vsel %vm334, %v3365, 0
      %3410 = vmatpush.bf16.msra.mxu0 0
      %3411 = vmatpush.bf16.msra.mxu0 0
      %3412 = vmatpush.bf16.msra.mxu0 0
      %3413 = vmatpush.bf16.msra.mxu0 0
      %3414 = vmatpush.bf16.msra.mxu0 %v3393
      %3415 = vmatpush.bf16.msra.mxu0 %v3392
      %3416 = vmatpush.bf16.msra.mxu0 %v3391
      %3417 = vmatpush.bf16.msra.mxu0 %v3390
      %3418 = vmatmul.bf16.gmra.mxu0 %v3399
      %v3419 = vpop.f32.mrf.mxu0
      %v3420 = vadd.f32 0.0, %v3419
      %v3421 = vpop.f32.mrf.mxu0
      %v3422 = vadd.f32 0.0, %v3421
      %3423 = vmatmul.bf16.gmra.mxu0 %v3402
      %v3424 = vpop.f32.mrf.mxu0
      %v3425 = vadd.f32 0.0, %v3424
      %v3426 = vpop.f32.mrf.mxu0
      %v3427 = vadd.f32 0.0, %v3426
      %3428 = vmatmul.bf16.gmra.mxu0 %v3405
      %v3429 = vpop.f32.mrf.mxu0
      %v3430 = vadd.f32 0.0, %v3429
      %v3431 = vpop.f32.mrf.mxu0
      %v3432 = vadd.f32 0.0, %v3431
      %3433 = vmatmul.bf16.gmra.mxu0 %v3408
      %v3434 = vpop.f32.mrf.mxu0
      %v3435 = vadd.f32 0.0, %v3434
      %v3436 = vpop.f32.mrf.mxu0
      %v3437 = vadd.f32 0.0, %v3436
      %3438 = vdwg.mxu0
      %v3439 = vadd.f32 %v3346, %v3420
      %v3440 = vadd.f32 %v3347, %v3422
      %v3441 = vadd.f32 %v3348, %v3425
      %v3442 = vadd.f32 %v3349, %v3427
      %v3443 = vadd.f32 %v3350, %v3430
      %v3444 = vadd.f32 %v3351, %v3432
      %v3445 = vadd.f32 %v3352, %v3435
      %v3446 = vadd.f32 %v3353, %v3437
      %v3447 = vld [vmem:[%s3082 + $0x1] sm:$0xff]
      %v3448 = vld [vmem:[%s3082 + $0x11] sm:$0xff]
      %v3449 = vld [vmem:[%s3082 + $0x21] sm:$0xff]
      %v3450 = vld [vmem:[%s3082 + $0x31] sm:$0xff]
      %v3451 = vld [vmem:[%s3082 + $0x41] sm:$0xff]
      %v3452 = vld [vmem:[%s3082 + $0x51] sm:$0xff]
      %v3453 = vld [vmem:[%s3082 + $0x61] sm:$0xff]
      %v3454 = vld [vmem:[%s3082 + $0x71] sm:$0xff]
      %v3455 = vpack.c.bf16 %v3448, %v3447
      %v3456 = vpack.c.bf16 %v3450, %v3449
      %v3457 = vpack.c.bf16 %v3452, %v3451
      %v3458 = vpack.c.bf16 %v3454, %v3453
      %v3459 = vld [vmem:[%s5 + $0x80] sm:$0xf]
      %v3460 = vld [vmem:[%s5 + $0x84] sm:$0xf]
      %v3461 = vld [vmem:[%s5 + $0x88] sm:$0xf]
      %v3462 = vld [vmem:[%s5 + $0x8c] sm:$0xf]
      %v3463 = vld [vmem:[%s5 + $0x90] sm:$0xf]
      %v3464 = vld [vmem:[%s5 + $0x94] sm:$0xf]
      %v3465 = vld [vmem:[%s5 + $0x98] sm:$0xf]
      %v3466 = vld [vmem:[%s5 + $0x9c] sm:$0xf]
      %v3475 = vunpack.c.l.b16 %v3459
      %v3476 = vunpack.c.l.b16 %v3460
      %v3477 = vunpack.c.l.b16 %v3461
      %v3478 = vunpack.c.l.b16 %v3462
      %v3479 = vunpack.c.l.b16 %v3463
      %v3480 = vunpack.c.l.b16 %v3464
      %v3481 = vunpack.c.l.b16 %v3465
      %v3482 = vunpack.c.l.b16 %v3466
      %v3483 = vpack.c.b16 %v3476, %v3475
      %v3484 = vpack.c.b16 %v3478, %v3477
      %v3485 = vpack.c.b16 %v3480, %v3479
      %v3486 = vpack.c.b16 %v3482, %v3481
      %v3492 = vsel %vm334, %v3455, 0
      %v3495 = vsel %vm334, %v3456, 0
      %v3498 = vsel %vm334, %v3457, 0
      %v3501 = vsel %vm334, %v3458, 0
      %3503 = vmatpush.bf16.msra.mxu0 0
      %3504 = vmatpush.bf16.msra.mxu0 0
      %3505 = vmatpush.bf16.msra.mxu0 0
      %3506 = vmatpush.bf16.msra.mxu0 0
      %3507 = vmatpush.bf16.msra.mxu0 %v3486
      %3508 = vmatpush.bf16.msra.mxu0 %v3485
      %3509 = vmatpush.bf16.msra.mxu0 %v3484
      %3510 = vmatpush.bf16.msra.mxu0 %v3483
      %3511 = vmatmul.bf16.gmra.mxu0 %v3492
      %v3512 = vpop.f32.mrf.mxu0
      %v3513 = vadd.f32 0.0, %v3512
      %v3514 = vpop.f32.mrf.mxu0
      %v3515 = vadd.f32 0.0, %v3514
      %3516 = vmatmul.bf16.gmra.mxu0 %v3495
      %v3517 = vpop.f32.mrf.mxu0
      %v3518 = vadd.f32 0.0, %v3517
      %v3519 = vpop.f32.mrf.mxu0
      %v3520 = vadd.f32 0.0, %v3519
      %3521 = vmatmul.bf16.gmra.mxu0 %v3498
      %v3522 = vpop.f32.mrf.mxu0
      %v3523 = vadd.f32 0.0, %v3522
      %v3524 = vpop.f32.mrf.mxu0
      %v3525 = vadd.f32 0.0, %v3524
      %3526 = vmatmul.bf16.gmra.mxu0 %v3501
      %v3527 = vpop.f32.mrf.mxu0
      %v3528 = vadd.f32 0.0, %v3527
      %v3529 = vpop.f32.mrf.mxu0
      %v3530 = vadd.f32 0.0, %v3529
      %3531 = vdwg.mxu0
      %v3532 = vadd.f32 %v3439, %v3513
      %v3533 = vadd.f32 %v3440, %v3515
      %v3534 = vadd.f32 %v3441, %v3518
      %v3535 = vadd.f32 %v3442, %v3520
      %v3536 = vadd.f32 %v3443, %v3523
      %v3537 = vadd.f32 %v3444, %v3525
      %v3538 = vadd.f32 %v3445, %v3528
      %v3539 = vadd.f32 %v3446, %v3530
      %v3540 = vld [vmem:[%s3082 + $0x2] sm:$0xff]
      %v3541 = vld [vmem:[%s3082 + $0x12] sm:$0xff]
      %v3542 = vld [vmem:[%s3082 + $0x22] sm:$0xff]
      %v3543 = vld [vmem:[%s3082 + $0x32] sm:$0xff]
      %v3544 = vld [vmem:[%s3082 + $0x42] sm:$0xff]
      %v3545 = vld [vmem:[%s3082 + $0x52] sm:$0xff]
      %v3546 = vld [vmem:[%s3082 + $0x62] sm:$0xff]
      %v3547 = vld [vmem:[%s3082 + $0x72] sm:$0xff]
      %v3548 = vpack.c.bf16 %v3541, %v3540
      %v3549 = vpack.c.bf16 %v3543, %v3542
      %v3550 = vpack.c.bf16 %v3545, %v3544
      %v3551 = vpack.c.bf16 %v3547, %v3546
      %v3552 = vld [vmem:[%s5 + $0xa0] sm:$0xf]
      %v3553 = vld [vmem:[%s5 + $0xa4] sm:$0xf]
      %v3554 = vld [vmem:[%s5 + $0xa8] sm:$0xf]
      %v3555 = vld [vmem:[%s5 + $0xac] sm:$0xf]
      %v3556 = vld [vmem:[%s5 + $0xb0] sm:$0xf]
      %v3557 = vld [vmem:[%s5 + $0xb4] sm:$0xf]
      %v3558 = vld [vmem:[%s5 + $0xb8] sm:$0xf]
      %v3559 = vld [vmem:[%s5 + $0xbc] sm:$0xf]
      %v3568 = vunpack.c.l.b16 %v3552
      %v3569 = vunpack.c.l.b16 %v3553
      %v3570 = vunpack.c.l.b16 %v3554
      %v3571 = vunpack.c.l.b16 %v3555
      %v3572 = vunpack.c.l.b16 %v3556
      %v3573 = vunpack.c.l.b16 %v3557
      %v3574 = vunpack.c.l.b16 %v3558
      %v3575 = vunpack.c.l.b16 %v3559
      %v3576 = vpack.c.b16 %v3569, %v3568
      %v3577 = vpack.c.b16 %v3571, %v3570
      %v3578 = vpack.c.b16 %v3573, %v3572
      %v3579 = vpack.c.b16 %v3575, %v3574
      %v3585 = vsel %vm334, %v3548, 0
      %v3588 = vsel %vm334, %v3549, 0
      %v3591 = vsel %vm334, %v3550, 0
      %v3594 = vsel %vm334, %v3551, 0
      %3596 = vmatpush.bf16.msra.mxu0 0
      %3597 = vmatpush.bf16.msra.mxu0 0
      %3598 = vmatpush.bf16.msra.mxu0 0
      %3599 = vmatpush.bf16.msra.mxu0 0
      %3600 = vmatpush.bf16.msra.mxu0 %v3579
      %3601 = vmatpush.bf16.msra.mxu0 %v3578
      %3602 = vmatpush.bf16.msra.mxu0 %v3577
      %3603 = vmatpush.bf16.msra.mxu0 %v3576
      %3604 = vmatmul.bf16.gmra.mxu0 %v3585
      %v3605 = vpop.f32.mrf.mxu0
      %v3606 = vadd.f32 0.0, %v3605
      %v3607 = vpop.f32.mrf.mxu0
      %v3608 = vadd.f32 0.0, %v3607
      %3609 = vmatmul.bf16.gmra.mxu0 %v3588
      %v3610 = vpop.f32.mrf.mxu0
      %v3611 = vadd.f32 0.0, %v3610
      %v3612 = vpop.f32.mrf.mxu0
      %v3613 = vadd.f32 0.0, %v3612
      %3614 = vmatmul.bf16.gmra.mxu0 %v3591
      %v3615 = vpop.f32.mrf.mxu0
      %v3616 = vadd.f32 0.0, %v3615
      %v3617 = vpop.f32.mrf.mxu0
      %v3618 = vadd.f32 0.0, %v3617
      %3619 = vmatmul.bf16.gmra.mxu0 %v3594
      %v3620 = vpop.f32.mrf.mxu0
      %v3621 = vadd.f32 0.0, %v3620
      %v3622 = vpop.f32.mrf.mxu0
      %v3623 = vadd.f32 0.0, %v3622
      %3624 = vdwg.mxu0
      %v3625 = vadd.f32 %v3532, %v3606
      %v3626 = vadd.f32 %v3533, %v3608
      %v3627 = vadd.f32 %v3534, %v3611
      %v3628 = vadd.f32 %v3535, %v3613
      %v3629 = vadd.f32 %v3536, %v3616
      %v3630 = vadd.f32 %v3537, %v3618
      %v3631 = vadd.f32 %v3538, %v3621
      %v3632 = vadd.f32 %v3539, %v3623
      %s3633 = scalar_lea.vmem [#allocation4], 32
      %v3634 = vld [vmem:[%s3633] sm:$0xff]
      %v3635 = vld [vmem:[%s3633 + $0x10] sm:$0xff]
      %v3636 = vld [vmem:[%s3633 + $0x20] sm:$0xff]
      %v3637 = vld [vmem:[%s3633 + $0x30] sm:$0xff]
      %v3638 = vld [vmem:[%s3633 + $0x40] sm:$0xff]
      %v3639 = vld [vmem:[%s3633 + $0x50] sm:$0xff]
      %v3640 = vld [vmem:[%s3633 + $0x60] sm:$0xff]
      %v3641 = vld [vmem:[%s3633 + $0x70] sm:$0xff]
      %v3642 = vpack.c.bf16 %v3635, %v3634
      %v3643 = vpack.c.bf16 %v3637, %v3636
      %v3644 = vpack.c.bf16 %v3639, %v3638
      %v3645 = vpack.c.bf16 %v3641, %v3640
      %v3646 = vld [vmem:[%s5 + $0xc0] sm:$0xf]
      %v3647 = vld [vmem:[%s5 + $0xc4] sm:$0xf]
      %v3648 = vld [vmem:[%s5 + $0xc8] sm:$0xf]
      %v3649 = vld [vmem:[%s5 + $0xcc] sm:$0xf]
      %v3650 = vld [vmem:[%s5 + $0xd0] sm:$0xf]
      %v3651 = vld [vmem:[%s5 + $0xd4] sm:$0xf]
      %v3652 = vld [vmem:[%s5 + $0xd8] sm:$0xf]
      %v3653 = vld [vmem:[%s5 + $0xdc] sm:$0xf]
      %v3662 = vunpack.c.l.b16 %v3646
      %v3663 = vunpack.c.l.b16 %v3647
      %v3664 = vunpack.c.l.b16 %v3648
      %v3665 = vunpack.c.l.b16 %v3649
      %v3666 = vunpack.c.l.b16 %v3650
      %v3667 = vunpack.c.l.b16 %v3651
      %v3668 = vunpack.c.l.b16 %v3652
      %v3669 = vunpack.c.l.b16 %v3653
      %v3670 = vpack.c.b16 %v3663, %v3662
      %v3671 = vpack.c.b16 %v3665, %v3664
      %v3672 = vpack.c.b16 %v3667, %v3666
      %v3673 = vpack.c.b16 %v3669, %v3668
      %v3679 = vsel %vm334, %v3642, 0
      %v3682 = vsel %vm334, %v3643, 0
      %v3685 = vsel %vm334, %v3644, 0
      %v3688 = vsel %vm334, %v3645, 0
      %3690 = vmatpush.bf16.msra.mxu0 0
      %3691 = vmatpush.bf16.msra.mxu0 0
      %3692 = vmatpush.bf16.msra.mxu0 0
      %3693 = vmatpush.bf16.msra.mxu0 0
      %3694 = vmatpush.bf16.msra.mxu0 %v3673
      %3695 = vmatpush.bf16.msra.mxu0 %v3672
      %3696 = vmatpush.bf16.msra.mxu0 %v3671
      %3697 = vmatpush.bf16.msra.mxu0 %v3670
      %3698 = vmatmul.bf16.gmra.mxu0 %v3679
      %v3699 = vpop.f32.mrf.mxu0
      %v3700 = vadd.f32 0.0, %v3699
      %v3701 = vpop.f32.mrf.mxu0
      %v3702 = vadd.f32 0.0, %v3701
      %3703 = vmatmul.bf16.gmra.mxu0 %v3682
      %v3704 = vpop.f32.mrf.mxu0
      %v3705 = vadd.f32 0.0, %v3704
      %v3706 = vpop.f32.mrf.mxu0
      %v3707 = vadd.f32 0.0, %v3706
      %3708 = vmatmul.bf16.gmra.mxu0 %v3685
      %v3709 = vpop.f32.mrf.mxu0
      %v3710 = vadd.f32 0.0, %v3709
      %v3711 = vpop.f32.mrf.mxu0
      %v3712 = vadd.f32 0.0, %v3711
      %3713 = vmatmul.bf16.gmra.mxu0 %v3688
      %v3714 = vpop.f32.mrf.mxu0
      %v3715 = vadd.f32 0.0, %v3714
      %v3716 = vpop.f32.mrf.mxu0
      %v3717 = vadd.f32 0.0, %v3716
      %3718 = vdwg.mxu0
      %v3719 = vadd.f32 %v3625, %v3700
      %v3720 = vadd.f32 %v3626, %v3702
      %v3721 = vadd.f32 %v3627, %v3705
      %v3722 = vadd.f32 %v3628, %v3707
      %v3723 = vadd.f32 %v3629, %v3710
      %v3724 = vadd.f32 %v3630, %v3712
      %v3725 = vadd.f32 %v3631, %v3715
      %v3726 = vadd.f32 %v3632, %v3717
      %v3727 = vld [vmem:[%s3633 + $0x1] sm:$0xff]
      %v3728 = vld [vmem:[%s3633 + $0x11] sm:$0xff]
      %v3729 = vld [vmem:[%s3633 + $0x21] sm:$0xff]
      %v3730 = vld [vmem:[%s3633 + $0x31] sm:$0xff]
      %v3731 = vld [vmem:[%s3633 + $0x41] sm:$0xff]
      %v3732 = vld [vmem:[%s3633 + $0x51] sm:$0xff]
      %v3733 = vld [vmem:[%s3633 + $0x61] sm:$0xff]
      %v3734 = vld [vmem:[%s3633 + $0x71] sm:$0xff]
      %v3735 = vpack.c.bf16 %v3728, %v3727
      %v3736 = vpack.c.bf16 %v3730, %v3729
      %v3737 = vpack.c.bf16 %v3732, %v3731
      %v3738 = vpack.c.bf16 %v3734, %v3733
      %v3739 = vld [vmem:[%s5 + $0xe0] sm:$0xf]
      %v3740 = vld [vmem:[%s5 + $0xe4] sm:$0xf]
      %v3741 = vld [vmem:[%s5 + $0xe8] sm:$0xf]
      %v3742 = vld [vmem:[%s5 + $0xec] sm:$0xf]
      %v3743 = vld [vmem:[%s5 + $0xf0] sm:$0xf]
      %v3744 = vld [vmem:[%s5 + $0xf4] sm:$0xf]
      %v3745 = vld [vmem:[%s5 + $0xf8] sm:$0xf]
      %v3746 = vld [vmem:[%s5 + $0xfc] sm:$0xf]
      %v3755 = vunpack.c.l.b16 %v3739
      %v3756 = vunpack.c.l.b16 %v3740
      %v3757 = vunpack.c.l.b16 %v3741
      %v3758 = vunpack.c.l.b16 %v3742
      %v3759 = vunpack.c.l.b16 %v3743
      %v3760 = vunpack.c.l.b16 %v3744
      %v3761 = vunpack.c.l.b16 %v3745
      %v3762 = vunpack.c.l.b16 %v3746
      %v3763 = vpack.c.b16 %v3756, %v3755
      %v3764 = vpack.c.b16 %v3758, %v3757
      %v3765 = vpack.c.b16 %v3760, %v3759
      %v3766 = vpack.c.b16 %v3762, %v3761
      %v3772 = vsel %vm334, %v3735, 0
      %v3775 = vsel %vm334, %v3736, 0
      %v3778 = vsel %vm334, %v3737, 0
      %v3781 = vsel %vm334, %v3738, 0
      %3783 = vmatpush.bf16.msra.mxu0 0
      %3784 = vmatpush.bf16.msra.mxu0 0
      %3785 = vmatpush.bf16.msra.mxu0 0
      %3786 = vmatpush.bf16.msra.mxu0 0
      %3787 = vmatpush.bf16.msra.mxu0 %v3766
      %3788 = vmatpush.bf16.msra.mxu0 %v3765
      %3789 = vmatpush.bf16.msra.mxu0 %v3764
      %3790 = vmatpush.bf16.msra.mxu0 %v3763
      %3791 = vmatmul.bf16.gmra.mxu0 %v3772
      %v3792 = vpop.f32.mrf.mxu0
      %v3793 = vadd.f32 0.0, %v3792
      %v3794 = vpop.f32.mrf.mxu0
      %v3795 = vadd.f32 0.0, %v3794
      %3796 = vmatmul.bf16.gmra.mxu0 %v3775
      %v3797 = vpop.f32.mrf.mxu0
      %v3798 = vadd.f32 0.0, %v3797
      %v3799 = vpop.f32.mrf.mxu0
      %v3800 = vadd.f32 0.0, %v3799
      %3801 = vmatmul.bf16.gmra.mxu0 %v3778
      %v3802 = vpop.f32.mrf.mxu0
      %v3803 = vadd.f32 0.0, %v3802
      %v3804 = vpop.f32.mrf.mxu0
      %v3805 = vadd.f32 0.0, %v3804
      %3806 = vmatmul.bf16.gmra.mxu0 %v3781
      %v3807 = vpop.f32.mrf.mxu0
      %v3808 = vadd.f32 0.0, %v3807
      %v3809 = vpop.f32.mrf.mxu0
      %v3810 = vadd.f32 0.0, %v3809
      %3811 = vdwg.mxu0
      %v3812 = vadd.f32 %v3719, %v3793
      %v3813 = vadd.f32 %v3720, %v3795
      %v3814 = vadd.f32 %v3721, %v3798
      %v3815 = vadd.f32 %v3722, %v3800
      %v3816 = vadd.f32 %v3723, %v3803
      %v3817 = vadd.f32 %v3724, %v3805
      %v3818 = vadd.f32 %v3725, %v3808
      %v3819 = vadd.f32 %v3726, %v3810
      %v3820 = vld [vmem:[%s3633 + $0x2] sm:$0xff]
      %v3821 = vld [vmem:[%s3633 + $0x12] sm:$0xff]
      %v3822 = vld [vmem:[%s3633 + $0x22] sm:$0xff]
      %v3823 = vld [vmem:[%s3633 + $0x32] sm:$0xff]
      %v3824 = vld [vmem:[%s3633 + $0x42] sm:$0xff]
      %v3825 = vld [vmem:[%s3633 + $0x52] sm:$0xff]
      %v3826 = vld [vmem:[%s3633 + $0x62] sm:$0xff]
      %v3827 = vld [vmem:[%s3633 + $0x72] sm:$0xff]
      %v3828 = vpack.c.bf16 %v3821, %v3820
      %v3829 = vpack.c.bf16 %v3823, %v3822
      %v3830 = vpack.c.bf16 %v3825, %v3824
      %v3831 = vpack.c.bf16 %v3827, %v3826
      %v3832 = vld [vmem:[%s5 + $0x100] sm:$0xf]
      %v3833 = vld [vmem:[%s5 + $0x104] sm:$0xf]
      %v3834 = vld [vmem:[%s5 + $0x108] sm:$0xf]
      %v3835 = vld [vmem:[%s5 + $0x10c] sm:$0xf]
      %v3836 = vld [vmem:[%s5 + $0x110] sm:$0xf]
      %v3837 = vld [vmem:[%s5 + $0x114] sm:$0xf]
      %v3838 = vld [vmem:[%s5 + $0x118] sm:$0xf]
      %v3839 = vld [vmem:[%s5 + $0x11c] sm:$0xf]
      %v3848 = vunpack.c.l.b16 %v3832
      %v3849 = vunpack.c.l.b16 %v3833
      %v3850 = vunpack.c.l.b16 %v3834
      %v3851 = vunpack.c.l.b16 %v3835
      %v3852 = vunpack.c.l.b16 %v3836
      %v3853 = vunpack.c.l.b16 %v3837
      %v3854 = vunpack.c.l.b16 %v3838
      %v3855 = vunpack.c.l.b16 %v3839
      %v3856 = vpack.c.b16 %v3849, %v3848
      %v3857 = vpack.c.b16 %v3851, %v3850
      %v3858 = vpack.c.b16 %v3853, %v3852
      %v3859 = vpack.c.b16 %v3855, %v3854
      %v3865 = vsel %vm334, %v3828, 0
      %v3868 = vsel %vm334, %v3829, 0
      %v3871 = vsel %vm334, %v3830, 0
      %v3874 = vsel %vm334, %v3831, 0
      %3876 = vmatpush.bf16.msra.mxu0 0
      %3877 = vmatpush.bf16.msra.mxu0 0
      %3878 = vmatpush.bf16.msra.mxu0 0
      %3879 = vmatpush.bf16.msra.mxu0 0
      %3880 = vmatpush.bf16.msra.mxu0 %v3859
      %3881 = vmatpush.bf16.msra.mxu0 %v3858
      %3882 = vmatpush.bf16.msra.mxu0 %v3857
      %3883 = vmatpush.bf16.msra.mxu0 %v3856
      %3884 = vmatmul.bf16.gmra.mxu0 %v3865
      %v3885 = vpop.f32.mrf.mxu0
      %v3886 = vadd.f32 0.0, %v3885
      %v3887 = vpop.f32.mrf.mxu0
      %v3888 = vadd.f32 0.0, %v3887
      %3889 = vmatmul.bf16.gmra.mxu0 %v3868
      %v3890 = vpop.f32.mrf.mxu0
      %v3891 = vadd.f32 0.0, %v3890
      %v3892 = vpop.f32.mrf.mxu0
      %v3893 = vadd.f32 0.0, %v3892
      %3894 = vmatmul.bf16.gmra.mxu0 %v3871
      %v3895 = vpop.f32.mrf.mxu0
      %v3896 = vadd.f32 0.0, %v3895
      %v3897 = vpop.f32.mrf.mxu0
      %v3898 = vadd.f32 0.0, %v3897
      %3899 = vmatmul.bf16.gmra.mxu0 %v3874
      %v3900 = vpop.f32.mrf.mxu0
      %v3901 = vadd.f32 0.0, %v3900
      %v3902 = vpop.f32.mrf.mxu0
      %v3903 = vadd.f32 0.0, %v3902
      %3904 = vdwg.mxu0
      %v3905 = vadd.f32 %v3812, %v3886
      %v3906 = vadd.f32 %v3813, %v3888
      %v3907 = vadd.f32 %v3814, %v3891
      %v3908 = vadd.f32 %v3815, %v3893
      %v3909 = vadd.f32 %v3816, %v3896
      %v3910 = vadd.f32 %v3817, %v3898
      %v3911 = vadd.f32 %v3818, %v3901
      %v3912 = vadd.f32 %v3819, %v3903
      %v3913 = vld [vmem:[%s6] sm:$0x1]
      %v3915 = vperm.slane %v3913, 0
      %v3917 = vadd.f32 %v3905, %v3915
      %v3918 = vadd.f32 %v3906, %v3915
      %v3919 = vadd.f32 %v3907, %v3915
      %v3920 = vadd.f32 %v3908, %v3915
      %v3921 = vadd.f32 %v3909, %v3915
      %v3922 = vadd.f32 %v3910, %v3915
      %v3923 = vadd.f32 %v3911, %v3915
      %v3924 = vadd.f32 %v3912, %v3915
      %v3925 = vmax.f32 %v3917, 0.0
      %v3926 = vmax.f32 %v3918, 0.0
      %v3927 = vmax.f32 %v3919, 0.0
      %v3928 = vmax.f32 %v3920, 0.0
      %v3929 = vmax.f32 %v3921, 0.0
      %v3930 = vmax.f32 %v3922, 0.0
      %v3931 = vmax.f32 %v3923, 0.0
      %v3932 = vmax.f32 %v3924, 0.0
      %s3933 = scalar_lea.vmem [#allocation5], 16
      %3934 = vst.msk [vmem:[%s3933 + $0x1] sm:$0xff] %vm334, %v3925
      %3935 = vst.msk [vmem:[%s3933 + $0x11] sm:$0xff] %vm334, %v3926
      %3936 = vst.msk [vmem:[%s3933 + $0x21] sm:$0xff] %vm334, %v3927
      %3937 = vst.msk [vmem:[%s3933 + $0x31] sm:$0xff] %vm334, %v3928
      %3938 = vst.msk [vmem:[%s3933 + $0x41] sm:$0xff] %vm334, %v3929
      %3939 = vst.msk [vmem:[%s3933 + $0x51] sm:$0xff] %vm334, %v3930
      %3940 = vst.msk [vmem:[%s3933 + $0x61] sm:$0xff] %vm334, %v3931
      %3941 = vst.msk [vmem:[%s3933 + $0x71] sm:$0xff] %vm334, %v3932
      %v3942 = vld [vmem:[#allocation5] sm:$0xff]
      %v3943 = vld [vmem:[#allocation5 + $0x10] sm:$0xff]
      %v3944 = vld [vmem:[#allocation5 + $0x20] sm:$0xff]
      %v3945 = vld [vmem:[#allocation5 + $0x30] sm:$0xff]
      %v3946 = vld [vmem:[#allocation5 + $0x40] sm:$0xff]
      %v3947 = vld [vmem:[#allocation5 + $0x50] sm:$0xff]
      %v3948 = vld [vmem:[#allocation5 + $0x60] sm:$0xff]
      %v3949 = vld [vmem:[#allocation5 + $0x70] sm:$0xff]
      %v3950 = vpack.c.bf16 %v3943, %v3942
      %v3951 = vpack.c.bf16 %v3945, %v3944
      %v3952 = vpack.c.bf16 %v3947, %v3946
      %v3953 = vpack.c.bf16 %v3949, %v3948
      %v3954 = vld [vmem:[%s7] sm:$0xf]
      %v3955 = vld [vmem:[%s7 + $0x4] sm:$0xf]
      %v3956 = vld [vmem:[%s7 + $0x8] sm:$0xf]
      %v3957 = vld [vmem:[%s7 + $0xc] sm:$0xf]
      %v3958 = vld [vmem:[%s7 + $0x10] sm:$0xf]
      %v3959 = vld [vmem:[%s7 + $0x14] sm:$0xf]
      %v3960 = vld [vmem:[%s7 + $0x18] sm:$0xf]
      %v3961 = vld [vmem:[%s7 + $0x1c] sm:$0xf]
      %v3962 = vld [vmem:[#allocation5 + $0x1] sm:$0xff]
      %v3963 = vld [vmem:[#allocation5 + $0x11] sm:$0xff]
      %v3964 = vld [vmem:[#allocation5 + $0x21] sm:$0xff]
      %v3965 = vld [vmem:[#allocation5 + $0x31] sm:$0xff]
      %v3966 = vld [vmem:[#allocation5 + $0x41] sm:$0xff]
      %v3967 = vld [vmem:[#allocation5 + $0x51] sm:$0xff]
      %v3968 = vld [vmem:[#allocation5 + $0x61] sm:$0xff]
      %v3969 = vld [vmem:[#allocation5 + $0x71] sm:$0xff]
      %v3970 = vpack.c.bf16 %v3963, %v3962
      %v3971 = vpack.c.bf16 %v3965, %v3964
      %v3972 = vpack.c.bf16 %v3967, %v3966
      %v3973 = vpack.c.bf16 %v3969, %v3968
      %v3974 = vld [vmem:[%s7 + $0x20] sm:$0xf]
      %v3975 = vld [vmem:[%s7 + $0x24] sm:$0xf]
      %v3976 = vld [vmem:[%s7 + $0x28] sm:$0xf]
      %v3977 = vld [vmem:[%s7 + $0x2c] sm:$0xf]
      %v3978 = vld [vmem:[%s7 + $0x30] sm:$0xf]
      %v3979 = vld [vmem:[%s7 + $0x34] sm:$0xf]
      %v3980 = vld [vmem:[%s7 + $0x38] sm:$0xf]
      %v3981 = vld [vmem:[%s7 + $0x3c] sm:$0xf]
      %v3990 = vunpack.c.l.b16 %v3974
      %v3991 = vunpack.c.l.b16 %v3975
      %v3992 = vunpack.c.l.b16 %v3976
      %v3993 = vunpack.c.l.b16 %v3977
      %v3994 = vunpack.c.l.b16 %v3978
      %v3995 = vunpack.c.l.b16 %v3979
      %v3996 = vunpack.c.l.b16 %v3980
      %v3997 = vunpack.c.l.b16 %v3981
      %v3998 = vpack.c.b16 %v3991, %v3990
      %v3999 = vpack.c.b16 %v3993, %v3992
      %v4000 = vpack.c.b16 %v3995, %v3994
      %v4001 = vpack.c.b16 %v3997, %v3996
      %v4007 = vsel %vm334, %v3970, 0
      %v4010 = vsel %vm334, %v3971, 0
      %v4013 = vsel %vm334, %v3972, 0
      %v4016 = vsel %vm334, %v3973, 0
      %4018 = vmatpush.bf16.msra.mxu0 0
      %4019 = vmatpush.bf16.msra.mxu0 0
      %4020 = vmatpush.bf16.msra.mxu0 0
      %4021 = vmatpush.bf16.msra.mxu0 0
      %4022 = vmatpush.bf16.msra.mxu0 %v4001
      %4023 = vmatpush.bf16.msra.mxu0 %v4000
      %4024 = vmatpush.bf16.msra.mxu0 %v3999
      %4025 = vmatpush.bf16.msra.mxu0 %v3998
      %4026 = vmatmul.bf16.gmra.mxu0 %v4007
      %v4027 = vpop.f32.mrf.mxu0
      %v4028 = vadd.f32 0.0, %v4027
      %v4029 = vpop.f32.mrf.mxu0
      %v4030 = vadd.f32 0.0, %v4029
      %4031 = vmatmul.bf16.gmra.mxu0 %v4010
      %v4032 = vpop.f32.mrf.mxu0
      %v4033 = vadd.f32 0.0, %v4032
      %v4034 = vpop.f32.mrf.mxu0
      %v4035 = vadd.f32 0.0, %v4034
      %4036 = vmatmul.bf16.gmra.mxu0 %v4013
      %v4037 = vpop.f32.mrf.mxu0
      %v4038 = vadd.f32 0.0, %v4037
      %v4039 = vpop.f32.mrf.mxu0
      %v4040 = vadd.f32 0.0, %v4039
      %4041 = vmatmul.bf16.gmra.mxu0 %v4016
      %v4042 = vpop.f32.mrf.mxu0
      %v4043 = vadd.f32 0.0, %v4042
      %v4044 = vpop.f32.mrf.mxu0
      %v4045 = vadd.f32 0.0, %v4044
      %4046 = vdwg.mxu0
      %v4055 = vunpack.c.l.b16 %v3954
      %v4056 = vunpack.c.l.b16 %v3955
      %v4057 = vunpack.c.l.b16 %v3956
      %v4058 = vunpack.c.l.b16 %v3957
      %v4059 = vunpack.c.l.b16 %v3958
      %v4060 = vunpack.c.l.b16 %v3959
      %v4061 = vunpack.c.l.b16 %v3960
      %v4062 = vunpack.c.l.b16 %v3961
      %v4063 = vpack.c.b16 %v4056, %v4055
      %v4064 = vpack.c.b16 %v4058, %v4057
      %v4065 = vpack.c.b16 %v4060, %v4059
      %v4066 = vpack.c.b16 %v4062, %v4061
      %v4072 = vsel %vm334, %v3950, 0
      %v4075 = vsel %vm334, %v3951, 0
      %v4078 = vsel %vm334, %v3952, 0
      %v4081 = vsel %vm334, %v3953, 0
      %4083 = vmatpush.bf16.msra.mxu0 0
      %4084 = vmatpush.bf16.msra.mxu0 0
      %4085 = vmatpush.bf16.msra.mxu0 0
      %4086 = vmatpush.bf16.msra.mxu0 0
      %4087 = vmatpush.bf16.msra.mxu0 %v4066
      %4088 = vmatpush.bf16.msra.mxu0 %v4065
      %4089 = vmatpush.bf16.msra.mxu0 %v4064
      %4090 = vmatpush.bf16.msra.mxu0 %v4063
      %4091 = vmatmul.bf16.gmra.mxu0 %v4072
      %v4092 = vpop.f32.mrf.mxu0
      %v4093 = vadd.f32 %v4028, %v4092
      %v4094 = vpop.f32.mrf.mxu0
      %v4095 = vadd.f32 %v4030, %v4094
      %4096 = vmatmul.bf16.gmra.mxu0 %v4075
      %v4097 = vpop.f32.mrf.mxu0
      %v4098 = vadd.f32 %v4033, %v4097
      %v4099 = vpop.f32.mrf.mxu0
      %v4100 = vadd.f32 %v4035, %v4099
      %4101 = vmatmul.bf16.gmra.mxu0 %v4078
      %v4102 = vpop.f32.mrf.mxu0
      %v4103 = vadd.f32 %v4038, %v4102
      %v4104 = vpop.f32.mrf.mxu0
      %v4105 = vadd.f32 %v4040, %v4104
      %4106 = vmatmul.bf16.gmra.mxu0 %v4081
      %v4107 = vpop.f32.mrf.mxu0
      %v4108 = vadd.f32 %v4043, %v4107
      %v4109 = vpop.f32.mrf.mxu0
      %v4110 = vadd.f32 %v4045, %v4109
      %4111 = vdwg.mxu0
      %v4112 = vld [vmem:[#allocation5 + $0x2] sm:$0xff]
      %v4113 = vld [vmem:[#allocation5 + $0x12] sm:$0xff]
      %v4114 = vld [vmem:[#allocation5 + $0x22] sm:$0xff]
      %v4115 = vld [vmem:[#allocation5 + $0x32] sm:$0xff]
      %v4116 = vld [vmem:[#allocation5 + $0x42] sm:$0xff]
      %v4117 = vld [vmem:[#allocation5 + $0x52] sm:$0xff]
      %v4118 = vld [vmem:[#allocation5 + $0x62] sm:$0xff]
      %v4119 = vld [vmem:[#allocation5 + $0x72] sm:$0xff]
      %v4120 = vpack.c.bf16 %v4113, %v4112
      %v4121 = vpack.c.bf16 %v4115, %v4114
      %v4122 = vpack.c.bf16 %v4117, %v4116
      %v4123 = vpack.c.bf16 %v4119, %v4118
      %v4124 = vld [vmem:[%s7 + $0x40] sm:$0xf]
      %v4125 = vld [vmem:[%s7 + $0x44] sm:$0xf]
      %v4126 = vld [vmem:[%s7 + $0x48] sm:$0xf]
      %v4127 = vld [vmem:[%s7 + $0x4c] sm:$0xf]
      %v4128 = vld [vmem:[%s7 + $0x50] sm:$0xf]
      %v4129 = vld [vmem:[%s7 + $0x54] sm:$0xf]
      %v4130 = vld [vmem:[%s7 + $0x58] sm:$0xf]
      %v4131 = vld [vmem:[%s7 + $0x5c] sm:$0xf]
      %v4140 = vunpack.c.l.b16 %v4124
      %v4141 = vunpack.c.l.b16 %v4125
      %v4142 = vunpack.c.l.b16 %v4126
      %v4143 = vunpack.c.l.b16 %v4127
      %v4144 = vunpack.c.l.b16 %v4128
      %v4145 = vunpack.c.l.b16 %v4129
      %v4146 = vunpack.c.l.b16 %v4130
      %v4147 = vunpack.c.l.b16 %v4131
      %v4148 = vpack.c.b16 %v4141, %v4140
      %v4149 = vpack.c.b16 %v4143, %v4142
      %v4150 = vpack.c.b16 %v4145, %v4144
      %v4151 = vpack.c.b16 %v4147, %v4146
      %v4157 = vsel %vm334, %v4120, 0
      %v4160 = vsel %vm334, %v4121, 0
      %v4163 = vsel %vm334, %v4122, 0
      %v4166 = vsel %vm334, %v4123, 0
      %4168 = vmatpush.bf16.msra.mxu0 0
      %4169 = vmatpush.bf16.msra.mxu0 0
      %4170 = vmatpush.bf16.msra.mxu0 0
      %4171 = vmatpush.bf16.msra.mxu0 0
      %4172 = vmatpush.bf16.msra.mxu0 %v4151
      %4173 = vmatpush.bf16.msra.mxu0 %v4150
      %4174 = vmatpush.bf16.msra.mxu0 %v4149
      %4175 = vmatpush.bf16.msra.mxu0 %v4148
      %4176 = vmatmul.bf16.gmra.mxu0 %v4157
      %v4177 = vpop.f32.mrf.mxu0
      %v4178 = vadd.f32 0.0, %v4177
      %v4179 = vpop.f32.mrf.mxu0
      %v4180 = vadd.f32 0.0, %v4179
      %4181 = vmatmul.bf16.gmra.mxu0 %v4160
      %v4182 = vpop.f32.mrf.mxu0
      %v4183 = vadd.f32 0.0, %v4182
      %v4184 = vpop.f32.mrf.mxu0
      %v4185 = vadd.f32 0.0, %v4184
      %4186 = vmatmul.bf16.gmra.mxu0 %v4163
      %v4187 = vpop.f32.mrf.mxu0
      %v4188 = vadd.f32 0.0, %v4187
      %v4189 = vpop.f32.mrf.mxu0
      %v4190 = vadd.f32 0.0, %v4189
      %4191 = vmatmul.bf16.gmra.mxu0 %v4166
      %v4192 = vpop.f32.mrf.mxu0
      %v4193 = vadd.f32 0.0, %v4192
      %v4194 = vpop.f32.mrf.mxu0
      %v4195 = vadd.f32 0.0, %v4194
      %4196 = vdwg.mxu0
      %v4197 = vadd.f32 %v4093, %v4178
      %v4198 = vadd.f32 %v4095, %v4180
      %v4199 = vadd.f32 %v4098, %v4183
      %v4200 = vadd.f32 %v4100, %v4185
      %v4201 = vadd.f32 %v4103, %v4188
      %v4202 = vadd.f32 %v4105, %v4190
      %v4203 = vadd.f32 %v4108, %v4193
      %v4204 = vadd.f32 %v4110, %v4195
      %v4205 = vld [vmem:[%s3933] sm:$0xff]
      %v4206 = vld [vmem:[%s3933 + $0x10] sm:$0xff]
      %v4207 = vld [vmem:[%s3933 + $0x20] sm:$0xff]
      %v4208 = vld [vmem:[%s3933 + $0x30] sm:$0xff]
      %v4209 = vld [vmem:[%s3933 + $0x40] sm:$0xff]
      %v4210 = vld [vmem:[%s3933 + $0x50] sm:$0xff]
      %v4211 = vld [vmem:[%s3933 + $0x60] sm:$0xff]
      %v4212 = vld [vmem:[%s3933 + $0x70] sm:$0xff]
      %v4213 = vpack.c.bf16 %v4206, %v4205
      %v4214 = vpack.c.bf16 %v4208, %v4207
      %v4215 = vpack.c.bf16 %v4210, %v4209
      %v4216 = vpack.c.bf16 %v4212, %v4211
      %v4217 = vld [vmem:[%s7 + $0x60] sm:$0xf]
      %v4218 = vld [vmem:[%s7 + $0x64] sm:$0xf]
      %v4219 = vld [vmem:[%s7 + $0x68] sm:$0xf]
      %v4220 = vld [vmem:[%s7 + $0x6c] sm:$0xf]
      %v4221 = vld [vmem:[%s7 + $0x70] sm:$0xf]
      %v4222 = vld [vmem:[%s7 + $0x74] sm:$0xf]
      %v4223 = vld [vmem:[%s7 + $0x78] sm:$0xf]
      %v4224 = vld [vmem:[%s7 + $0x7c] sm:$0xf]
      %v4233 = vunpack.c.l.b16 %v4217
      %v4234 = vunpack.c.l.b16 %v4218
      %v4235 = vunpack.c.l.b16 %v4219
      %v4236 = vunpack.c.l.b16 %v4220
      %v4237 = vunpack.c.l.b16 %v4221
      %v4238 = vunpack.c.l.b16 %v4222
      %v4239 = vunpack.c.l.b16 %v4223
      %v4240 = vunpack.c.l.b16 %v4224
      %v4241 = vpack.c.b16 %v4234, %v4233
      %v4242 = vpack.c.b16 %v4236, %v4235
      %v4243 = vpack.c.b16 %v4238, %v4237
      %v4244 = vpack.c.b16 %v4240, %v4239
      %v4250 = vsel %vm334, %v4213, 0
      %v4253 = vsel %vm334, %v4214, 0
      %v4256 = vsel %vm334, %v4215, 0
      %v4259 = vsel %vm334, %v4216, 0
      %4261 = vmatpush.bf16.msra.mxu0 0
      %4262 = vmatpush.bf16.msra.mxu0 0
      %4263 = vmatpush.bf16.msra.mxu0 0
      %4264 = vmatpush.bf16.msra.mxu0 0
      %4265 = vmatpush.bf16.msra.mxu0 %v4244
      %4266 = vmatpush.bf16.msra.mxu0 %v4243
      %4267 = vmatpush.bf16.msra.mxu0 %v4242
      %4268 = vmatpush.bf16.msra.mxu0 %v4241
      %4269 = vmatmul.bf16.gmra.mxu0 %v4250
      %v4270 = vpop.f32.mrf.mxu0
      %v4271 = vadd.f32 0.0, %v4270
      %v4272 = vpop.f32.mrf.mxu0
      %v4273 = vadd.f32 0.0, %v4272
      %4274 = vmatmul.bf16.gmra.mxu0 %v4253
      %v4275 = vpop.f32.mrf.mxu0
      %v4276 = vadd.f32 0.0, %v4275
      %v4277 = vpop.f32.mrf.mxu0
      %v4278 = vadd.f32 0.0, %v4277
      %4279 = vmatmul.bf16.gmra.mxu0 %v4256
      %v4280 = vpop.f32.mrf.mxu0
      %v4281 = vadd.f32 0.0, %v4280
      %v4282 = vpop.f32.mrf.mxu0
      %v4283 = vadd.f32 0.0, %v4282
      %4284 = vmatmul.bf16.gmra.mxu0 %v4259
      %v4285 = vpop.f32.mrf.mxu0
      %v4286 = vadd.f32 0.0, %v4285
      %v4287 = vpop.f32.mrf.mxu0
      %v4288 = vadd.f32 0.0, %v4287
      %4289 = vdwg.mxu0
      %v4290 = vadd.f32 %v4197, %v4271
      %v4291 = vadd.f32 %v4198, %v4273
      %v4292 = vadd.f32 %v4199, %v4276
      %v4293 = vadd.f32 %v4200, %v4278
      %v4294 = vadd.f32 %v4201, %v4281
      %v4295 = vadd.f32 %v4202, %v4283
      %v4296 = vadd.f32 %v4203, %v4286
      %v4297 = vadd.f32 %v4204, %v4288
      %v4298 = vld [vmem:[%s3933 + $0x1] sm:$0xff]
      %v4299 = vld [vmem:[%s3933 + $0x11] sm:$0xff]
      %v4300 = vld [vmem:[%s3933 + $0x21] sm:$0xff]
      %v4301 = vld [vmem:[%s3933 + $0x31] sm:$0xff]
      %v4302 = vld [vmem:[%s3933 + $0x41] sm:$0xff]
      %v4303 = vld [vmem:[%s3933 + $0x51] sm:$0xff]
      %v4304 = vld [vmem:[%s3933 + $0x61] sm:$0xff]
      %v4305 = vld [vmem:[%s3933 + $0x71] sm:$0xff]
      %v4306 = vpack.c.bf16 %v4299, %v4298
      %v4307 = vpack.c.bf16 %v4301, %v4300
      %v4308 = vpack.c.bf16 %v4303, %v4302
      %v4309 = vpack.c.bf16 %v4305, %v4304
      %v4310 = vld [vmem:[%s7 + $0x80] sm:$0xf]
      %v4311 = vld [vmem:[%s7 + $0x84] sm:$0xf]
      %v4312 = vld [vmem:[%s7 + $0x88] sm:$0xf]
      %v4313 = vld [vmem:[%s7 + $0x8c] sm:$0xf]
      %v4314 = vld [vmem:[%s7 + $0x90] sm:$0xf]
      %v4315 = vld [vmem:[%s7 + $0x94] sm:$0xf]
      %v4316 = vld [vmem:[%s7 + $0x98] sm:$0xf]
      %v4317 = vld [vmem:[%s7 + $0x9c] sm:$0xf]
      %v4326 = vunpack.c.l.b16 %v4310
      %v4327 = vunpack.c.l.b16 %v4311
      %v4328 = vunpack.c.l.b16 %v4312
      %v4329 = vunpack.c.l.b16 %v4313
      %v4330 = vunpack.c.l.b16 %v4314
      %v4331 = vunpack.c.l.b16 %v4315
      %v4332 = vunpack.c.l.b16 %v4316
      %v4333 = vunpack.c.l.b16 %v4317
      %v4334 = vpack.c.b16 %v4327, %v4326
      %v4335 = vpack.c.b16 %v4329, %v4328
      %v4336 = vpack.c.b16 %v4331, %v4330
      %v4337 = vpack.c.b16 %v4333, %v4332
      %v4343 = vsel %vm334, %v4306, 0
      %v4346 = vsel %vm334, %v4307, 0
      %v4349 = vsel %vm334, %v4308, 0
      %v4352 = vsel %vm334, %v4309, 0
      %4354 = vmatpush.bf16.msra.mxu0 0
      %4355 = vmatpush.bf16.msra.mxu0 0
      %4356 = vmatpush.bf16.msra.mxu0 0
      %4357 = vmatpush.bf16.msra.mxu0 0
      %4358 = vmatpush.bf16.msra.mxu0 %v4337
      %4359 = vmatpush.bf16.msra.mxu0 %v4336
      %4360 = vmatpush.bf16.msra.mxu0 %v4335
      %4361 = vmatpush.bf16.msra.mxu0 %v4334
      %4362 = vmatmul.bf16.gmra.mxu0 %v4343
      %v4363 = vpop.f32.mrf.mxu0
      %v4364 = vadd.f32 0.0, %v4363
      %v4365 = vpop.f32.mrf.mxu0
      %v4366 = vadd.f32 0.0, %v4365
      %4367 = vmatmul.bf16.gmra.mxu0 %v4346
      %v4368 = vpop.f32.mrf.mxu0
      %v4369 = vadd.f32 0.0, %v4368
      %v4370 = vpop.f32.mrf.mxu0
      %v4371 = vadd.f32 0.0, %v4370
      %4372 = vmatmul.bf16.gmra.mxu0 %v4349
      %v4373 = vpop.f32.mrf.mxu0
      %v4374 = vadd.f32 0.0, %v4373
      %v4375 = vpop.f32.mrf.mxu0
      %v4376 = vadd.f32 0.0, %v4375
      %4377 = vmatmul.bf16.gmra.mxu0 %v4352
      %v4378 = vpop.f32.mrf.mxu0
      %v4379 = vadd.f32 0.0, %v4378
      %v4380 = vpop.f32.mrf.mxu0
      %v4381 = vadd.f32 0.0, %v4380
      %4382 = vdwg.mxu0
      %v4383 = vadd.f32 %v4290, %v4364
      %v4384 = vadd.f32 %v4291, %v4366
      %v4385 = vadd.f32 %v4292, %v4369
      %v4386 = vadd.f32 %v4293, %v4371
      %v4387 = vadd.f32 %v4294, %v4374
      %v4388 = vadd.f32 %v4295, %v4376
      %v4389 = vadd.f32 %v4296, %v4379
      %v4390 = vadd.f32 %v4297, %v4381
      %v4391 = vld [vmem:[%s3933 + $0x2] sm:$0xff]
      %v4392 = vld [vmem:[%s3933 + $0x12] sm:$0xff]
      %v4393 = vld [vmem:[%s3933 + $0x22] sm:$0xff]
      %v4394 = vld [vmem:[%s3933 + $0x32] sm:$0xff]
      %v4395 = vld [vmem:[%s3933 + $0x42] sm:$0xff]
      %v4396 = vld [vmem:[%s3933 + $0x52] sm:$0xff]
      %v4397 = vld [vmem:[%s3933 + $0x62] sm:$0xff]
      %v4398 = vld [vmem:[%s3933 + $0x72] sm:$0xff]
      %v4399 = vpack.c.bf16 %v4392, %v4391
      %v4400 = vpack.c.bf16 %v4394, %v4393
      %v4401 = vpack.c.bf16 %v4396, %v4395
      %v4402 = vpack.c.bf16 %v4398, %v4397
      %v4403 = vld [vmem:[%s7 + $0xa0] sm:$0xf]
      %v4404 = vld [vmem:[%s7 + $0xa4] sm:$0xf]
      %v4405 = vld [vmem:[%s7 + $0xa8] sm:$0xf]
      %v4406 = vld [vmem:[%s7 + $0xac] sm:$0xf]
      %v4407 = vld [vmem:[%s7 + $0xb0] sm:$0xf]
      %v4408 = vld [vmem:[%s7 + $0xb4] sm:$0xf]
      %v4409 = vld [vmem:[%s7 + $0xb8] sm:$0xf]
      %v4410 = vld [vmem:[%s7 + $0xbc] sm:$0xf]
      %v4419 = vunpack.c.l.b16 %v4403
      %v4420 = vunpack.c.l.b16 %v4404
      %v4421 = vunpack.c.l.b16 %v4405
      %v4422 = vunpack.c.l.b16 %v4406
      %v4423 = vunpack.c.l.b16 %v4407
      %v4424 = vunpack.c.l.b16 %v4408
      %v4425 = vunpack.c.l.b16 %v4409
      %v4426 = vunpack.c.l.b16 %v4410
      %v4427 = vpack.c.b16 %v4420, %v4419
      %v4428 = vpack.c.b16 %v4422, %v4421
      %v4429 = vpack.c.b16 %v4424, %v4423
      %v4430 = vpack.c.b16 %v4426, %v4425
      %v4436 = vsel %vm334, %v4399, 0
      %v4439 = vsel %vm334, %v4400, 0
      %v4442 = vsel %vm334, %v4401, 0
      %v4445 = vsel %vm334, %v4402, 0
      %4447 = vmatpush.bf16.msra.mxu0 0
      %4448 = vmatpush.bf16.msra.mxu0 0
      %4449 = vmatpush.bf16.msra.mxu0 0
      %4450 = vmatpush.bf16.msra.mxu0 0
      %4451 = vmatpush.bf16.msra.mxu0 %v4430
      %4452 = vmatpush.bf16.msra.mxu0 %v4429
      %4453 = vmatpush.bf16.msra.mxu0 %v4428
      %4454 = vmatpush.bf16.msra.mxu0 %v4427
      %4455 = vmatmul.bf16.gmra.mxu0 %v4436
      %v4456 = vpop.f32.mrf.mxu0
      %v4457 = vadd.f32 0.0, %v4456
      %v4458 = vpop.f32.mrf.mxu0
      %v4459 = vadd.f32 0.0, %v4458
      %4460 = vmatmul.bf16.gmra.mxu0 %v4439
      %v4461 = vpop.f32.mrf.mxu0
      %v4462 = vadd.f32 0.0, %v4461
      %v4463 = vpop.f32.mrf.mxu0
      %v4464 = vadd.f32 0.0, %v4463
      %4465 = vmatmul.bf16.gmra.mxu0 %v4442
      %v4466 = vpop.f32.mrf.mxu0
      %v4467 = vadd.f32 0.0, %v4466
      %v4468 = vpop.f32.mrf.mxu0
      %v4469 = vadd.f32 0.0, %v4468
      %4470 = vmatmul.bf16.gmra.mxu0 %v4445
      %v4471 = vpop.f32.mrf.mxu0
      %v4472 = vadd.f32 0.0, %v4471
      %v4473 = vpop.f32.mrf.mxu0
      %v4474 = vadd.f32 0.0, %v4473
      %4475 = vdwg.mxu0
      %v4476 = vadd.f32 %v4383, %v4457
      %v4477 = vadd.f32 %v4384, %v4459
      %v4478 = vadd.f32 %v4385, %v4462
      %v4479 = vadd.f32 %v4386, %v4464
      %v4480 = vadd.f32 %v4387, %v4467
      %v4481 = vadd.f32 %v4388, %v4469
      %v4482 = vadd.f32 %v4389, %v4472
      %v4483 = vadd.f32 %v4390, %v4474
      %s4484 = scalar_lea.vmem [#allocation5], 32
      %v4485 = vld [vmem:[%s4484] sm:$0xff]
      %v4486 = vld [vmem:[%s4484 + $0x10] sm:$0xff]
      %v4487 = vld [vmem:[%s4484 + $0x20] sm:$0xff]
      %v4488 = vld [vmem:[%s4484 + $0x30] sm:$0xff]
      %v4489 = vld [vmem:[%s4484 + $0x40] sm:$0xff]
      %v4490 = vld [vmem:[%s4484 + $0x50] sm:$0xff]
      %v4491 = vld [vmem:[%s4484 + $0x60] sm:$0xff]
      %v4492 = vld [vmem:[%s4484 + $0x70] sm:$0xff]
      %v4493 = vpack.c.bf16 %v4486, %v4485
      %v4494 = vpack.c.bf16 %v4488, %v4487
      %v4495 = vpack.c.bf16 %v4490, %v4489
      %v4496 = vpack.c.bf16 %v4492, %v4491
      %v4497 = vld [vmem:[%s7 + $0xc0] sm:$0xf]
      %v4498 = vld [vmem:[%s7 + $0xc4] sm:$0xf]
      %v4499 = vld [vmem:[%s7 + $0xc8] sm:$0xf]
      %v4500 = vld [vmem:[%s7 + $0xcc] sm:$0xf]
      %v4501 = vld [vmem:[%s7 + $0xd0] sm:$0xf]
      %v4502 = vld [vmem:[%s7 + $0xd4] sm:$0xf]
      %v4503 = vld [vmem:[%s7 + $0xd8] sm:$0xf]
      %v4504 = vld [vmem:[%s7 + $0xdc] sm:$0xf]
      %v4513 = vunpack.c.l.b16 %v4497
      %v4514 = vunpack.c.l.b16 %v4498
      %v4515 = vunpack.c.l.b16 %v4499
      %v4516 = vunpack.c.l.b16 %v4500
      %v4517 = vunpack.c.l.b16 %v4501
      %v4518 = vunpack.c.l.b16 %v4502
      %v4519 = vunpack.c.l.b16 %v4503
      %v4520 = vunpack.c.l.b16 %v4504
      %v4521 = vpack.c.b16 %v4514, %v4513
      %v4522 = vpack.c.b16 %v4516, %v4515
      %v4523 = vpack.c.b16 %v4518, %v4517
      %v4524 = vpack.c.b16 %v4520, %v4519
      %v4530 = vsel %vm334, %v4493, 0
      %v4533 = vsel %vm334, %v4494, 0
      %v4536 = vsel %vm334, %v4495, 0
      %v4539 = vsel %vm334, %v4496, 0
      %4541 = vmatpush.bf16.msra.mxu0 0
      %4542 = vmatpush.bf16.msra.mxu0 0
      %4543 = vmatpush.bf16.msra.mxu0 0
      %4544 = vmatpush.bf16.msra.mxu0 0
      %4545 = vmatpush.bf16.msra.mxu0 %v4524
      %4546 = vmatpush.bf16.msra.mxu0 %v4523
      %4547 = vmatpush.bf16.msra.mxu0 %v4522
      %4548 = vmatpush.bf16.msra.mxu0 %v4521
      %4549 = vmatmul.bf16.gmra.mxu0 %v4530
      %v4550 = vpop.f32.mrf.mxu0
      %v4551 = vadd.f32 0.0, %v4550
      %v4552 = vpop.f32.mrf.mxu0
      %v4553 = vadd.f32 0.0, %v4552
      %4554 = vmatmul.bf16.gmra.mxu0 %v4533
      %v4555 = vpop.f32.mrf.mxu0
      %v4556 = vadd.f32 0.0, %v4555
      %v4557 = vpop.f32.mrf.mxu0
      %v4558 = vadd.f32 0.0, %v4557
      %4559 = vmatmul.bf16.gmra.mxu0 %v4536
      %v4560 = vpop.f32.mrf.mxu0
      %v4561 = vadd.f32 0.0, %v4560
      %v4562 = vpop.f32.mrf.mxu0
      %v4563 = vadd.f32 0.0, %v4562
      %4564 = vmatmul.bf16.gmra.mxu0 %v4539
      %v4565 = vpop.f32.mrf.mxu0
      %v4566 = vadd.f32 0.0, %v4565
      %v4567 = vpop.f32.mrf.mxu0
      %v4568 = vadd.f32 0.0, %v4567
      %4569 = vdwg.mxu0
      %v4570 = vadd.f32 %v4476, %v4551
      %v4571 = vadd.f32 %v4477, %v4553
      %v4572 = vadd.f32 %v4478, %v4556
      %v4573 = vadd.f32 %v4479, %v4558
      %v4574 = vadd.f32 %v4480, %v4561
      %v4575 = vadd.f32 %v4481, %v4563
      %v4576 = vadd.f32 %v4482, %v4566
      %v4577 = vadd.f32 %v4483, %v4568
      %v4578 = vld [vmem:[%s4484 + $0x1] sm:$0xff]
      %v4579 = vld [vmem:[%s4484 + $0x11] sm:$0xff]
      %v4580 = vld [vmem:[%s4484 + $0x21] sm:$0xff]
      %v4581 = vld [vmem:[%s4484 + $0x31] sm:$0xff]
      %v4582 = vld [vmem:[%s4484 + $0x41] sm:$0xff]
      %v4583 = vld [vmem:[%s4484 + $0x51] sm:$0xff]
      %v4584 = vld [vmem:[%s4484 + $0x61] sm:$0xff]
      %v4585 = vld [vmem:[%s4484 + $0x71] sm:$0xff]
      %v4586 = vpack.c.bf16 %v4579, %v4578
      %v4587 = vpack.c.bf16 %v4581, %v4580
      %v4588 = vpack.c.bf16 %v4583, %v4582
      %v4589 = vpack.c.bf16 %v4585, %v4584
      %v4590 = vld [vmem:[%s7 + $0xe0] sm:$0xf]
      %v4591 = vld [vmem:[%s7 + $0xe4] sm:$0xf]
      %v4592 = vld [vmem:[%s7 + $0xe8] sm:$0xf]
      %v4593 = vld [vmem:[%s7 + $0xec] sm:$0xf]
      %v4594 = vld [vmem:[%s7 + $0xf0] sm:$0xf]
      %v4595 = vld [vmem:[%s7 + $0xf4] sm:$0xf]
      %v4596 = vld [vmem:[%s7 + $0xf8] sm:$0xf]
      %v4597 = vld [vmem:[%s7 + $0xfc] sm:$0xf]
      %v4606 = vunpack.c.l.b16 %v4590
      %v4607 = vunpack.c.l.b16 %v4591
      %v4608 = vunpack.c.l.b16 %v4592
      %v4609 = vunpack.c.l.b16 %v4593
      %v4610 = vunpack.c.l.b16 %v4594
      %v4611 = vunpack.c.l.b16 %v4595
      %v4612 = vunpack.c.l.b16 %v4596
      %v4613 = vunpack.c.l.b16 %v4597
      %v4614 = vpack.c.b16 %v4607, %v4606
      %v4615 = vpack.c.b16 %v4609, %v4608
      %v4616 = vpack.c.b16 %v4611, %v4610
      %v4617 = vpack.c.b16 %v4613, %v4612
      %v4623 = vsel %vm334, %v4586, 0
      %v4626 = vsel %vm334, %v4587, 0
      %v4629 = vsel %vm334, %v4588, 0
      %v4632 = vsel %vm334, %v4589, 0
      %4634 = vmatpush.bf16.msra.mxu0 0
      %4635 = vmatpush.bf16.msra.mxu0 0
      %4636 = vmatpush.bf16.msra.mxu0 0
      %4637 = vmatpush.bf16.msra.mxu0 0
      %4638 = vmatpush.bf16.msra.mxu0 %v4617
      %4639 = vmatpush.bf16.msra.mxu0 %v4616
      %4640 = vmatpush.bf16.msra.mxu0 %v4615
      %4641 = vmatpush.bf16.msra.mxu0 %v4614
      %4642 = vmatmul.bf16.gmra.mxu0 %v4623
      %v4643 = vpop.f32.mrf.mxu0
      %v4644 = vadd.f32 0.0, %v4643
      %v4645 = vpop.f32.mrf.mxu0
      %v4646 = vadd.f32 0.0, %v4645
      %4647 = vmatmul.bf16.gmra.mxu0 %v4626
      %v4648 = vpop.f32.mrf.mxu0
      %v4649 = vadd.f32 0.0, %v4648
      %v4650 = vpop.f32.mrf.mxu0
      %v4651 = vadd.f32 0.0, %v4650
      %4652 = vmatmul.bf16.gmra.mxu0 %v4629
      %v4653 = vpop.f32.mrf.mxu0
      %v4654 = vadd.f32 0.0, %v4653
      %v4655 = vpop.f32.mrf.mxu0
      %v4656 = vadd.f32 0.0, %v4655
      %4657 = vmatmul.bf16.gmra.mxu0 %v4632
      %v4658 = vpop.f32.mrf.mxu0
      %v4659 = vadd.f32 0.0, %v4658
      %v4660 = vpop.f32.mrf.mxu0
      %v4661 = vadd.f32 0.0, %v4660
      %4662 = vdwg.mxu0
      %v4663 = vadd.f32 %v4570, %v4644
      %v4664 = vadd.f32 %v4571, %v4646
      %v4665 = vadd.f32 %v4572, %v4649
      %v4666 = vadd.f32 %v4573, %v4651
      %v4667 = vadd.f32 %v4574, %v4654
      %v4668 = vadd.f32 %v4575, %v4656
      %v4669 = vadd.f32 %v4576, %v4659
      %v4670 = vadd.f32 %v4577, %v4661
      %v4671 = vld [vmem:[%s4484 + $0x2] sm:$0xff]
      %v4672 = vld [vmem:[%s4484 + $0x12] sm:$0xff]
      %v4673 = vld [vmem:[%s4484 + $0x22] sm:$0xff]
      %v4674 = vld [vmem:[%s4484 + $0x32] sm:$0xff]
      %v4675 = vld [vmem:[%s4484 + $0x42] sm:$0xff]
      %v4676 = vld [vmem:[%s4484 + $0x52] sm:$0xff]
      %v4677 = vld [vmem:[%s4484 + $0x62] sm:$0xff]
      %v4678 = vld [vmem:[%s4484 + $0x72] sm:$0xff]
      %v4679 = vpack.c.bf16 %v4672, %v4671
      %v4680 = vpack.c.bf16 %v4674, %v4673
      %v4681 = vpack.c.bf16 %v4676, %v4675
      %v4682 = vpack.c.bf16 %v4678, %v4677
      %v4683 = vld [vmem:[%s7 + $0x100] sm:$0xf]
      %v4684 = vld [vmem:[%s7 + $0x104] sm:$0xf]
      %v4685 = vld [vmem:[%s7 + $0x108] sm:$0xf]
      %v4686 = vld [vmem:[%s7 + $0x10c] sm:$0xf]
      %v4687 = vld [vmem:[%s7 + $0x110] sm:$0xf]
      %v4688 = vld [vmem:[%s7 + $0x114] sm:$0xf]
      %v4689 = vld [vmem:[%s7 + $0x118] sm:$0xf]
      %v4690 = vld [vmem:[%s7 + $0x11c] sm:$0xf]
      %v4699 = vunpack.c.l.b16 %v4683
      %v4700 = vunpack.c.l.b16 %v4684
      %v4701 = vunpack.c.l.b16 %v4685
      %v4702 = vunpack.c.l.b16 %v4686
      %v4703 = vunpack.c.l.b16 %v4687
      %v4704 = vunpack.c.l.b16 %v4688
      %v4705 = vunpack.c.l.b16 %v4689
      %v4706 = vunpack.c.l.b16 %v4690
      %v4707 = vpack.c.b16 %v4700, %v4699
      %v4708 = vpack.c.b16 %v4702, %v4701
      %v4709 = vpack.c.b16 %v4704, %v4703
      %v4710 = vpack.c.b16 %v4706, %v4705
      %v4716 = vsel %vm334, %v4679, 0
      %v4719 = vsel %vm334, %v4680, 0
      %v4722 = vsel %vm334, %v4681, 0
      %v4725 = vsel %vm334, %v4682, 0
      %4727 = vmatpush.bf16.msra.mxu0 0
      %4728 = vmatpush.bf16.msra.mxu0 0
      %4729 = vmatpush.bf16.msra.mxu0 0
      %4730 = vmatpush.bf16.msra.mxu0 0
      %4731 = vmatpush.bf16.msra.mxu0 %v4710
      %4732 = vmatpush.bf16.msra.mxu0 %v4709
      %4733 = vmatpush.bf16.msra.mxu0 %v4708
      %4734 = vmatpush.bf16.msra.mxu0 %v4707
      %4735 = vmatmul.bf16.gmra.mxu0 %v4716
      %v4736 = vpop.f32.mrf.mxu0
      %v4737 = vadd.f32 0.0, %v4736
      %v4738 = vpop.f32.mrf.mxu0
      %v4739 = vadd.f32 0.0, %v4738
      %4740 = vmatmul.bf16.gmra.mxu0 %v4719
      %v4741 = vpop.f32.mrf.mxu0
      %v4742 = vadd.f32 0.0, %v4741
      %v4743 = vpop.f32.mrf.mxu0
      %v4744 = vadd.f32 0.0, %v4743
      %4745 = vmatmul.bf16.gmra.mxu0 %v4722
      %v4746 = vpop.f32.mrf.mxu0
      %v4747 = vadd.f32 0.0, %v4746
      %v4748 = vpop.f32.mrf.mxu0
      %v4749 = vadd.f32 0.0, %v4748
      %4750 = vmatmul.bf16.gmra.mxu0 %v4725
      %v4751 = vpop.f32.mrf.mxu0
      %v4752 = vadd.f32 0.0, %v4751
      %v4753 = vpop.f32.mrf.mxu0
      %v4754 = vadd.f32 0.0, %v4753
      %4755 = vdwg.mxu0
      %v4756 = vadd.f32 %v4663, %v4737
      %v4757 = vadd.f32 %v4664, %v4739
      %v4758 = vadd.f32 %v4665, %v4742
      %v4759 = vadd.f32 %v4666, %v4744
      %v4760 = vadd.f32 %v4667, %v4747
      %v4761 = vadd.f32 %v4668, %v4749
      %v4762 = vadd.f32 %v4669, %v4752
      %v4763 = vadd.f32 %v4670, %v4754
      %v4764 = vld [vmem:[%s8] sm:$0x1]
      %v4766 = vperm.slane %v4764, 0
      %v4768 = vadd.f32 %v4756, %v4766
      %v4769 = vadd.f32 %v4757, %v4766
      %v4770 = vadd.f32 %v4758, %v4766
      %v4771 = vadd.f32 %v4759, %v4766
      %v4772 = vadd.f32 %v4760, %v4766
      %v4773 = vadd.f32 %v4761, %v4766
      %v4774 = vadd.f32 %v4762, %v4766
      %v4775 = vadd.f32 %v4763, %v4766
      %v4776 = vmax.f32 %v4768, 0.0
      %v4777 = vmax.f32 %v4769, 0.0
      %v4778 = vmax.f32 %v4770, 0.0
      %v4779 = vmax.f32 %v4771, 0.0
      %v4780 = vmax.f32 %v4772, 0.0
      %v4781 = vmax.f32 %v4773, 0.0
      %v4782 = vmax.f32 %v4774, 0.0
      %v4783 = vmax.f32 %v4775, 0.0
      %4792 = vrot.lane.b32.xlu0 %v4776, 64
      %v4793 = vpop.permute.xlu0 %4792
      %4794 = vrot.lane.b32.xlu0 %v4777, 64
      %v4795 = vpop.permute.xlu0 %4794
      %4796 = vrot.lane.b32.xlu0 %v4778, 64
      %v4797 = vpop.permute.xlu0 %4796
      %4798 = vrot.lane.b32.xlu0 %v4779, 64
      %v4799 = vpop.permute.xlu0 %4798
      %4800 = vrot.lane.b32.xlu0 %v4780, 64
      %v4801 = vpop.permute.xlu0 %4800
      %4802 = vrot.lane.b32.xlu0 %v4781, 64
      %v4803 = vpop.permute.xlu0 %4802
      %4804 = vrot.lane.b32.xlu0 %v4782, 64
      %v4805 = vpop.permute.xlu0 %4804
      %4806 = vrot.lane.b32.xlu0 %v4783, 64
      %v4807 = vpop.permute.xlu0 %4806
      %v4816 = vsel %vm334, %v4776, %v4793
      %v4817 = vsel %vm334, %v4777, %v4795
      %v4818 = vsel %vm334, %v4778, %v4797
      %v4819 = vsel %vm334, %v4779, %v4799
      %v4820 = vsel %vm334, %v4780, %v4801
      %v4821 = vsel %vm334, %v4781, %v4803
      %v4822 = vsel %vm334, %v4782, %v4805
      %v4823 = vsel %vm334, %v4783, %v4807
      %4824 = vst [vmem:[%s332] sm:$0xff] %v4816
      %4825 = vst [vmem:[%s332 + $0x10] sm:$0xff] %v4817
      %4826 = vst [vmem:[%s332 + $0x20] sm:$0xff] %v4818
      %4827 = vst [vmem:[%s332 + $0x30] sm:$0xff] %v4819
      %4828 = vst [vmem:[%s332 + $0x40] sm:$0xff] %v4820
      %4829 = vst [vmem:[%s332 + $0x50] sm:$0xff] %v4821
      %4830 = vst [vmem:[%s332 + $0x60] sm:$0xff] %v4822
      %4831 = vst [vmem:[%s332 + $0x70] sm:$0xff] %v4823
      %s4832 = scalar_lea.vmem %s332, 8
      %4833 = vst [vmem:[%s4832] sm:$0xff] %v4816
      %4834 = vst [vmem:[%s4832 + $0x10] sm:$0xff] %v4817
      %4835 = vst [vmem:[%s4832 + $0x20] sm:$0xff] %v4818
      %4836 = vst [vmem:[%s4832 + $0x30] sm:$0xff] %v4819
      %4837 = vst [vmem:[%s4832 + $0x40] sm:$0xff] %v4820
      %4838 = vst [vmem:[%s4832 + $0x50] sm:$0xff] %v4821
      %4839 = vst [vmem:[%s4832 + $0x60] sm:$0xff] %v4822
      %4840 = vst [vmem:[%s4832 + $0x70] sm:$0xff] %v4823
      %p4841 = scmp.lt.s32.totalorder %s20, 1
      %s4842 = scalar_select %p4841, %s20, 1
      %s4843 = smul.addr %s4842, 16
      %s4844 = smul.addr %s4843, 8
      %s4845 = scalar_lea.vmem %s9, %s4844
      // Predicated region
      $region57: #{unet_forward.1} parent=55 // pred_check
        %p4846 = pneg %p232
      $region58: #{unet_forward.1} parent=55 // pred_check_branch
        %4848 = sbr.rel (%p4846) target = $region60
      $region59: #{unet_forward.1} parent=55 // pred_region
        _
      $region60: #{unet_forward.1} parent=55 // pred_fallthru
        _
    $region56: #{unet_forward.1} parent=5 // pred_fallthru
      _
    %p4849 = scmp.le.s32.totalorder 2, %s15
    // Predicated region
    $region61: #{unet_forward.1} parent=5 // pred_check
      %p4850 = pneg %p4849
    $region62: #{unet_forward.1} parent=5 // pred_check_branch
      %4852 = sbr.rel (%p4850) target = $region64
    $region63: #{unet_forward.1} parent=5 // pred_region
      %s4853 = ssub.s32 %s15, 2
      // Predicated region
      $region65: #{unet_forward.1} parent=63 // pred_check
        %p4854 = pneg %p238
      $region66: #{unet_forward.1} parent=63 // pred_check_branch
        %4856 = sbr.rel (%p4854) target = $region68
      $region67: #{unet_forward.1} parent=63 // pred_region
        %p4857 = scmp.lt.s32.totalorder %s21, 1
        %s4858 = scalar_select %p4857, %s21, 1
        %s4859 = smul.addr %s4858, 16
        %s4860 = smul.addr %s4859, 8
        %s4861 = scalar_lea.vmem %s9, %s4860
      $region68: #{unet_forward.1} parent=63 // pred_fallthru
        _
    $region64: #{unet_forward.1} parent=5 // pred_fallthru
      _
  $region6: #{unet_forward.1} parent=0 // loop_footer
    %s19 = sadd.s32 1, %s15
  $region7: #{unet_forward.1} parent=0 // loop_footer_branch
    %14 = sbr.rel target = $region3
  $region8: #{unet_forward.1} parent=0 // loop_exit
    _

</llo_original>
